<compile_context>
chip_gen: v7x
topology: tpu7x:2x2x1
jax: 0.10.0
libtpu: 0.0.40
codegen_flags: <defaults>
</compile_context>

<pallas_src>
import functools

import jax
import jax.numpy as jnp
from jax import lax
from jax.experimental import pallas as pl
from jax.experimental.pallas import tpu as pltpu


_VMEM_LIMIT_BYTES = 48 * 1024 * 1024      # explicit scoped-VMEM cap (v5e default
                                          # is 16 MiB; v7x physical is 64 MiB)
_VMEM_TILE_BUDGET = 20 * 1024 * 1024      # per-step working-set target


# ----------------------------------------------------------------------------
# exact (erf-based) GELU, implemented with primitive ops that lower in Mosaic
# ----------------------------------------------------------------------------
_SQRT_HALF = 0.7071067811865476
_ERF_ALPHA = (0.00022905065861350646, 0.0034082910107109506,
              0.050955695062380861, 0.18520832239976145, 1.128379143519084)
_ERF_BETA = (-1.1791602954361697e-07, 2.3547966471313185e-05,
             0.0010179625278914885, 0.014070470171167667,
             0.11098505178285362, 0.49746925110067538, 1.0)


def _polyval(coeffs, x):
    acc = jnp.full_like(x, coeffs[0])
    for c in coeffs[1:]:
        acc = acc * x + c
    return acc


def _erf(x):
    x = jnp.clip(x, -3.832506856900711, 3.832506856900711)
    x2 = x * x
    num = x * _polyval(_ERF_ALPHA, x2)
    den = _polyval(_ERF_BETA, x2)          # strictly positive
    # Division routed to the (otherwise idle) EUP slot.  approx=True deviates
    # ~1e-4 relative from the exact quotient; use approx=False for closeness.
    return num * pl.reciprocal(den, approx=True)


def _gelu_exact(x):
    # TODO(synk): a tanh-based GELU would move most of this VALU work to the
    # EUP, at a numerics cost vs. PyTorch's exact erf GELU.
    return x * 0.5 * (1.0 + _erf(x * _SQRT_HALF))


def _dot(a, b, use_bf16):
    if use_bf16:
        a = a.astype(jnp.bfloat16)
        b = b.astype(jnp.bfloat16)
    return jnp.dot(a, b, preferred_element_type=jnp.float32)


# ----------------------------------------------------------------------------
# lane-tile (H*W) picker
# ----------------------------------------------------------------------------
def _pick_hw_tile(hw, step_lane_bytes, *, vmem_budget=_VMEM_TILE_BUDGET,
                  max_tile=32768):
    """Largest divisor t of hw whose per-step working set (step_lane_bytes per
    lane, double-buffering already counted) fits the VMEM budget.  Prefers
    multiples of 128 (unmasked lane-dense stores) and leaves >= 2 grid steps
    when hw allows, so v7x's two TensorCores can split the 'parallel' axis."""
    cap = max(1, vmem_budget // max(1, step_lane_bytes))
    cap = min(cap, max_tile, hw)
    if hw >= 256:
        cap = min(cap, hw // 2)            # keep >= 2 parallel grid steps
    best = None
    for t in range(cap, 0, -1):
        if hw % t:
            continue
        if t % 128 == 0:
            return t
        if best is None:
            best = t
    # Pathologically indivisible hw (e.g. prime): fall back to one whole-HW
    # step rather than a sea of tiny tiles.
    if best is not None and best >= min(128, hw):
        return best
    return hw


# ----------------------------------------------------------------------------
# Pallas kernel 1: complex spectral mode mixing (einsum 'bixt,ioxt->boxt').
# lo/hi mode blocks and the Cout axis are merged into the lane axis:
#   xr, xi : (Cin, B, Mtot)          Mtot = 2*modes1*modes2  (lo then hi)
#   wr, wd, ws : (Cin, 1, Cout*Mtot) (Karatsuba terms, flat index o*Mtot+mt)
#   out_re, out_im : (B, Cout*Mtot)
# Karatsuba complex product: wd = wi - wr, ws = wr + wi (weight-sized,
# precomputed in the wrapper) -> 3 full-size multiplies per Cin step.
# ----------------------------------------------------------------------------
def _lane_replicate(x2d, reps):
    """Repeat a (R, L) block `reps` times along the lane axis -> (R, reps*L)."""
    if reps == 1:
        return x2d
    out = x2d
    built = 1
    while built * 2 <= reps:               # doubling: log2(reps) lane concats
        out = jnp.concatenate([out, out], axis=-1)
        built *= 2
    if built < reps:
        out = jnp.concatenate([out] + [x2d] * (reps - built), axis=-1)
    return out


def _mode_mix_kernel(xr_ref, xi_ref, wr_ref, wd_ref, ws_ref, or_ref, oi_ref,
                     *, cout):
    cin, b, _ = xr_ref.shape
    cm = wr_ref.shape[-1]

    def body(i, carry):
        acc_re, acc_im = carry
        xr_i = _lane_replicate(xr_ref[i], cout)     # (B, Cout*Mtot)
        xi_i = _lane_replicate(xi_ref[i], cout)
        wr_i = wr_ref[i]                            # (1, Cout*Mtot)
        k1 = wr_i * (xr_i + xi_i)
        # re += wr*xr - wi*xi ; im += wr*xi + wi*xr
        acc_re = acc_re + (k1 - xi_i * ws_ref[i])
        acc_im = acc_im + (k1 + xr_i * wd_ref[i])
        return acc_re, acc_im

    init = (jnp.zeros((b, cm), jnp.float32), jnp.zeros((b, cm), jnp.float32))
    acc_re, acc_im = lax.fori_loop(0, cin, body, init,
                                   unroll=True if cin <= 16 else 1)
    or_ref[...] = acc_re
    oi_ref[...] = acc_im


def spectral_conv2d(x, w1_re, w1_im, w2_re, w2_im, modes1, modes2):
    """SpectralConv2d.forward.  x: (B, C, H, W) float32 -> (B, Cout, H, W)."""
    B, C, H, W = x.shape
    Wf = W // 2 + 1
    assert 2 * modes1 <= H and modes2 <= Wf, "mode blocks must not overlap"
    Cin, Cout = w1_re.shape[0], w1_re.shape[1]
    M = modes1 * modes2
    Mtot = 2 * M
    CM = Cout * Mtot

    # TODO(synk): rfft2/irfft2 have no clean Pallas TPU equivalent; kept in JAX.
    x_ft = jnp.fft.rfft2(x)                               # (B, C, H, Wf) c64
    lo = x_ft[:, :, :modes1, :modes2].reshape(B, Cin, M)
    hi = x_ft[:, :, H - modes1:, :modes2].reshape(B, Cin, M)
    xc = jnp.transpose(jnp.concatenate([lo, hi], axis=-1), (1, 0, 2))
    xr = jnp.real(xc).astype(jnp.float32)                 # (Cin, B, Mtot)
    xi = jnp.imag(xc).astype(jnp.float32)

    w_re = jnp.concatenate([w1_re.reshape(Cin, Cout, M),
                            w2_re.reshape(Cin, Cout, M)], axis=-1)
    w_im = jnp.concatenate([w1_im.reshape(Cin, Cout, M),
                            w2_im.reshape(Cin, Cout, M)], axis=-1)
    wr = w_re.reshape(Cin, 1, CM)                         # Karatsuba terms
    wd = (w_im - w_re).reshape(Cin, 1, CM)
    ws = (w_re + w_im).reshape(Cin, 1, CM)

    flops = 7 * B * Cin * CM
    bytes_acc = 4 * (2 * Cin * B * Mtot + 3 * Cin * CM + 2 * B * CM)

    out_re, out_im = pl.pallas_call(
        functools.partial(_mode_mix_kernel, cout=Cout),
        out_shape=(jax.ShapeDtypeStruct((B, CM), jnp.float32),
                   jax.ShapeDtypeStruct((B, CM), jnp.float32)),
        cost_estimate=pl.CostEstimate(flops=flops, transcendentals=0,
                                      bytes_accessed=bytes_acc),
    )(xr, xi, wr, wd, ws)

    out = (out_re + 1j * out_im).reshape(B, Cout, Mtot)
    lo_blk = out[:, :, :M].reshape(B, Cout, modes1, modes2)
    hi_blk = out[:, :, M:].reshape(B, Cout, modes1, modes2)

    # Build out_ft by concat + pad (no full-size zeros buffer + two scatters).
    mid = jnp.zeros((B, Cout, H - 2 * modes1, modes2), dtype=lo_blk.dtype)
    cols = jnp.concatenate([lo_blk, mid, hi_blk], axis=2)  # (B,Cout,H,modes2)
    out_ft = jnp.pad(cols, ((0, 0), (0, 0), (0, 0), (0, Wf - modes2)))
    return jnp.fft.irfft2(out_ft, s=(H, W))


# ----------------------------------------------------------------------------
# Pallas kernel 2: 1x1 conv (channel matmul) + bias + residual add + opt. gelu
# NCHW layout with B folded into every block: channels on sublanes, a large
# spatial (H*W) tile on lanes -> lane-dense MXU matmuls and unmasked stores.
#   x, x1: (B, C, HW); w: (Cout, Cin) (native PyTorch layout); b: (Cout,)
# ----------------------------------------------------------------------------
def _pointwise_kernel(x_ref, x1_ref, w_ref, b_ref, o_ref, *, apply_gelu,
                      use_bf16):
    w = w_ref[...]
    bias = b_ref[...]
    for bi in range(x_ref.shape[0]):                 # B folded into the block
        y = _dot(w, x_ref[bi], use_bf16) + bias + x1_ref[bi]
        if apply_gelu:
            y = _gelu_exact(y)
        o_ref[bi] = y


def pointwise_conv_add(x, x1, w, b, apply_gelu, use_bf16=False):
    B, C, HW = x.shape
    Cout = w.shape[0]
    # double-buffered streams: x, x1 (B*C lanes deep) and out (B*Cout)
    step_lane_bytes = 2 * 4 * (B * C + B * C + B * Cout)
    t = _pick_hw_tile(HW, step_lane_bytes)
    kernel = functools.partial(_pointwise_kernel, apply_gelu=apply_gelu,
                               use_bf16=use_bf16)
    flops = 2 * B * HW * Cout * C + 3 * B * Cout * HW
    transc = B * Cout * HW if apply_gelu else 0
    bytes_acc = 4 * (2 * B * C * HW + B * Cout * HW + Cout * C + Cout)
    return pl.pallas_call(
        kernel,
        out_shape=jax.ShapeDtypeStruct((B, Cout, HW), jnp.float32),
        grid=(HW // t,),
        in_specs=[pl.BlockSpec((B, C, t), lambda j: (0, 0, j)),
                  pl.BlockSpec((B, C, t), lambda j: (0, 0, j)),
                  pl.BlockSpec((Cout, C), lambda j: (0, 0)),
                  pl.BlockSpec((Cout, 1), lambda j: (0, 0))],
        out_specs=pl.BlockSpec((B, Cout, t), lambda j: (0, 0, j)),
        compiler_params=pltpu.CompilerParams(
            dimension_semantics=("parallel",),
            vmem_limit_bytes=_VMEM_LIMIT_BYTES),
        cost_estimate=pl.CostEstimate(flops=flops, transcendentals=transc,
                                      bytes_accessed=bytes_acc),
    )(x, x1, w, b.reshape(Cout, 1))


# ----------------------------------------------------------------------------
# Pallas kernel 3: final MLP head  fc1 -> gelu -> fc2  (fused, NCHW layout)
#   x: (B, C, HW); fc1_w: (128, C); fc2_w: (5, 128)  (native PyTorch layouts)
#   out: (B, 5, HW) -> spatial stays on lanes for every matmul / store.
# ----------------------------------------------------------------------------
def _head_kernel(x_ref, w1_ref, b1_ref, w2_ref, b2_ref, o_ref, *, use_bf16):
    w1 = w1_ref[...]
    b1 = b1_ref[...]
    w2 = w2_ref[...]
    b2 = b2_ref[...]
    for bi in range(x_ref.shape[0]):                 # B folded into the block
        h = _dot(w1, x_ref[bi], use_bf16) + b1
        h = _gelu_exact(h)
        o_ref[bi] = _dot(w2, h, use_bf16) + b2


def mlp_head(x, w1, b1, w2, b2, use_bf16=False):
    B, C, HW = x.shape
    Hd = w1.shape[0]
    O = w2.shape[0]
    # double-buffered x / out streams + the (Hd, t) f32 hidden temp
    step_lane_bytes = 4 * (2 * (B * C + B * O) + 2 * Hd)
    t = _pick_hw_tile(HW, step_lane_bytes)
    flops = 2 * B * HW * (Hd * C + O * Hd) + 2 * B * Hd * HW
    transc = B * Hd * HW
    bytes_acc = 4 * (B * C * HW + B * O * HW + Hd * C + Hd + O * Hd + O)
    return pl.pallas_call(
        functools.partial(_head_kernel, use_bf16=use_bf16),
        out_shape=jax.ShapeDtypeStruct((B, O, HW), jnp.float32),
        grid=(HW // t,),
        in_specs=[pl.BlockSpec((B, C, t), lambda j: (0, 0, j)),
                  pl.BlockSpec((Hd, C), lambda j: (0, 0)),
                  pl.BlockSpec((Hd, 1), lambda j: (0, 0)),
                  pl.BlockSpec((O, Hd), lambda j: (0, 0)),
                  pl.BlockSpec((O, 1), lambda j: (0, 0))],
        out_specs=pl.BlockSpec((B, O, t), lambda j: (0, 0, j)),
        compiler_params=pltpu.CompilerParams(
            dimension_semantics=("parallel",),
            vmem_limit_bytes=_VMEM_LIMIT_BYTES),
        cost_estimate=pl.CostEstimate(flops=flops, transcendentals=transc,
                                      bytes_accessed=bytes_acc),
    )(x, w1, b1.reshape(Hd, 1), w2, b2.reshape(O, 1))


# ----------------------------------------------------------------------------
# state_de forward — activation stays NCHW end-to-end (no NHWC round-trips)
# ----------------------------------------------------------------------------
def state_de_forward(params, x, *, modes1, modes2, use_bf16_matmul=False):
    """x: (B, width, dim_x, dim_t) float32 -> (B, dim_x, dim_t, 5)."""
    B, C, H, W = x.shape
    HW = H * W
    n_layers = len(params["layers"])
    for li, layer in enumerate(params["layers"]):
        last = li == n_layers - 1
        # FNO_layer: x1 = SpectralConv2d(x); x2 = Conv2d(1x1)(x); gelu(x1+x2)
        x1 = spectral_conv2d(x, layer["w1_re"], layer["w1_im"],
                             layer["w2_re"], layer["w2_im"], modes1, modes2)
        y = pointwise_conv_add(x.reshape(B, C, HW), x1.reshape(B, C, HW),
                               layer["conv_w"], layer["conv_b"],
                               apply_gelu=not last, use_bf16=use_bf16_matmul)
        x = y.reshape(B, C, H, W)
    out = mlp_head(x.reshape(B, C, HW), params["fc1_w"], params["fc1_b"],
                   params["fc2_w"], params["fc2_b"],
                   use_bf16=use_bf16_matmul)                    # (B, 5, HW)
    # single tiny transpose of the 5-channel output (x.permute(0,2,3,1) + MLP)
    return jnp.transpose(out.reshape(B, 5, H, W), (0, 2, 3, 1))


# ----------------------------------------------------------------------------
# deterministic synthetic parameter init (shapes follow the PyTorch __init__;
# conv / linear weights are stored in the NATIVE PyTorch (out, in) layout)
# ----------------------------------------------------------------------------
def init_params(key, modes1, modes2, width, L):
    keys = jax.random.split(key, L * 6 + 4)
    scale = 1.0 / (width * width)
    cw_bound = width ** -0.5
    layers = []
    for l in range(L):
        k = keys[l * 6:(l + 1) * 6]
        wshape = (width, width, modes1, modes2)
        layers.append(dict(
            # complex spectral weights: real/imag each uniform[0,1) * scale
            w1_re=scale * jax.random.uniform(k[0], wshape, jnp.float32),
            w1_im=scale * jax.random.uniform(k[1], wshape, jnp.float32),
            w2_re=scale * jax.random.uniform(k[2], wshape, jnp.float32),
            w2_im=scale * jax.random.uniform(k[3], wshape, jnp.float32),
            # 1x1 Conv2d weight in PyTorch layout (out_ch, in_ch):
            # y[b, o, s] = sum_i W[o, i] * x[b, i, s] + b[o]
            conv_w=jax.random.uniform(k[4], (width, width), jnp.float32,
                                      -cw_bound, cw_bound),
            conv_b=jax.random.uniform(k[5], (width,), jnp.float32,
                                      -cw_bound, cw_bound),
        ))
    kf = keys[L * 6:]
    b1 = width ** -0.5
    b2 = 128 ** -0.5
    return dict(
        layers=layers,
        # Linear weights in PyTorch layout (out_features, in_features)
        fc1_w=jax.random.uniform(kf[0], (128, width), jnp.float32, -b1, b1),
        fc1_b=jax.random.uniform(kf[1], (128,), jnp.float32, -b1, b1),
        fc2_w=jax.random.uniform(kf[2], (5, 128), jnp.float32, -b2, b2),
        fc2_b=jax.random.uniform(kf[3], (5,), jnp.float32, -b2, b2),
    )


if __name__ == "__main__":
    modes1, modes2, width, L = 4, 4, 8, 2
    B, H, W = 2, 16, 16   # (batch, dim_x, dim_t)

    key = jax.random.PRNGKey(0)
    pkey, xkey = jax.random.split(key)
    params = init_params(pkey, modes1, modes2, width, L)
    x_latent = jax.random.normal(xkey, (B, width, H, W), dtype=jnp.float32)

    fwd = jax.jit(functools.partial(state_de_forward, modes1=modes1,
                                    modes2=modes2))
    out = fwd(params, x_latent)
    jax.block_until_ready(out)
    assert out.shape == (B, H, W, 5), out.shape
    assert bool(jnp.all(jnp.isfinite(out)))
    print("KERNEL_OK")
</pallas_src>

<mosaic_0001>
module attributes {stable_mosaic.version = 11 : i64} {
  func.func @_mode_mix_kernel(%arg0: memref<8x2x32xf32, #tpu.memory_space<vmem>>, %arg1: memref<8x2x32xf32, #tpu.memory_space<vmem>>, %arg2: memref<8x1x256xf32, #tpu.memory_space<vmem>>, %arg3: memref<8x1x256xf32, #tpu.memory_space<vmem>>, %arg4: memref<8x1x256xf32, #tpu.memory_space<vmem>>, %arg5: memref<2x256xf32, #tpu.memory_space<vmem>>, %arg6: memref<2x256xf32, #tpu.memory_space<vmem>>) attributes {dimension_semantics = [], scalar_prefetch = 0 : i64, scratch_operands = 0 : i64, tpu.core_type = #tpu.core_type<tc>} {
    %cst = arith.constant 0.000000e+00 : f32
    %0 = vector.broadcast %cst : f32 to vector<2x256xf32>
    %cst_0 = arith.constant 0.000000e+00 : f32
    %1 = vector.broadcast %cst_0 : f32 to vector<2x256xf32>
    %c0_i32 = arith.constant 0 : i32
    %2 = arith.index_cast %c0_i32 : i32 to index
    %c0 = arith.constant 0 : index
    %c0_1 = arith.constant 0 : index
    %3 = vector.load %arg0[%2, %c0, %c0_1] : memref<8x2x32xf32, #tpu.memory_space<vmem>>, vector<1x2x32xf32>
    %4 = vector.shape_cast %3 : vector<1x2x32xf32> to vector<2x32xf32>
    %5 = tpu.concatenate %4, %4 in 1 : vector<2x32xf32>, vector<2x32xf32> -> vector<2x64xf32>
    %6 = tpu.concatenate %5, %5 in 1 : vector<2x64xf32>, vector<2x64xf32> -> vector<2x128xf32>
    %7 = tpu.concatenate %6, %6 in 1 : vector<2x128xf32>, vector<2x128xf32> -> vector<2x256xf32>
    %8 = arith.index_cast %c0_i32 : i32 to index
    %c0_2 = arith.constant 0 : index
    %c0_3 = arith.constant 0 : index
    %9 = vector.load %arg1[%8, %c0_2, %c0_3] : memref<8x2x32xf32, #tpu.memory_space<vmem>>, vector<1x2x32xf32>
    %10 = vector.shape_cast %9 : vector<1x2x32xf32> to vector<2x32xf32>
    %11 = tpu.concatenate %10, %10 in 1 : vector<2x32xf32>, vector<2x32xf32> -> vector<2x64xf32>
    %12 = tpu.concatenate %11, %11 in 1 : vector<2x64xf32>, vector<2x64xf32> -> vector<2x128xf32>
    %13 = tpu.concatenate %12, %12 in 1 : vector<2x128xf32>, vector<2x128xf32> -> vector<2x256xf32>
    %14 = arith.index_cast %c0_i32 : i32 to index
    %c0_4 = arith.constant 0 : index
    %c0_5 = arith.constant 0 : index
    %15 = vector.load %arg2[%14, %c0_4, %c0_5] : memref<8x1x256xf32, #tpu.memory_space<vmem>>, vector<1x1x256xf32>
    %16 = vector.shape_cast %15 : vector<1x1x256xf32> to vector<1x256xf32>
    %17 = arith.addf %7, %13 : vector<2x256xf32>
    %18 = vector.broadcast %16 : vector<1x256xf32> to vector<2x256xf32>
    %19 = arith.mulf %18, %17 : vector<2x256xf32>
    %20 = arith.index_cast %c0_i32 : i32 to index
    %c0_6 = arith.constant 0 : index
    %c0_7 = arith.constant 0 : index
    %21 = vector.load %arg4[%20, %c0_6, %c0_7] : memref<8x1x256xf32, #tpu.memory_space<vmem>>, vector<1x1x256xf32>
    %22 = vector.shape_cast %21 : vector<1x1x256xf32> to vector<1x256xf32>
    %23 = vector.broadcast %22 : vector<1x256xf32> to vector<2x256xf32>
    %24 = arith.mulf %13, %23 : vector<2x256xf32>
    %25 = arith.subf %19, %24 : vector<2x256xf32>
    %26 = arith.addf %0, %25 : vector<2x256xf32>
    %27 = arith.index_cast %c0_i32 : i32 to index
    %c0_8 = arith.constant 0 : index
    %c0_9 = arith.constant 0 : index
    %28 = vector.load %arg3[%27, %c0_8, %c0_9] : memref<8x1x256xf32, #tpu.memory_space<vmem>>, vector<1x1x256xf32>
    %29 = vector.shape_cast %28 : vector<1x1x256xf32> to vector<1x256xf32>
    %30 = vector.broadcast %29 : vector<1x256xf32> to vector<2x256xf32>
    %31 = arith.mulf %7, %30 : vector<2x256xf32>
    %32 = arith.addf %19, %31 : vector<2x256xf32>
    %33 = arith.addf %1, %32 : vector<2x256xf32>
    %c1_i32 = arith.constant 1 : i32
    %34 = arith.index_cast %c1_i32 : i32 to index
    %c0_10 = arith.constant 0 : index
    %c0_11 = arith.constant 0 : index
    %35 = vector.load %arg0[%34, %c0_10, %c0_11] : memref<8x2x32xf32, #tpu.memory_space<vmem>>, vector<1x2x32xf32>
    %36 = vector.shape_cast %35 : vector<1x2x32xf32> to vector<2x32xf32>
    %37 = tpu.concatenate %36, %36 in 1 : vector<2x32xf32>, vector<2x32xf32> -> vector<2x64xf32>
    %38 = tpu.concatenate %37, %37 in 1 : vector<2x64xf32>, vector<2x64xf32> -> vector<2x128xf32>
    %39 = tpu.concatenate %38, %38 in 1 : vector<2x128xf32>, vector<2x128xf32> -> vector<2x256xf32>
    %40 = arith.index_cast %c1_i32 : i32 to index
    %c0_12 = arith.constant 0 : index
    %c0_13 = arith.constant 0 : index
    %41 = vector.load %arg1[%40, %c0_12, %c0_13] : memref<8x2x32xf32, #tpu.memory_space<vmem>>, vector<1x2x32xf32>
    %42 = vector.shape_cast %41 : vector<1x2x32xf32> to vector<2x32xf32>
    %43 = tpu.concatenate %42, %42 in 1 : vector<2x32xf32>, vector<2x32xf32> -> vector<2x64xf32>
    %44 = tpu.concatenate %43, %43 in 1 : vector<2x64xf32>, vector<2x64xf32> -> vector<2x128xf32>
    %45 = tpu.concatenate %44, %44 in 1 : vector<2x128xf32>, vector<2x128xf32> -> vector<2x256xf32>
    %46 = arith.index_cast %c1_i32 : i32 to index
    %c0_14 = arith.constant 0 : index
    %c0_15 = arith.constant 0 : index
    %47 = vector.load %arg2[%46, %c0_14, %c0_15] : memref<8x1x256xf32, #tpu.memory_space<vmem>>, vector<1x1x256xf32>
    %48 = vector.shape_cast %47 : vector<1x1x256xf32> to vector<1x256xf32>
    %49 = arith.addf %39, %45 : vector<2x256xf32>
    %50 = vector.broadcast %48 : vector<1x256xf32> to vector<2x256xf32>
    %51 = arith.mulf %50, %49 : vector<2x256xf32>
    %52 = arith.index_cast %c1_i32 : i32 to index
    %c0_16 = arith.constant 0 : index
    %c0_17 = arith.constant 0 : index
    %53 = vector.load %arg4[%52, %c0_16, %c0_17] : memref<8x1x256xf32, #tpu.memory_space<vmem>>, vector<1x1x256xf32>
    %54 = vector.shape_cast %53 : vector<1x1x256xf32> to vector<1x256xf32>
    %55 = vector.broadcast %54 : vector<1x256xf32> to vector<2x256xf32>
    %56 = arith.mulf %45, %55 : vector<2x256xf32>
    %57 = arith.subf %51, %56 : vector<2x256xf32>
    %58 = arith.addf %26, %57 : vector<2x256xf32>
    %59 = arith.index_cast %c1_i32 : i32 to index
    %c0_18 = arith.constant 0 : index
    %c0_19 = arith.constant 0 : index
    %60 = vector.load %arg3[%59, %c0_18, %c0_19] : memref<8x1x256xf32, #tpu.memory_space<vmem>>, vector<1x1x256xf32>
    %61 = vector.shape_cast %60 : vector<1x1x256xf32> to vector<1x256xf32>
    %62 = vector.broadcast %61 : vector<1x256xf32> to vector<2x256xf32>
    %63 = arith.mulf %39, %62 : vector<2x256xf32>
    %64 = arith.addf %51, %63 : vector<2x256xf32>
    %65 = arith.addf %33, %64 : vector<2x256xf32>
    %c2_i32 = arith.constant 2 : i32
    %66 = arith.index_cast %c2_i32 : i32 to index
    %c0_20 = arith.constant 0 : index
    %c0_21 = arith.constant 0 : index
    %67 = vector.load %arg0[%66, %c0_20, %c0_21] : memref<8x2x32xf32, #tpu.memory_space<vmem>>, vector<1x2x32xf32>
    %68 = vector.shape_cast %67 : vector<1x2x32xf32> to vector<2x32xf32>
    %69 = tpu.concatenate %68, %68 in 1 : vector<2x32xf32>, vector<2x32xf32> -> vector<2x64xf32>
    %70 = tpu.concatenate %69, %69 in 1 : vector<2x64xf32>, vector<2x64xf32> -> vector<2x128xf32>
    %71 = tpu.concatenate %70, %70 in 1 : vector<2x128xf32>, vector<2x128xf32> -> vector<2x256xf32>
    %72 = arith.index_cast %c2_i32 : i32 to index
    %c0_22 = arith.constant 0 : index
    %c0_23 = arith.constant 0 : index
    %73 = vector.load %arg1[%72, %c0_22, %c0_23] : memref<8x2x32xf32, #tpu.memory_space<vmem>>, vector<1x2x32xf32>
    %74 = vector.shape_cast %73 : vector<1x2x32xf32> to vector<2x32xf32>
    %75 = tpu.concatenate %74, %74 in 1 : vector<2x32xf32>, vector<2x32xf32> -> vector<2x64xf32>
    %76 = tpu.concatenate %75, %75 in 1 : vector<2x64xf32>, vector<2x64xf32> -> vector<2x128xf32>
    %77 = tpu.concatenate %76, %76 in 1 : vector<2x128xf32>, vector<2x128xf32> -> vector<2x256xf32>
    %78 = arith.index_cast %c2_i32 : i32 to index
    %c0_24 = arith.constant 0 : index
    %c0_25 = arith.constant 0 : index
    %79 = vector.load %arg2[%78, %c0_24, %c0_25] : memref<8x1x256xf32, #tpu.memory_space<vmem>>, vector<1x1x256xf32>
    %80 = vector.shape_cast %79 : vector<1x1x256xf32> to vector<1x256xf32>
    %81 = arith.addf %71, %77 : vector<2x256xf32>
    %82 = vector.broadcast %80 : vector<1x256xf32> to vector<2x256xf32>
    %83 = arith.mulf %82, %81 : vector<2x256xf32>
    %84 = arith.index_cast %c2_i32 : i32 to index
    %c0_26 = arith.constant 0 : index
    %c0_27 = arith.constant 0 : index
    %85 = vector.load %arg4[%84, %c0_26, %c0_27] : memref<8x1x256xf32, #tpu.memory_space<vmem>>, vector<1x1x256xf32>
    %86 = vector.shape_cast %85 : vector<1x1x256xf32> to vector<1x256xf32>
    %87 = vector.broadcast %86 : vector<1x256xf32> to vector<2x256xf32>
    %88 = arith.mulf %77, %87 : vector<2x256xf32>
    %89 = arith.subf %83, %88 : vector<2x256xf32>
    %90 = arith.addf %58, %89 : vector<2x256xf32>
    %91 = arith.index_cast %c2_i32 : i32 to index
    %c0_28 = arith.constant 0 : index
    %c0_29 = arith.constant 0 : index
    %92 = vector.load %arg3[%91, %c0_28, %c0_29] : memref<8x1x256xf32, #tpu.memory_space<vmem>>, vector<1x1x256xf32>
    %93 = vector.shape_cast %92 : vector<1x1x256xf32> to vector<1x256xf32>
    %94 = vector.broadcast %93 : vector<1x256xf32> to vector<2x256xf32>
    %95 = arith.mulf %71, %94 : vector<2x256xf32>
    %96 = arith.addf %83, %95 : vector<2x256xf32>
    %97 = arith.addf %65, %96 : vector<2x256xf32>
    %c3_i32 = arith.constant 3 : i32
    %98 = arith.index_cast %c3_i32 : i32 to index
    %c0_30 = arith.constant 0 : index
    %c0_31 = arith.constant 0 : index
    %99 = vector.load %arg0[%98, %c0_30, %c0_31] : memref<8x2x32xf32, #tpu.memory_space<vmem>>, vector<1x2x32xf32>
    %100 = vector.shape_cast %99 : vector<1x2x32xf32> to vector<2x32xf32>
    %101 = tpu.concatenate %100, %100 in 1 : vector<2x32xf32>, vector<2x32xf32> -> vector<2x64xf32>
    %102 = tpu.concatenate %101, %101 in 1 : vector<2x64xf32>, vector<2x64xf32> -> vector<2x128xf32>
    %103 = tpu.concatenate %102, %102 in 1 : vector<2x128xf32>, vector<2x128xf32> -> vector<2x256xf32>
    %104 = arith.index_cast %c3_i32 : i32 to index
    %c0_32 = arith.constant 0 : index
    %c0_33 = arith.constant 0 : index
    %105 = vector.load %arg1[%104, %c0_32, %c0_33] : memref<8x2x32xf32, #tpu.memory_space<vmem>>, vector<1x2x32xf32>
    %106 = vector.shape_cast %105 : vector<1x2x32xf32> to vector<2x32xf32>
    %107 = tpu.concatenate %106, %106 in 1 : vector<2x32xf32>, vector<2x32xf32> -> vector<2x64xf32>
    %108 = tpu.concatenate %107, %107 in 1 : vector<2x64xf32>, vector<2x64xf32> -> vector<2x128xf32>
    %109 = tpu.concatenate %108, %108 in 1 : vector<2x128xf32>, vector<2x128xf32> -> vector<2x256xf32>
    %110 = arith.index_cast %c3_i32 : i32 to index
    %c0_34 = arith.constant 0 : index
    %c0_35 = arith.constant 0 : index
    %111 = vector.load %arg2[%110, %c0_34, %c0_35] : memref<8x1x256xf32, #tpu.memory_space<vmem>>, vector<1x1x256xf32>
    %112 = vector.shape_cast %111 : vector<1x1x256xf32> to vector<1x256xf32>
    %113 = arith.addf %103, %109 : vector<2x256xf32>
    %114 = vector.broadcast %112 : vector<1x256xf32> to vector<2x256xf32>
    %115 = arith.mulf %114, %113 : vector<2x256xf32>
    %116 = arith.index_cast %c3_i32 : i32 to index
    %c0_36 = arith.constant 0 : index
    %c0_37 = arith.constant 0 : index
    %117 = vector.load %arg4[%116, %c0_36, %c0_37] : memref<8x1x256xf32, #tpu.memory_space<vmem>>, vector<1x1x256xf32>
    %118 = vector.shape_cast %117 : vector<1x1x256xf32> to vector<1x256xf32>
    %119 = vector.broadcast %118 : vector<1x256xf32> to vector<2x256xf32>
    %120 = arith.mulf %109, %119 : vector<2x256xf32>
    %121 = arith.subf %115, %120 : vector<2x256xf32>
    %122 = arith.addf %90, %121 : vector<2x256xf32>
    %123 = arith.index_cast %c3_i32 : i32 to index
    %c0_38 = arith.constant 0 : index
    %c0_39 = arith.constant 0 : index
    %124 = vector.load %arg3[%123, %c0_38, %c0_39] : memref<8x1x256xf32, #tpu.memory_space<vmem>>, vector<1x1x256xf32>
    %125 = vector.shape_cast %124 : vector<1x1x256xf32> to vector<1x256xf32>
    %126 = vector.broadcast %125 : vector<1x256xf32> to vector<2x256xf32>
    %127 = arith.mulf %103, %126 : vector<2x256xf32>
    %128 = arith.addf %115, %127 : vector<2x256xf32>
    %129 = arith.addf %97, %128 : vector<2x256xf32>
    %c4_i32 = arith.constant 4 : i32
    %130 = arith.index_cast %c4_i32 : i32 to index
    %c0_40 = arith.constant 0 : index
    %c0_41 = arith.constant 0 : index
    %131 = vector.load %arg0[%130, %c0_40, %c0_41] : memref<8x2x32xf32, #tpu.memory_space<vmem>>, vector<1x2x32xf32>
    %132 = vector.shape_cast %131 : vector<1x2x32xf32> to vector<2x32xf32>
    %133 = tpu.concatenate %132, %132 in 1 : vector<2x32xf32>, vector<2x32xf32> -> vector<2x64xf32>
    %134 = tpu.concatenate %133, %133 in 1 : vector<2x64xf32>, vector<2x64xf32> -> vector<2x128xf32>
    %135 = tpu.concatenate %134, %134 in 1 : vector<2x128xf32>, vector<2x128xf32> -> vector<2x256xf32>
    %136 = arith.index_cast %c4_i32 : i32 to index
    %c0_42 = arith.constant 0 : index
    %c0_43 = arith.constant 0 : index
    %137 = vector.load %arg1[%136, %c0_42, %c0_43] : memref<8x2x32xf32, #tpu.memory_space<vmem>>, vector<1x2x32xf32>
    %138 = vector.shape_cast %137 : vector<1x2x32xf32> to vector<2x32xf32>
    %139 = tpu.concatenate %138, %138 in 1 : vector<2x32xf32>, vector<2x32xf32> -> vector<2x64xf32>
    %140 = tpu.concatenate %139, %139 in 1 : vector<2x64xf32>, vector<2x64xf32> -> vector<2x128xf32>
    %141 = tpu.concatenate %140, %140 in 1 : vector<2x128xf32>, vector<2x128xf32> -> vector<2x256xf32>
    %142 = arith.index_cast %c4_i32 : i32 to index
    %c0_44 = arith.constant 0 : index
    %c0_45 = arith.constant 0 : index
    %143 = vector.load %arg2[%142, %c0_44, %c0_45] : memref<8x1x256xf32, #tpu.memory_space<vmem>>, vector<1x1x256xf32>
    %144 = vector.shape_cast %143 : vector<1x1x256xf32> to vector<1x256xf32>
    %145 = arith.addf %135, %141 : vector<2x256xf32>
    %146 = vector.broadcast %144 : vector<1x256xf32> to vector<2x256xf32>
    %147 = arith.mulf %146, %145 : vector<2x256xf32>
    %148 = arith.index_cast %c4_i32 : i32 to index
    %c0_46 = arith.constant 0 : index
    %c0_47 = arith.constant 0 : index
    %149 = vector.load %arg4[%148, %c0_46, %c0_47] : memref<8x1x256xf32, #tpu.memory_space<vmem>>, vector<1x1x256xf32>
    %150 = vector.shape_cast %149 : vector<1x1x256xf32> to vector<1x256xf32>
    %151 = vector.broadcast %150 : vector<1x256xf32> to vector<2x256xf32>
    %152 = arith.mulf %141, %151 : vector<2x256xf32>
    %153 = arith.subf %147, %152 : vector<2x256xf32>
    %154 = arith.addf %122, %153 : vector<2x256xf32>
    %155 = arith.index_cast %c4_i32 : i32 to index
    %c0_48 = arith.constant 0 : index
    %c0_49 = arith.constant 0 : index
    %156 = vector.load %arg3[%155, %c0_48, %c0_49] : memref<8x1x256xf32, #tpu.memory_space<vmem>>, vector<1x1x256xf32>
    %157 = vector.shape_cast %156 : vector<1x1x256xf32> to vector<1x256xf32>
    %158 = vector.broadcast %157 : vector<1x256xf32> to vector<2x256xf32>
    %159 = arith.mulf %135, %158 : vector<2x256xf32>
    %160 = arith.addf %147, %159 : vector<2x256xf32>
    %161 = arith.addf %129, %160 : vector<2x256xf32>
    %c5_i32 = arith.constant 5 : i32
    %162 = arith.index_cast %c5_i32 : i32 to index
    %c0_50 = arith.constant 0 : index
    %c0_51 = arith.constant 0 : index
    %163 = vector.load %arg0[%162, %c0_50, %c0_51] : memref<8x2x32xf32, #tpu.memory_space<vmem>>, vector<1x2x32xf32>
    %164 = vector.shape_cast %163 : vector<1x2x32xf32> to vector<2x32xf32>
    %165 = tpu.concatenate %164, %164 in 1 : vector<2x32xf32>, vector<2x32xf32> -> vector<2x64xf32>
    %166 = tpu.concatenate %165, %165 in 1 : vector<2x64xf32>, vector<2x64xf32> -> vector<2x128xf32>
    %167 = tpu.concatenate %166, %166 in 1 : vector<2x128xf32>, vector<2x128xf32> -> vector<2x256xf32>
    %168 = arith.index_cast %c5_i32 : i32 to index
    %c0_52 = arith.constant 0 : index
    %c0_53 = arith.constant 0 : index
    %169 = vector.load %arg1[%168, %c0_52, %c0_53] : memref<8x2x32xf32, #tpu.memory_space<vmem>>, vector<1x2x32xf32>
    %170 = vector.shape_cast %169 : vector<1x2x32xf32> to vector<2x32xf32>
    %171 = tpu.concatenate %170, %170 in 1 : vector<2x32xf32>, vector<2x32xf32> -> vector<2x64xf32>
    %172 = tpu.concatenate %171, %171 in 1 : vector<2x64xf32>, vector<2x64xf32> -> vector<2x128xf32>
    %173 = tpu.concatenate %172, %172 in 1 : vector<2x128xf32>, vector<2x128xf32> -> vector<2x256xf32>
    %174 = arith.index_cast %c5_i32 : i32 to index
    %c0_54 = arith.constant 0 : index
    %c0_55 = arith.constant 0 : index
    %175 = vector.load %arg2[%174, %c0_54, %c0_55] : memref<8x1x256xf32, #tpu.memory_space<vmem>>, vector<1x1x256xf32>
    %176 = vector.shape_cast %175 : vector<1x1x256xf32> to vector<1x256xf32>
    %177 = arith.addf %167, %173 : vector<2x256xf32>
    %178 = vector.broadcast %176 : vector<1x256xf32> to vector<2x256xf32>
    %179 = arith.mulf %178, %177 : vector<2x256xf32>
    %180 = arith.index_cast %c5_i32 : i32 to index
    %c0_56 = arith.constant 0 : index
    %c0_57 = arith.constant 0 : index
    %181 = vector.load %arg4[%180, %c0_56, %c0_57] : memref<8x1x256xf32, #tpu.memory_space<vmem>>, vector<1x1x256xf32>
    %182 = vector.shape_cast %181 : vector<1x1x256xf32> to vector<1x256xf32>
    %183 = vector.broadcast %182 : vector<1x256xf32> to vector<2x256xf32>
    %184 = arith.mulf %173, %183 : vector<2x256xf32>
    %185 = arith.subf %179, %184 : vector<2x256xf32>
    %186 = arith.addf %154, %185 : vector<2x256xf32>
    %187 = arith.index_cast %c5_i32 : i32 to index
    %c0_58 = arith.constant 0 : index
    %c0_59 = arith.constant 0 : index
    %188 = vector.load %arg3[%187, %c0_58, %c0_59] : memref<8x1x256xf32, #tpu.memory_space<vmem>>, vector<1x1x256xf32>
    %189 = vector.shape_cast %188 : vector<1x1x256xf32> to vector<1x256xf32>
    %190 = vector.broadcast %189 : vector<1x256xf32> to vector<2x256xf32>
    %191 = arith.mulf %167, %190 : vector<2x256xf32>
    %192 = arith.addf %179, %191 : vector<2x256xf32>
    %193 = arith.addf %161, %192 : vector<2x256xf32>
    %c6_i32 = arith.constant 6 : i32
    %194 = arith.index_cast %c6_i32 : i32 to index
    %c0_60 = arith.constant 0 : index
    %c0_61 = arith.constant 0 : index
    %195 = vector.load %arg0[%194, %c0_60, %c0_61] : memref<8x2x32xf32, #tpu.memory_space<vmem>>, vector<1x2x32xf32>
    %196 = vector.shape_cast %195 : vector<1x2x32xf32> to vector<2x32xf32>
    %197 = tpu.concatenate %196, %196 in 1 : vector<2x32xf32>, vector<2x32xf32> -> vector<2x64xf32>
    %198 = tpu.concatenate %197, %197 in 1 : vector<2x64xf32>, vector<2x64xf32> -> vector<2x128xf32>
    %199 = tpu.concatenate %198, %198 in 1 : vector<2x128xf32>, vector<2x128xf32> -> vector<2x256xf32>
    %200 = arith.index_cast %c6_i32 : i32 to index
    %c0_62 = arith.constant 0 : index
    %c0_63 = arith.constant 0 : index
    %201 = vector.load %arg1[%200, %c0_62, %c0_63] : memref<8x2x32xf32, #tpu.memory_space<vmem>>, vector<1x2x32xf32>
    %202 = vector.shape_cast %201 : vector<1x2x32xf32> to vector<2x32xf32>
    %203 = tpu.concatenate %202, %202 in 1 : vector<2x32xf32>, vector<2x32xf32> -> vector<2x64xf32>
    %204 = tpu.concatenate %203, %203 in 1 : vector<2x64xf32>, vector<2x64xf32> -> vector<2x128xf32>
    %205 = tpu.concatenate %204, %204 in 1 : vector<2x128xf32>, vector<2x128xf32> -> vector<2x256xf32>
    %206 = arith.index_cast %c6_i32 : i32 to index
    %c0_64 = arith.constant 0 : index
    %c0_65 = arith.constant 0 : index
    %207 = vector.load %arg2[%206, %c0_64, %c0_65] : memref<8x1x256xf32, #tpu.memory_space<vmem>>, vector<1x1x256xf32>
    %208 = vector.shape_cast %207 : vector<1x1x256xf32> to vector<1x256xf32>
    %209 = arith.addf %199, %205 : vector<2x256xf32>
    %210 = vector.broadcast %208 : vector<1x256xf32> to vector<2x256xf32>
    %211 = arith.mulf %210, %209 : vector<2x256xf32>
    %212 = arith.index_cast %c6_i32 : i32 to index
    %c0_66 = arith.constant 0 : index
    %c0_67 = arith.constant 0 : index
    %213 = vector.load %arg4[%212, %c0_66, %c0_67] : memref<8x1x256xf32, #tpu.memory_space<vmem>>, vector<1x1x256xf32>
    %214 = vector.shape_cast %213 : vector<1x1x256xf32> to vector<1x256xf32>
    %215 = vector.broadcast %214 : vector<1x256xf32> to vector<2x256xf32>
    %216 = arith.mulf %205, %215 : vector<2x256xf32>
    %217 = arith.subf %211, %216 : vector<2x256xf32>
    %218 = arith.addf %186, %217 : vector<2x256xf32>
    %219 = arith.index_cast %c6_i32 : i32 to index
    %c0_68 = arith.constant 0 : index
    %c0_69 = arith.constant 0 : index
    %220 = vector.load %arg3[%219, %c0_68, %c0_69] : memref<8x1x256xf32, #tpu.memory_space<vmem>>, vector<1x1x256xf32>
    %221 = vector.shape_cast %220 : vector<1x1x256xf32> to vector<1x256xf32>
    %222 = vector.broadcast %221 : vector<1x256xf32> to vector<2x256xf32>
    %223 = arith.mulf %199, %222 : vector<2x256xf32>
    %224 = arith.addf %211, %223 : vector<2x256xf32>
    %225 = arith.addf %193, %224 : vector<2x256xf32>
    %c7_i32 = arith.constant 7 : i32
    %226 = arith.index_cast %c7_i32 : i32 to index
    %c0_70 = arith.constant 0 : index
    %c0_71 = arith.constant 0 : index
    %227 = vector.load %arg0[%226, %c0_70, %c0_71] : memref<8x2x32xf32, #tpu.memory_space<vmem>>, vector<1x2x32xf32>
    %228 = vector.shape_cast %227 : vector<1x2x32xf32> to vector<2x32xf32>
    %229 = tpu.concatenate %228, %228 in 1 : vector<2x32xf32>, vector<2x32xf32> -> vector<2x64xf32>
    %230 = tpu.concatenate %229, %229 in 1 : vector<2x64xf32>, vector<2x64xf32> -> vector<2x128xf32>
    %231 = tpu.concatenate %230, %230 in 1 : vector<2x128xf32>, vector<2x128xf32> -> vector<2x256xf32>
    %232 = arith.index_cast %c7_i32 : i32 to index
    %c0_72 = arith.constant 0 : index
    %c0_73 = arith.constant 0 : index
    %233 = vector.load %arg1[%232, %c0_72, %c0_73] : memref<8x2x32xf32, #tpu.memory_space<vmem>>, vector<1x2x32xf32>
    %234 = vector.shape_cast %233 : vector<1x2x32xf32> to vector<2x32xf32>
    %235 = tpu.concatenate %234, %234 in 1 : vector<2x32xf32>, vector<2x32xf32> -> vector<2x64xf32>
    %236 = tpu.concatenate %235, %235 in 1 : vector<2x64xf32>, vector<2x64xf32> -> vector<2x128xf32>
    %237 = tpu.concatenate %236, %236 in 1 : vector<2x128xf32>, vector<2x128xf32> -> vector<2x256xf32>
    %238 = arith.index_cast %c7_i32 : i32 to index
    %c0_74 = arith.constant 0 : index
    %c0_75 = arith.constant 0 : index
    %239 = vector.load %arg2[%238, %c0_74, %c0_75] : memref<8x1x256xf32, #tpu.memory_space<vmem>>, vector<1x1x256xf32>
    %240 = vector.shape_cast %239 : vector<1x1x256xf32> to vector<1x256xf32>
    %241 = arith.addf %231, %237 : vector<2x256xf32>
    %242 = vector.broadcast %240 : vector<1x256xf32> to vector<2x256xf32>
    %243 = arith.mulf %242, %241 : vector<2x256xf32>
    %244 = arith.index_cast %c7_i32 : i32 to index
    %c0_76 = arith.constant 0 : index
    %c0_77 = arith.constant 0 : index
    %245 = vector.load %arg4[%244, %c0_76, %c0_77] : memref<8x1x256xf32, #tpu.memory_space<vmem>>, vector<1x1x256xf32>
    %246 = vector.shape_cast %245 : vector<1x1x256xf32> to vector<1x256xf32>
    %247 = vector.broadcast %246 : vector<1x256xf32> to vector<2x256xf32>
    %248 = arith.mulf %237, %247 : vector<2x256xf32>
    %249 = arith.subf %243, %248 : vector<2x256xf32>
    %250 = arith.addf %218, %249 : vector<2x256xf32>
    %251 = arith.index_cast %c7_i32 : i32 to index
    %c0_78 = arith.constant 0 : index
    %c0_79 = arith.constant 0 : index
    %252 = vector.load %arg3[%251, %c0_78, %c0_79] : memref<8x1x256xf32, #tpu.memory_space<vmem>>, vector<1x1x256xf32>
    %253 = vector.shape_cast %252 : vector<1x1x256xf32> to vector<1x256xf32>
    %254 = vector.broadcast %253 : vector<1x256xf32> to vector<2x256xf32>
    %255 = arith.mulf %231, %254 : vector<2x256xf32>
    %256 = arith.addf %243, %255 : vector<2x256xf32>
    %257 = arith.addf %225, %256 : vector<2x256xf32>
    %c8_i32 = arith.constant 8 : i32
    %c0_80 = arith.constant 0 : index
    %c0_81 = arith.constant 0 : index
    %258 = vector.load %arg5[%c0_80, %c0_81] : memref<2x256xf32, #tpu.memory_space<vmem>>, vector<2x256xf32>
    tpu.vector_store %arg5[%c0_80, %c0_81], %250 {strides = array<i32>} : memref<2x256xf32, #tpu.memory_space<vmem>>, vector<2x256xf32>,
    %c0_82 = arith.constant 0 : index
    %c0_83 = arith.constant 0 : index
    %259 = vector.load %arg6[%c0_82, %c0_83] : memref<2x256xf32, #tpu.memory_space<vmem>>, vector<2x256xf32>
    tpu.vector_store %arg6[%c0_82, %c0_83], %257 {strides = array<i32>} : memref<2x256xf32, #tpu.memory_space<vmem>>, vector<2x256xf32>,
    return
  }
}

module attributes {stable_mosaic.version = 11 : i64} {
  func.func @_pointwise_kernel(%arg0: i32, %arg1: memref<2x8x128xf32, #tpu.memory_space<vmem>>, %arg2: memref<2x8x128xf32, #tpu.memory_space<vmem>>, %arg3: memref<8x8xf32, #tpu.memory_space<vmem>>, %arg4: memref<8x1xf32, #tpu.memory_space<vmem>>, %arg5: memref<2x8x128xf32, #tpu.memory_space<vmem>>) attributes {dimension_semantics = [#tpu.dimension_semantics<parallel>], iteration_bounds = array<i64: 2>, scalar_prefetch = 0 : i64, scratch_operands = 0 : i64, tpu.core_type = #tpu.core_type<tc>, window_params = [{transform_indices = @transform_0, window_bounds = array<i64: 2, 8, 128>}, {transform_indices = @transform_1, window_bounds = array<i64: 2, 8, 128>}, {pipeline_mode = #tpu.pipeline_mode<synchronous>, transform_indices = @transform_2, window_bounds = array<i64: 8, 8>}, {pipeline_mode = #tpu.pipeline_mode<synchronous>, transform_indices = @transform_3, window_bounds = array<i64: 8, 1>}, {transform_indices = @transform_4, window_bounds = array<i64: 2, 8, 128>}]} {
    %c0 = arith.constant 0 : index
    %c0_0 = arith.constant 0 : index
    %0 = vector.load %arg3[%c0, %c0_0] : memref<8x8xf32, #tpu.memory_space<vmem>>, vector<8x8xf32>
    %c0_1 = arith.constant 0 : index
    %c0_2 = arith.constant 0 : index
    %1 = vector.load %arg4[%c0_1, %c0_2] : memref<8x1xf32, #tpu.memory_space<vmem>>, vector<8x1xf32>
    %c0_3 = arith.constant 0 : index
    %c0_4 = arith.constant 0 : index
    %c0_5 = arith.constant 0 : index
    %2 = vector.load %arg1[%c0_3, %c0_4, %c0_5] : memref<2x8x128xf32, #tpu.memory_space<vmem>>, vector<1x8x128xf32>
    %3 = vector.shape_cast %2 : vector<1x8x128xf32> to vector<8x128xf32>
    %cst = arith.constant dense<0.000000e+00> : vector<8x128xf32>
    %4 = tpu.matmul %0, %3, %cst {dimension_numbers = #tpu.dot_dimension_numbers<[1], [0], [0], [1], [0, 0, 1, 1], [], []>} : vector<8x8xf32>, vector<8x128xf32>, vector<8x128xf32> -> vector<8x128xf32>
    %5 = vector.broadcast %1 : vector<8x1xf32> to vector<8x128xf32>
    %6 = arith.addf %4, %5 : vector<8x128xf32>
    %c0_6 = arith.constant 0 : index
    %c0_7 = arith.constant 0 : index
    %c0_8 = arith.constant 0 : index
    %7 = vector.load %arg2[%c0_6, %c0_7, %c0_8] : memref<2x8x128xf32, #tpu.memory_space<vmem>>, vector<1x8x128xf32>
    %8 = vector.shape_cast %7 : vector<1x8x128xf32> to vector<8x128xf32>
    %9 = arith.addf %6, %8 : vector<8x128xf32>
    %c0_9 = arith.constant 0 : index
    %c0_10 = arith.constant 0 : index
    %c0_11 = arith.constant 0 : index
    %10 = vector.load %arg5[%c0_9, %c0_10, %c0_11] : memref<2x8x128xf32, #tpu.memory_space<vmem>>, vector<1x8x128xf32>
    %11 = vector.shape_cast %10 : vector<1x8x128xf32> to vector<8x128xf32>
    %12 = vector.shape_cast %9 : vector<8x128xf32> to vector<1x8x128xf32>
    tpu.vector_store %arg5[%c0_9, %c0_10, %c0_11], %12 {strides = array<i32>} : memref<2x8x128xf32, #tpu.memory_space<vmem>>, vector<1x8x128xf32>,
    %c1 = arith.constant 1 : index
    %c0_12 = arith.constant 0 : index
    %c0_13 = arith.constant 0 : index
    %13 = vector.load %arg1[%c1, %c0_12, %c0_13] : memref<2x8x128xf32, #tpu.memory_space<vmem>>, vector<1x8x128xf32>
    %14 = vector.shape_cast %13 : vector<1x8x128xf32> to vector<8x128xf32>
    %cst_14 = arith.constant dense<0.000000e+00> : vector<8x128xf32>
    %15 = tpu.matmul %0, %14, %cst_14 {dimension_numbers = #tpu.dot_dimension_numbers<[1], [0], [0], [1], [0, 0, 1, 1], [], []>} : vector<8x8xf32>, vector<8x128xf32>, vector<8x128xf32> -> vector<8x128xf32>
    %16 = vector.broadcast %1 : vector<8x1xf32> to vector<8x128xf32>
    %17 = arith.addf %15, %16 : vector<8x128xf32>
    %c1_15 = arith.constant 1 : index
    %c0_16 = arith.constant 0 : index
    %c0_17 = arith.constant 0 : index
    %18 = vector.load %arg2[%c1_15, %c0_16, %c0_17] : memref<2x8x128xf32, #tpu.memory_space<vmem>>, vector<1x8x128xf32>
    %19 = vector.shape_cast %18 : vector<1x8x128xf32> to vector<8x128xf32>
    %20 = arith.addf %17, %19 : vector<8x128xf32>
    %c1_18 = arith.constant 1 : index
    %c0_19 = arith.constant 0 : index
    %c0_20 = arith.constant 0 : index
    %21 = vector.load %arg5[%c1_18, %c0_19, %c0_20] : memref<2x8x128xf32, #tpu.memory_space<vmem>>, vector<1x8x128xf32>
    %22 = vector.shape_cast %21 : vector<1x8x128xf32> to vector<8x128xf32>
    %23 = vector.shape_cast %20 : vector<8x128xf32> to vector<1x8x128xf32>
    tpu.vector_store %arg5[%c1_18, %c0_19, %c0_20], %23 {strides = array<i32>} : memref<2x8x128xf32, #tpu.memory_space<vmem>>, vector<1x8x128xf32>,
    return
  }
  func.func @transform_0(%arg0: i32) -> (i32, i32, i32) {
    %c0_i32 = arith.constant 0 : i32
    %c0_i32_0 = arith.constant 0 : i32
    %c0_i32_1 = arith.constant 0 : i32
    return %c0_i32, %c0_i32_0, %arg0 : i32, i32, i32
  }
  func.func @transform_1(%arg0: i32) -> (i32, i32, i32) {
    %c0_i32 = arith.constant 0 : i32
    %c0_i32_0 = arith.constant 0 : i32
    %c0_i32_1 = arith.constant 0 : i32
    return %c0_i32, %c0_i32_0, %arg0 : i32, i32, i32
  }
  func.func @transform_2(%arg0: i32) -> (i32, i32) {
    %c0_i32 = arith.constant 0 : i32
    %c0_i32_0 = arith.constant 0 : i32
    %c0_i32_1 = arith.constant 0 : i32
    return %c0_i32, %c0_i32_0 : i32, i32
  }
  func.func @transform_3(%arg0: i32) -> (i32, i32) {
    %c0_i32 = arith.constant 0 : i32
    %c0_i32_0 = arith.constant 0 : i32
    %c0_i32_1 = arith.constant 0 : i32
    return %c0_i32, %c0_i32_0 : i32, i32
  }
  func.func @transform_4(%arg0: i32) -> (i32, i32, i32) {
    %c0_i32 = arith.constant 0 : i32
    %c0_i32_0 = arith.constant 0 : i32
    %c0_i32_1 = arith.constant 0 : i32
    return %c0_i32, %c0_i32_0, %arg0 : i32, i32, i32
  }
}

module attributes {stable_mosaic.version = 11 : i64} {
  func.func @_pointwise_kernel(%arg0: i32, %arg1: memref<2x8x128xf32, #tpu.memory_space<vmem>>, %arg2: memref<2x8x128xf32, #tpu.memory_space<vmem>>, %arg3: memref<8x8xf32, #tpu.memory_space<vmem>>, %arg4: memref<8x1xf32, #tpu.memory_space<vmem>>, %arg5: memref<2x8x128xf32, #tpu.memory_space<vmem>>) attributes {dimension_semantics = [#tpu.dimension_semantics<parallel>], iteration_bounds = array<i64: 2>, scalar_prefetch = 0 : i64, scratch_operands = 0 : i64, tpu.core_type = #tpu.core_type<tc>, window_params = [{transform_indices = @transform_0, window_bounds = array<i64: 2, 8, 128>}, {transform_indices = @transform_1, window_bounds = array<i64: 2, 8, 128>}, {pipeline_mode = #tpu.pipeline_mode<synchronous>, transform_indices = @transform_2, window_bounds = array<i64: 8, 8>}, {pipeline_mode = #tpu.pipeline_mode<synchronous>, transform_indices = @transform_3, window_bounds = array<i64: 8, 1>}, {transform_indices = @transform_4, window_bounds = array<i64: 2, 8, 128>}]} {
    %c0 = arith.constant 0 : index
    %c0_0 = arith.constant 0 : index
    %0 = vector.load %arg3[%c0, %c0_0] : memref<8x8xf32, #tpu.memory_space<vmem>>, vector<8x8xf32>
    %c0_1 = arith.constant 0 : index
    %c0_2 = arith.constant 0 : index
    %1 = vector.load %arg4[%c0_1, %c0_2] : memref<8x1xf32, #tpu.memory_space<vmem>>, vector<8x1xf32>
    %c0_3 = arith.constant 0 : index
    %c0_4 = arith.constant 0 : index
    %c0_5 = arith.constant 0 : index
    %2 = vector.load %arg1[%c0_3, %c0_4, %c0_5] : memref<2x8x128xf32, #tpu.memory_space<vmem>>, vector<1x8x128xf32>
    %3 = vector.shape_cast %2 : vector<1x8x128xf32> to vector<8x128xf32>
    %cst = arith.constant dense<0.000000e+00> : vector<8x128xf32>
    %4 = tpu.matmul %0, %3, %cst {dimension_numbers = #tpu.dot_dimension_numbers<[1], [0], [0], [1], [0, 0, 1, 1], [], []>} : vector<8x8xf32>, vector<8x128xf32>, vector<8x128xf32> -> vector<8x128xf32>
    %5 = vector.broadcast %1 : vector<8x1xf32> to vector<8x128xf32>
    %6 = arith.addf %4, %5 : vector<8x128xf32>
    %c0_6 = arith.constant 0 : index
    %c0_7 = arith.constant 0 : index
    %c0_8 = arith.constant 0 : index
    %7 = vector.load %arg2[%c0_6, %c0_7, %c0_8] : memref<2x8x128xf32, #tpu.memory_space<vmem>>, vector<1x8x128xf32>
    %8 = vector.shape_cast %7 : vector<1x8x128xf32> to vector<8x128xf32>
    %9 = arith.addf %6, %8 : vector<8x128xf32>
    %cst_9 = arith.constant 5.000000e-01 : f32
    %10 = vector.broadcast %cst_9 : f32 to vector<8x128xf32>
    %11 = arith.mulf %9, %10 : vector<8x128xf32>
    %cst_10 = arith.constant 0.707106769 : f32
    %12 = vector.broadcast %cst_10 : f32 to vector<8x128xf32>
    %13 = arith.mulf %9, %12 : vector<8x128xf32>
    %cst_11 = arith.constant -3.8325069 : f32
    %cst_12 = arith.constant 3.8325069 : f32
    %14 = vector.broadcast %cst_11 : f32 to vector<8x128xf32>
    %15 = arith.maximumf %14, %13 : vector<8x128xf32>
    %16 = vector.broadcast %cst_12 : f32 to vector<8x128xf32>
    %17 = arith.minimumf %16, %15 : vector<8x128xf32>
    %18 = arith.mulf %17, %17 : vector<8x128xf32>
    %cst_13 = arith.constant 2.29050653E-4 : f32
    %19 = vector.broadcast %cst_13 : f32 to vector<8x128xf32>
    %20 = arith.mulf %19, %18 : vector<8x128xf32>
    %cst_14 = arith.constant 0.00340829091 : f32
    %21 = vector.broadcast %cst_14 : f32 to vector<8x128xf32>
    %22 = arith.addf %20, %21 : vector<8x128xf32>
    %23 = arith.mulf %22, %18 : vector<8x128xf32>
    %cst_15 = arith.constant 0.0509556942 : f32
    %24 = vector.broadcast %cst_15 : f32 to vector<8x128xf32>
    %25 = arith.addf %23, %24 : vector<8x128xf32>
    %26 = arith.mulf %25, %18 : vector<8x128xf32>
    %cst_16 = arith.constant 0.185208321 : f32
    %27 = vector.broadcast %cst_16 : f32 to vector<8x128xf32>
    %28 = arith.addf %26, %27 : vector<8x128xf32>
    %29 = arith.mulf %28, %18 : vector<8x128xf32>
    %cst_17 = arith.constant 1.12837911 : f32
    %30 = vector.broadcast %cst_17 : f32 to vector<8x128xf32>
    %31 = arith.addf %29, %30 : vector<8x128xf32>
    %32 = arith.mulf %17, %31 : vector<8x128xf32>
    %cst_18 = arith.constant -1.17916031E-7 : f32
    %33 = vector.broadcast %cst_18 : f32 to vector<8x128xf32>
    %34 = arith.mulf %33, %18 : vector<8x128xf32>
    %cst_19 = arith.constant 2.35479656E-5 : f32
    %35 = vector.broadcast %cst_19 : f32 to vector<8x128xf32>
    %36 = arith.addf %34, %35 : vector<8x128xf32>
    %37 = arith.mulf %36, %18 : vector<8x128xf32>
    %cst_20 = arith.constant 0.00101796258 : f32
    %38 = vector.broadcast %cst_20 : f32 to vector<8x128xf32>
    %39 = arith.addf %37, %38 : vector<8x128xf32>
    %40 = arith.mulf %39, %18 : vector<8x128xf32>
    %cst_21 = arith.constant 0.0140704699 : f32
    %41 = vector.broadcast %cst_21 : f32 to vector<8x128xf32>
    %42 = arith.addf %40, %41 : vector<8x128xf32>
    %43 = arith.mulf %42, %18 : vector<8x128xf32>
    %cst_22 = arith.constant 0.110985048 : f32
    %44 = vector.broadcast %cst_22 : f32 to vector<8x128xf32>
    %45 = arith.addf %43, %44 : vector<8x128xf32>
    %46 = arith.mulf %45, %18 : vector<8x128xf32>
    %cst_23 = arith.constant 0.497469246 : f32
    %47 = vector.broadcast %cst_23 : f32 to vector<8x128xf32>
    %48 = arith.addf %46, %47 : vector<8x128xf32>
    %49 = arith.mulf %48, %18 : vector<8x128xf32>
    %cst_24 = arith.constant 1.000000e+00 : f32
    %50 = vector.broadcast %cst_24 : f32 to vector<8x128xf32>
    %51 = arith.addf %49, %50 : vector<8x128xf32>
    %52 = tpu.reciprocal %51 {approx = true} : vector<8x128xf32> -> vector<8x128xf32>
    %53 = arith.mulf %32, %52 : vector<8x128xf32>
    %cst_25 = arith.constant 1.000000e+00 : f32
    %54 = vector.broadcast %cst_25 : f32 to vector<8x128xf32>
    %55 = arith.addf %54, %53 : vector<8x128xf32>
    %56 = arith.mulf %11, %55 : vector<8x128xf32>
    %c0_26 = arith.constant 0 : index
    %c0_27 = arith.constant 0 : index
    %c0_28 = arith.constant 0 : index
    %57 = vector.load %arg5[%c0_26, %c0_27, %c0_28] : memref<2x8x128xf32, #tpu.memory_space<vmem>>, vector<1x8x128xf32>
    %58 = vector.shape_cast %57 : vector<1x8x128xf32> to vector<8x128xf32>
    %59 = vector.shape_cast %56 : vector<8x128xf32> to vector<1x8x128xf32>
    tpu.vector_store %arg5[%c0_26, %c0_27, %c0_28], %59 {strides = array<i32>} : memref<2x8x128xf32, #tpu.memory_space<vmem>>, vector<1x8x128xf32>,
    %c1 = arith.constant 1 : index
    %c0_29 = arith.constant 0 : index
    %c0_30 = arith.constant 0 : index
    %60 = vector.load %arg1[%c1, %c0_29, %c0_30] : memref<2x8x128xf32, #tpu.memory_space<vmem>>, vector<1x8x128xf32>
    %61 = vector.shape_cast %60 : vector<1x8x128xf32> to vector<8x128xf32>
    %cst_31 = arith.constant dense<0.000000e+00> : vector<8x128xf32>
    %62 = tpu.matmul %0, %61, %cst_31 {dimension_numbers = #tpu.dot_dimension_numbers<[1], [0], [0], [1], [0, 0, 1, 1], [], []>} : vector<8x8xf32>, vector<8x128xf32>, vector<8x128xf32> -> vector<8x128xf32>
    %63 = vector.broadcast %1 : vector<8x1xf32> to vector<8x128xf32>
    %64 = arith.addf %62, %63 : vector<8x128xf32>
    %c1_32 = arith.constant 1 : index
    %c0_33 = arith.constant 0 : index
    %c0_34 = arith.constant 0 : index
    %65 = vector.load %arg2[%c1_32, %c0_33, %c0_34] : memref<2x8x128xf32, #tpu.memory_space<vmem>>, vector<1x8x128xf32>
    %66 = vector.shape_cast %65 : vector<1x8x128xf32> to vector<8x128xf32>
    %67 = arith.addf %64, %66 : vector<8x128xf32>
    %cst_35 = arith.constant 5.000000e-01 : f32
    %68 = vector.broadcast %cst_35 : f32 to vector<8x128xf32>
    %69 = arith.mulf %67, %68 : vector<8x128xf32>
    %cst_36 = arith.constant 0.707106769 : f32
    %70 = vector.broadcast %cst_36 : f32 to vector<8x128xf32>
    %71 = arith.mulf %67, %70 : vector<8x128xf32>
    %cst_37 = arith.constant -3.8325069 : f32
    %cst_38 = arith.constant 3.8325069 : f32
    %72 = vector.broadcast %cst_37 : f32 to vector<8x128xf32>
    %73 = arith.maximumf %72, %71 : vector<8x128xf32>
    %74 = vector.broadcast %cst_38 : f32 to vector<8x128xf32>
    %75 = arith.minimumf %74, %73 : vector<8x128xf32>
    %76 = arith.mulf %75, %75 : vector<8x128xf32>
    %cst_39 = arith.constant 2.29050653E-4 : f32
    %77 = vector.broadcast %cst_39 : f32 to vector<8x128xf32>
    %78 = arith.mulf %77, %76 : vector<8x128xf32>
    %cst_40 = arith.constant 0.00340829091 : f32
    %79 = vector.broadcast %cst_40 : f32 to vector<8x128xf32>
    %80 = arith.addf %78, %79 : vector<8x128xf32>
    %81 = arith.mulf %80, %76 : vector<8x128xf32>
    %cst_41 = arith.constant 0.0509556942 : f32
    %82 = vector.broadcast %cst_41 : f32 to vector<8x128xf32>
    %83 = arith.addf %81, %82 : vector<8x128xf32>
    %84 = arith.mulf %83, %76 : vector<8x128xf32>
    %cst_42 = arith.constant 0.185208321 : f32
    %85 = vector.broadcast %cst_42 : f32 to vector<8x128xf32>
    %86 = arith.addf %84, %85 : vector<8x128xf32>
    %87 = arith.mulf %86, %76 : vector<8x128xf32>
    %cst_43 = arith.constant 1.12837911 : f32
    %88 = vector.broadcast %cst_43 : f32 to vector<8x128xf32>
    %89 = arith.addf %87, %88 : vector<8x128xf32>
    %90 = arith.mulf %75, %89 : vector<8x128xf32>
    %cst_44 = arith.constant -1.17916031E-7 : f32
    %91 = vector.broadcast %cst_44 : f32 to vector<8x128xf32>
    %92 = arith.mulf %91, %76 : vector<8x128xf32>
    %cst_45 = arith.constant 2.35479656E-5 : f32
    %93 = vector.broadcast %cst_45 : f32 to vector<8x128xf32>
    %94 = arith.addf %92, %93 : vector<8x128xf32>
    %95 = arith.mulf %94, %76 : vector<8x128xf32>
    %cst_46 = arith.constant 0.00101796258 : f32
    %96 = vector.broadcast %cst_46 : f32 to vector<8x128xf32>
    %97 = arith.addf %95, %96 : vector<8x128xf32>
    %98 = arith.mulf %97, %76 : vector<8x128xf32>
    %cst_47 = arith.constant 0.0140704699 : f32
    %99 = vector.broadcast %cst_47 : f32 to vector<8x128xf32>
    %100 = arith.addf %98, %99 : vector<8x128xf32>
    %101 = arith.mulf %100, %76 : vector<8x128xf32>
    %cst_48 = arith.constant 0.110985048 : f32
    %102 = vector.broadcast %cst_48 : f32 to vector<8x128xf32>
    %103 = arith.addf %101, %102 : vector<8x128xf32>
    %104 = arith.mulf %103, %76 : vector<8x128xf32>
    %cst_49 = arith.constant 0.497469246 : f32
    %105 = vector.broadcast %cst_49 : f32 to vector<8x128xf32>
    %106 = arith.addf %104, %105 : vector<8x128xf32>
    %107 = arith.mulf %106, %76 : vector<8x128xf32>
    %cst_50 = arith.constant 1.000000e+00 : f32
    %108 = vector.broadcast %cst_50 : f32 to vector<8x128xf32>
    %109 = arith.addf %107, %108 : vector<8x128xf32>
    %110 = tpu.reciprocal %109 {approx = true} : vector<8x128xf32> -> vector<8x128xf32>
    %111 = arith.mulf %90, %110 : vector<8x128xf32>
    %cst_51 = arith.constant 1.000000e+00 : f32
    %112 = vector.broadcast %cst_51 : f32 to vector<8x128xf32>
    %113 = arith.addf %112, %111 : vector<8x128xf32>
    %114 = arith.mulf %69, %113 : vector<8x128xf32>
    %c1_52 = arith.constant 1 : index
    %c0_53 = arith.constant 0 : index
    %c0_54 = arith.constant 0 : index
    %115 = vector.load %arg5[%c1_52, %c0_53, %c0_54] : memref<2x8x128xf32, #tpu.memory_space<vmem>>, vector<1x8x128xf32>
    %116 = vector.shape_cast %115 : vector<1x8x128xf32> to vector<8x128xf32>
    %117 = vector.shape_cast %114 : vector<8x128xf32> to vector<1x8x128xf32>
    tpu.vector_store %arg5[%c1_52, %c0_53, %c0_54], %117 {strides = array<i32>} : memref<2x8x128xf32, #tpu.memory_space<vmem>>, vector<1x8x128xf32>,
    return
  }
  func.func @transform_0(%arg0: i32) -> (i32, i32, i32) {
    %c0_i32 = arith.constant 0 : i32
    %c0_i32_0 = arith.constant 0 : i32
    %c0_i32_1 = arith.constant 0 : i32
    return %c0_i32, %c0_i32_0, %arg0 : i32, i32, i32
  }
  func.func @transform_1(%arg0: i32) -> (i32, i32, i32) {
    %c0_i32 = arith.constant 0 : i32
    %c0_i32_0 = arith.constant 0 : i32
    %c0_i32_1 = arith.constant 0 : i32
    return %c0_i32, %c0_i32_0, %arg0 : i32, i32, i32
  }
  func.func @transform_2(%arg0: i32) -> (i32, i32) {
    %c0_i32 = arith.constant 0 : i32
    %c0_i32_0 = arith.constant 0 : i32
    %c0_i32_1 = arith.constant 0 : i32
    return %c0_i32, %c0_i32_0 : i32, i32
  }
  func.func @transform_3(%arg0: i32) -> (i32, i32) {
    %c0_i32 = arith.constant 0 : i32
    %c0_i32_0 = arith.constant 0 : i32
    %c0_i32_1 = arith.constant 0 : i32
    return %c0_i32, %c0_i32_0 : i32, i32
  }
  func.func @transform_4(%arg0: i32) -> (i32, i32, i32) {
    %c0_i32 = arith.constant 0 : i32
    %c0_i32_0 = arith.constant 0 : i32
    %c0_i32_1 = arith.constant 0 : i32
    return %c0_i32, %c0_i32_0, %arg0 : i32, i32, i32
  }
}

module attributes {stable_mosaic.version = 11 : i64} {
  func.func @_head_kernel(%arg0: i32, %arg1: memref<2x8x128xf32, #tpu.memory_space<vmem>>, %arg2: memref<128x8xf32, #tpu.memory_space<vmem>>, %arg3: memref<128x1xf32, #tpu.memory_space<vmem>>, %arg4: memref<5x128xf32, #tpu.memory_space<vmem>>, %arg5: memref<5x1xf32, #tpu.memory_space<vmem>>, %arg6: memref<2x5x128xf32, #tpu.memory_space<vmem>>) attributes {dimension_semantics = [#tpu.dimension_semantics<parallel>], iteration_bounds = array<i64: 2>, scalar_prefetch = 0 : i64, scratch_operands = 0 : i64, tpu.core_type = #tpu.core_type<tc>, window_params = [{transform_indices = @transform_0, window_bounds = array<i64: 2, 8, 128>}, {pipeline_mode = #tpu.pipeline_mode<synchronous>, transform_indices = @transform_1, window_bounds = array<i64: 128, 8>}, {pipeline_mode = #tpu.pipeline_mode<synchronous>, transform_indices = @transform_2, window_bounds = array<i64: 128, 1>}, {pipeline_mode = #tpu.pipeline_mode<synchronous>, transform_indices = @transform_3, window_bounds = array<i64: 5, 128>}, {pipeline_mode = #tpu.pipeline_mode<synchronous>, transform_indices = @transform_4, window_bounds = array<i64: 5, 1>}, {transform_indices = @transform_5, window_bounds = array<i64: 2, 5, 128>}]} {
    %c0 = arith.constant 0 : index
    %c0_0 = arith.constant 0 : index
    %0 = vector.load %arg2[%c0, %c0_0] : memref<128x8xf32, #tpu.memory_space<vmem>>, vector<128x8xf32>
    %c0_1 = arith.constant 0 : index
    %c0_2 = arith.constant 0 : index
    %1 = vector.load %arg3[%c0_1, %c0_2] : memref<128x1xf32, #tpu.memory_space<vmem>>, vector<128x1xf32>
    %c0_3 = arith.constant 0 : index
    %c0_4 = arith.constant 0 : index
    %2 = vector.load %arg4[%c0_3, %c0_4] : memref<5x128xf32, #tpu.memory_space<vmem>>, vector<5x128xf32>
    %c0_5 = arith.constant 0 : index
    %c0_6 = arith.constant 0 : index
    %3 = vector.load %arg5[%c0_5, %c0_6] : memref<5x1xf32, #tpu.memory_space<vmem>>, vector<5x1xf32>
    %c0_7 = arith.constant 0 : index
    %c0_8 = arith.constant 0 : index
    %c0_9 = arith.constant 0 : index
    %4 = vector.load %arg1[%c0_7, %c0_8, %c0_9] : memref<2x8x128xf32, #tpu.memory_space<vmem>>, vector<1x8x128xf32>
    %5 = vector.shape_cast %4 : vector<1x8x128xf32> to vector<8x128xf32>
    %cst = arith.constant dense<0.000000e+00> : vector<128x128xf32>
    %6 = tpu.matmul %0, %5, %cst {dimension_numbers = #tpu.dot_dimension_numbers<[1], [0], [0], [1], [0, 0, 1, 1], [], []>} : vector<128x8xf32>, vector<8x128xf32>, vector<128x128xf32> -> vector<128x128xf32>
    %7 = vector.broadcast %1 : vector<128x1xf32> to vector<128x128xf32>
    %8 = arith.addf %6, %7 : vector<128x128xf32>
    %cst_10 = arith.constant 5.000000e-01 : f32
    %9 = vector.broadcast %cst_10 : f32 to vector<128x128xf32>
    %10 = arith.mulf %8, %9 : vector<128x128xf32>
    %cst_11 = arith.constant 0.707106769 : f32
    %11 = vector.broadcast %cst_11 : f32 to vector<128x128xf32>
    %12 = arith.mulf %8, %11 : vector<128x128xf32>
    %cst_12 = arith.constant -3.8325069 : f32
    %cst_13 = arith.constant 3.8325069 : f32
    %13 = vector.broadcast %cst_12 : f32 to vector<128x128xf32>
    %14 = arith.maximumf %13, %12 : vector<128x128xf32>
    %15 = vector.broadcast %cst_13 : f32 to vector<128x128xf32>
    %16 = arith.minimumf %15, %14 : vector<128x128xf32>
    %17 = arith.mulf %16, %16 : vector<128x128xf32>
    %cst_14 = arith.constant 2.29050653E-4 : f32
    %18 = vector.broadcast %cst_14 : f32 to vector<128x128xf32>
    %19 = arith.mulf %18, %17 : vector<128x128xf32>
    %cst_15 = arith.constant 0.00340829091 : f32
    %20 = vector.broadcast %cst_15 : f32 to vector<128x128xf32>
    %21 = arith.addf %19, %20 : vector<128x128xf32>
    %22 = arith.mulf %21, %17 : vector<128x128xf32>
    %cst_16 = arith.constant 0.0509556942 : f32
    %23 = vector.broadcast %cst_16 : f32 to vector<128x128xf32>
    %24 = arith.addf %22, %23 : vector<128x128xf32>
    %25 = arith.mulf %24, %17 : vector<128x128xf32>
    %cst_17 = arith.constant 0.185208321 : f32
    %26 = vector.broadcast %cst_17 : f32 to vector<128x128xf32>
    %27 = arith.addf %25, %26 : vector<128x128xf32>
    %28 = arith.mulf %27, %17 : vector<128x128xf32>
    %cst_18 = arith.constant 1.12837911 : f32
    %29 = vector.broadcast %cst_18 : f32 to vector<128x128xf32>
    %30 = arith.addf %28, %29 : vector<128x128xf32>
    %31 = arith.mulf %16, %30 : vector<128x128xf32>
    %cst_19 = arith.constant -1.17916031E-7 : f32
    %32 = vector.broadcast %cst_19 : f32 to vector<128x128xf32>
    %33 = arith.mulf %32, %17 : vector<128x128xf32>
    %cst_20 = arith.constant 2.35479656E-5 : f32
    %34 = vector.broadcast %cst_20 : f32 to vector<128x128xf32>
    %35 = arith.addf %33, %34 : vector<128x128xf32>
    %36 = arith.mulf %35, %17 : vector<128x128xf32>
    %cst_21 = arith.constant 0.00101796258 : f32
    %37 = vector.broadcast %cst_21 : f32 to vector<128x128xf32>
    %38 = arith.addf %36, %37 : vector<128x128xf32>
    %39 = arith.mulf %38, %17 : vector<128x128xf32>
    %cst_22 = arith.constant 0.0140704699 : f32
    %40 = vector.broadcast %cst_22 : f32 to vector<128x128xf32>
    %41 = arith.addf %39, %40 : vector<128x128xf32>
    %42 = arith.mulf %41, %17 : vector<128x128xf32>
    %cst_23 = arith.constant 0.110985048 : f32
    %43 = vector.broadcast %cst_23 : f32 to vector<128x128xf32>
    %44 = arith.addf %42, %43 : vector<128x128xf32>
    %45 = arith.mulf %44, %17 : vector<128x128xf32>
    %cst_24 = arith.constant 0.497469246 : f32
    %46 = vector.broadcast %cst_24 : f32 to vector<128x128xf32>
    %47 = arith.addf %45, %46 : vector<128x128xf32>
    %48 = arith.mulf %47, %17 : vector<128x128xf32>
    %cst_25 = arith.constant 1.000000e+00 : f32
    %49 = vector.broadcast %cst_25 : f32 to vector<128x128xf32>
    %50 = arith.addf %48, %49 : vector<128x128xf32>
    %51 = tpu.reciprocal %50 {approx = true} : vector<128x128xf32> -> vector<128x128xf32>
    %52 = arith.mulf %31, %51 : vector<128x128xf32>
    %cst_26 = arith.constant 1.000000e+00 : f32
    %53 = vector.broadcast %cst_26 : f32 to vector<128x128xf32>
    %54 = arith.addf %53, %52 : vector<128x128xf32>
    %55 = arith.mulf %10, %54 : vector<128x128xf32>
    %cst_27 = arith.constant dense<0.000000e+00> : vector<5x128xf32>
    %56 = tpu.matmul %2, %55, %cst_27 {dimension_numbers = #tpu.dot_dimension_numbers<[1], [0], [0], [1], [0, 0, 1, 1], [], []>} : vector<5x128xf32>, vector<128x128xf32>, vector<5x128xf32> -> vector<5x128xf32>
    %57 = vector.broadcast %3 : vector<5x1xf32> to vector<5x128xf32>
    %58 = arith.addf %56, %57 : vector<5x128xf32>
    %c0_28 = arith.constant 0 : index
    %c0_29 = arith.constant 0 : index
    %c0_30 = arith.constant 0 : index
    %59 = vector.load %arg6[%c0_28, %c0_29, %c0_30] : memref<2x5x128xf32, #tpu.memory_space<vmem>>, vector<1x5x128xf32>
    %60 = vector.shape_cast %59 : vector<1x5x128xf32> to vector<5x128xf32>
    %61 = vector.shape_cast %58 : vector<5x128xf32> to vector<1x5x128xf32>
    tpu.vector_store %arg6[%c0_28, %c0_29, %c0_30], %61 {strides = array<i32>} : memref<2x5x128xf32, #tpu.memory_space<vmem>>, vector<1x5x128xf32>,
    %c1 = arith.constant 1 : index
    %c0_31 = arith.constant 0 : index
    %c0_32 = arith.constant 0 : index
    %62 = vector.load %arg1[%c1, %c0_31, %c0_32] : memref<2x8x128xf32, #tpu.memory_space<vmem>>, vector<1x8x128xf32>
    %63 = vector.shape_cast %62 : vector<1x8x128xf32> to vector<8x128xf32>
    %cst_33 = arith.constant dense<0.000000e+00> : vector<128x128xf32>
    %64 = tpu.matmul %0, %63, %cst_33 {dimension_numbers = #tpu.dot_dimension_numbers<[1], [0], [0], [1], [0, 0, 1, 1], [], []>} : vector<128x8xf32>, vector<8x128xf32>, vector<128x128xf32> -> vector<128x128xf32>
    %65 = vector.broadcast %1 : vector<128x1xf32> to vector<128x128xf32>
    %66 = arith.addf %64, %65 : vector<128x128xf32>
    %cst_34 = arith.constant 5.000000e-01 : f32
    %67 = vector.broadcast %cst_34 : f32 to vector<128x128xf32>
    %68 = arith.mulf %66, %67 : vector<128x128xf32>
    %cst_35 = arith.constant 0.707106769 : f32
    %69 = vector.broadcast %cst_35 : f32 to vector<128x128xf32>
    %70 = arith.mulf %66, %69 : vector<128x128xf32>
    %cst_36 = arith.constant -3.8325069 : f32
    %cst_37 = arith.constant 3.8325069 : f32
    %71 = vector.broadcast %cst_36 : f32 to vector<128x128xf32>
    %72 = arith.maximumf %71, %70 : vector<128x128xf32>
    %73 = vector.broadcast %cst_37 : f32 to vector<128x128xf32>
    %74 = arith.minimumf %73, %72 : vector<128x128xf32>
    %75 = arith.mulf %74, %74 : vector<128x128xf32>
    %cst_38 = arith.constant 2.29050653E-4 : f32
    %76 = vector.broadcast %cst_38 : f32 to vector<128x128xf32>
    %77 = arith.mulf %76, %75 : vector<128x128xf32>
    %cst_39 = arith.constant 0.00340829091 : f32
    %78 = vector.broadcast %cst_39 : f32 to vector<128x128xf32>
    %79 = arith.addf %77, %78 : vector<128x128xf32>
    %80 = arith.mulf %79, %75 : vector<128x128xf32>
    %cst_40 = arith.constant 0.0509556942 : f32
    %81 = vector.broadcast %cst_40 : f32 to vector<128x128xf32>
    %82 = arith.addf %80, %81 : vector<128x128xf32>
    %83 = arith.mulf %82, %75 : vector<128x128xf32>
    %cst_41 = arith.constant 0.185208321 : f32
    %84 = vector.broadcast %cst_41 : f32 to vector<128x128xf32>
    %85 = arith.addf %83, %84 : vector<128x128xf32>
    %86 = arith.mulf %85, %75 : vector<128x128xf32>
    %cst_42 = arith.constant 1.12837911 : f32
    %87 = vector.broadcast %cst_42 : f32 to vector<128x128xf32>
    %88 = arith.addf %86, %87 : vector<128x128xf32>
    %89 = arith.mulf %74, %88 : vector<128x128xf32>
    %cst_43 = arith.constant -1.17916031E-7 : f32
    %90 = vector.broadcast %cst_43 : f32 to vector<128x128xf32>
    %91 = arith.mulf %90, %75 : vector<128x128xf32>
    %cst_44 = arith.constant 2.35479656E-5 : f32
    %92 = vector.broadcast %cst_44 : f32 to vector<128x128xf32>
    %93 = arith.addf %91, %92 : vector<128x128xf32>
    %94 = arith.mulf %93, %75 : vector<128x128xf32>
    %cst_45 = arith.constant 0.00101796258 : f32
    %95 = vector.broadcast %cst_45 : f32 to vector<128x128xf32>
    %96 = arith.addf %94, %95 : vector<128x128xf32>
    %97 = arith.mulf %96, %75 : vector<128x128xf32>
    %cst_46 = arith.constant 0.0140704699 : f32
    %98 = vector.broadcast %cst_46 : f32 to vector<128x128xf32>
    %99 = arith.addf %97, %98 : vector<128x128xf32>
    %100 = arith.mulf %99, %75 : vector<128x128xf32>
    %cst_47 = arith.constant 0.110985048 : f32
    %101 = vector.broadcast %cst_47 : f32 to vector<128x128xf32>
    %102 = arith.addf %100, %101 : vector<128x128xf32>
    %103 = arith.mulf %102, %75 : vector<128x128xf32>
    %cst_48 = arith.constant 0.497469246 : f32
    %104 = vector.broadcast %cst_48 : f32 to vector<128x128xf32>
    %105 = arith.addf %103, %104 : vector<128x128xf32>
    %106 = arith.mulf %105, %75 : vector<128x128xf32>
    %cst_49 = arith.constant 1.000000e+00 : f32
    %107 = vector.broadcast %cst_49 : f32 to vector<128x128xf32>
    %108 = arith.addf %106, %107 : vector<128x128xf32>
    %109 = tpu.reciprocal %108 {approx = true} : vector<128x128xf32> -> vector<128x128xf32>
    %110 = arith.mulf %89, %109 : vector<128x128xf32>
    %cst_50 = arith.constant 1.000000e+00 : f32
    %111 = vector.broadcast %cst_50 : f32 to vector<128x128xf32>
    %112 = arith.addf %111, %110 : vector<128x128xf32>
    %113 = arith.mulf %68, %112 : vector<128x128xf32>
    %cst_51 = arith.constant dense<0.000000e+00> : vector<5x128xf32>
    %114 = tpu.matmul %2, %113, %cst_51 {dimension_numbers = #tpu.dot_dimension_numbers<[1], [0], [0], [1], [0, 0, 1, 1], [], []>} : vector<5x128xf32>, vector<128x128xf32>, vector<5x128xf32> -> vector<5x128xf32>
    %115 = vector.broadcast %3 : vector<5x1xf32> to vector<5x128xf32>
    %116 = arith.addf %114, %115 : vector<5x128xf32>
    %c1_52 = arith.constant 1 : index
    %c0_53 = arith.constant 0 : index
    %c0_54 = arith.constant 0 : index
    %117 = vector.load %arg6[%c1_52, %c0_53, %c0_54] : memref<2x5x128xf32, #tpu.memory_space<vmem>>, vector<1x5x128xf32>
    %118 = vector.shape_cast %117 : vector<1x5x128xf32> to vector<5x128xf32>
    %119 = vector.shape_cast %116 : vector<5x128xf32> to vector<1x5x128xf32>
    tpu.vector_store %arg6[%c1_52, %c0_53, %c0_54], %119 {strides = array<i32>} : memref<2x5x128xf32, #tpu.memory_space<vmem>>, vector<1x5x128xf32>,
    return
  }
  func.func @transform_0(%arg0: i32) -> (i32, i32, i32) {
    %c0_i32 = arith.constant 0 : i32
    %c0_i32_0 = arith.constant 0 : i32
    %c0_i32_1 = arith.constant 0 : i32
    return %c0_i32, %c0_i32_0, %arg0 : i32, i32, i32
  }
  func.func @transform_1(%arg0: i32) -> (i32, i32) {
    %c0_i32 = arith.constant 0 : i32
    %c0_i32_0 = arith.constant 0 : i32
    %c0_i32_1 = arith.constant 0 : i32
    return %c0_i32, %c0_i32_0 : i32, i32
  }
  func.func @transform_2(%arg0: i32) -> (i32, i32) {
    %c0_i32 = arith.constant 0 : i32
    %c0_i32_0 = arith.constant 0 : i32
    %c0_i32_1 = arith.constant 0 : i32
    return %c0_i32, %c0_i32_0 : i32, i32
  }
  func.func @transform_3(%arg0: i32) -> (i32, i32) {
    %c0_i32 = arith.constant 0 : i32
    %c0_i32_0 = arith.constant 0 : i32
    %c0_i32_1 = arith.constant 0 : i32
    return %c0_i32, %c0_i32_0 : i32, i32
  }
  func.func @transform_4(%arg0: i32) -> (i32, i32) {
    %c0_i32 = arith.constant 0 : i32
    %c0_i32_0 = arith.constant 0 : i32
    %c0_i32_1 = arith.constant 0 : i32
    return %c0_i32, %c0_i32_0 : i32, i32
  }
  func.func @transform_5(%arg0: i32) -> (i32, i32, i32) {
    %c0_i32 = arith.constant 0 : i32
    %c0_i32_0 = arith.constant 0 : i32
    %c0_i32_1 = arith.constant 0 : i32
    return %c0_i32, %c0_i32_0, %arg0 : i32, i32, i32
  }
}

</mosaic_0001>

<llo_original>
// kernel: reverse.5
$region0: #{reverse.5}
  %s0 = inlined_call_operand.vmem [shape: f32[2,8,16,7], index: 0, kind: input, shape index: {}]
  %s1 = inlined_call_operand.vmem [shape: f32[2,8,16,7], index: 1, kind: output, shape index: {}]
  $region1: #{reverse.5} parent=0
    #allocation0 [shape = 'u8[131072]{0}', space=vmem, size = 0x20000, scoped, tag = 'operand span for operand 0']
    #allocation1 [shape = 'u8[65536]{0}', space=vmem, size = 0x10000, scoped, tag = 'operand span for operand 1']
    %s2 = scalar_lea.vmem [#allocation0], 8
    // Predicated region
    $region2: #{reverse.5} parent=1 // pred_check
      _
    $region3: #{reverse.5} parent=1 // pred_check_branch
      %4 = sbr.rel (0) target = $region5
    $region4: #{reverse.5} parent=1 // pred_region
      // Predicated region
      $region6: #{reverse.5} parent=4 // pred_check
        _
      $region7: #{reverse.5} parent=4 // pred_check_branch
        %6 = sbr.rel (0) target = $region9
      $region8: #{reverse.5} parent=4 // pred_region
        // Predicated region
        $region21: #{reverse.5} parent=8 // pred_check
          _
        $region22: #{reverse.5} parent=8 // pred_check_branch
          %51 = sbr.rel (0) target = $region24
        $region23: #{reverse.5} parent=8 // pred_region
          loop: start=0, step=1, limit=1
          $region25: #{reverse.5} parent=23 // loop_pre_header
            _
          $region26: #{reverse.5} parent=23 // loop_header
            %s53 = sphi 0, %s57
            %p54 = scmp.ge.s32.totalorder %s53, 1
            %s58 = sphi %s0, %s0
            %s59 = sphi %s2, %s2
          $region27: #{reverse.5} parent=23 // loop_header_branch
            %56 = sbr.rel (%p54) target = $region31
          $region28: #{reverse.5} parent=23 // loop_body
            %v60 = vld [vmem:[%s58] sm:$0xff]
            %61 = vst [vmem:[%s59] sm:$0xff] %v60
            %v62 = vld [vmem:[%s58 + $0x8] sm:$0xff]
            %63 = vst [vmem:[%s59 + $0x10] sm:$0xff] %v62
            %v64 = vld [vmem:[%s58 + $0x10] sm:$0xff]
            %65 = vst [vmem:[%s59 + $0x20] sm:$0xff] %v64
            %v66 = vld [vmem:[%s58 + $0x18] sm:$0xff]
            %67 = vst [vmem:[%s59 + $0x30] sm:$0xff] %v66
            %v68 = vld [vmem:[%s58 + $0x20] sm:$0xff]
            %69 = vst [vmem:[%s59 + $0x40] sm:$0xff] %v68
            %v70 = vld [vmem:[%s58 + $0x28] sm:$0xff]
            %71 = vst [vmem:[%s59 + $0x50] sm:$0xff] %v70
            %v72 = vld [vmem:[%s58 + $0x30] sm:$0xff]
            %73 = vst [vmem:[%s59 + $0x60] sm:$0xff] %v72
            %v74 = vld [vmem:[%s58 + $0x38] sm:$0xff]
            %75 = vst [vmem:[%s59 + $0x70] sm:$0xff] %v74
            %v76 = vld [vmem:[%s58 + $0x40] sm:$0xff]
            %77 = vst [vmem:[%s59 + $0x80] sm:$0xff] %v76
            %v78 = vld [vmem:[%s58 + $0x48] sm:$0xff]
            %79 = vst [vmem:[%s59 + $0x90] sm:$0xff] %v78
            %v80 = vld [vmem:[%s58 + $0x50] sm:$0xff]
            %81 = vst [vmem:[%s59 + $0xa0] sm:$0xff] %v80
            %v82 = vld [vmem:[%s58 + $0x58] sm:$0xff]
            %83 = vst [vmem:[%s59 + $0xb0] sm:$0xff] %v82
            %v84 = vld [vmem:[%s58 + $0x60] sm:$0xff]
            %85 = vst [vmem:[%s59 + $0xc0] sm:$0xff] %v84
            %v86 = vld [vmem:[%s58 + $0x68] sm:$0xff]
            %87 = vst [vmem:[%s59 + $0xd0] sm:$0xff] %v86
            %v88 = vld [vmem:[%s58 + $0x70] sm:$0xff]
            %89 = vst [vmem:[%s59 + $0xe0] sm:$0xff] %v88
            %v90 = vld [vmem:[%s58 + $0x78] sm:$0xff]
            %91 = vst [vmem:[%s59 + $0xf0] sm:$0xff] %v90
          $region29: #{reverse.5} parent=23 // loop_footer
            %s57 = sadd.s32 1, %s53
          $region30: #{reverse.5} parent=23 // loop_footer_branch
            %52 = sbr.rel target = $region26
          $region31: #{reverse.5} parent=23 // loop_exit
            _
        $region24: #{reverse.5} parent=8 // pred_fallthru
          _
        // Predicated region
        $region32: #{reverse.5} parent=8 // pred_check
          _
        $region33: #{reverse.5} parent=8 // pred_check_branch
          %93 = sbr.rel target = $region35
        $region34: #{reverse.5} parent=8 // pred_region
          _
        $region35: #{reverse.5} parent=8 // pred_fallthru
          _
      $region9: #{reverse.5} parent=4 // pred_fallthru
        _
      // Predicated region
      $region10: #{reverse.5} parent=4 // pred_check
        _
      $region11: #{reverse.5} parent=4 // pred_check_branch
        %8 = sbr.rel target = $region13
      $region12: #{reverse.5} parent=4 // pred_region
        loop: start=0, step=1, limit=1
        $region14: #{reverse.5} parent=12 // loop_pre_header
          _
        $region15: #{reverse.5} parent=12 // loop_header
          %s11 = sphi 0, %s15
          %p12 = scmp.ge.s32.totalorder %s11, 1
          %s16 = sphi %s0, %s0
          %s17 = sphi %s2, %s2
        $region16: #{reverse.5} parent=12 // loop_header_branch
          %14 = sbr.rel (%p12) target = $region20
        $region17: #{reverse.5} parent=12 // loop_body
          %v18 = vld [vmem:[%s16] sm:$0xff]
          %19 = vst [vmem:[%s17] sm:$0xff] %v18
          %v20 = vld [vmem:[%s16 + $0x8] sm:$0xff]
          %21 = vst [vmem:[%s17 + $0x10] sm:$0xff] %v20
          %v22 = vld [vmem:[%s16 + $0x10] sm:$0xff]
          %23 = vst [vmem:[%s17 + $0x20] sm:$0xff] %v22
          %v24 = vld [vmem:[%s16 + $0x18] sm:$0xff]
          %25 = vst [vmem:[%s17 + $0x30] sm:$0xff] %v24
          %v26 = vld [vmem:[%s16 + $0x20] sm:$0xff]
          %27 = vst [vmem:[%s17 + $0x40] sm:$0xff] %v26
          %v28 = vld [vmem:[%s16 + $0x28] sm:$0xff]
          %29 = vst [vmem:[%s17 + $0x50] sm:$0xff] %v28
          %v30 = vld [vmem:[%s16 + $0x30] sm:$0xff]
          %31 = vst [vmem:[%s17 + $0x60] sm:$0xff] %v30
          %v32 = vld [vmem:[%s16 + $0x38] sm:$0xff]
          %33 = vst [vmem:[%s17 + $0x70] sm:$0xff] %v32
          %v34 = vld [vmem:[%s16 + $0x40] sm:$0xff]
          %35 = vst [vmem:[%s17 + $0x80] sm:$0xff] %v34
          %v36 = vld [vmem:[%s16 + $0x48] sm:$0xff]
          %37 = vst [vmem:[%s17 + $0x90] sm:$0xff] %v36
          %v38 = vld [vmem:[%s16 + $0x50] sm:$0xff]
          %39 = vst [vmem:[%s17 + $0xa0] sm:$0xff] %v38
          %v40 = vld [vmem:[%s16 + $0x58] sm:$0xff]
          %41 = vst [vmem:[%s17 + $0xb0] sm:$0xff] %v40
          %v42 = vld [vmem:[%s16 + $0x60] sm:$0xff]
          %43 = vst [vmem:[%s17 + $0xc0] sm:$0xff] %v42
          %v44 = vld [vmem:[%s16 + $0x68] sm:$0xff]
          %45 = vst [vmem:[%s17 + $0xd0] sm:$0xff] %v44
          %v46 = vld [vmem:[%s16 + $0x70] sm:$0xff]
          %47 = vst [vmem:[%s17 + $0xe0] sm:$0xff] %v46
          %v48 = vld [vmem:[%s16 + $0x78] sm:$0xff]
          %49 = vst [vmem:[%s17 + $0xf0] sm:$0xff] %v48
        $region18: #{reverse.5} parent=12 // loop_footer
          %s15 = sadd.s32 1, %s11
        $region19: #{reverse.5} parent=12 // loop_footer_branch
          %10 = sbr.rel target = $region15
        $region20: #{reverse.5} parent=12 // loop_exit
          _
      $region13: #{reverse.5} parent=4 // pred_fallthru
        _
    $region5: #{reverse.5} parent=1 // pred_fallthru
      _
    %94 = vnop
    %s95 = scalar_lea.vmem [#allocation0], 7
    %v96 = vld [vmem:[%s95] ss:$-1 sm:$0xff]
    %v97 = vrot.slane %v96, 1
    %98 = vst [vmem:[#allocation1] sm:$0xff] %v97
    %s99 = scalar_lea.vmem [#allocation0], 8
    %s100 = scalar_lea.vmem %s99, 7 [#allocation0]
    %v101 = vld [vmem:[%s100] ss:$-1 sm:$0xff]
    %v102 = vrot.slane %v101, 1
    %v103 = vlaneseq
    %v104 = vshrl.u32 %v103, 7
    %vm105 = vcmp.lt.s32.totalorder %v104, 7
    %106 = vst.msk [vmem:[#allocation1] sm:$0xff] %vm105, %v102
    %s107 = scalar_lea.vmem [#allocation1], 8
    %s108 = scalar_lea.vmem [#allocation0], 16
    %s109 = scalar_lea.vmem %s108, 7 [#allocation0]
    %v110 = vld [vmem:[%s109] ss:$-1 sm:$0xff]
    %v111 = vrot.slane %v110, 1
    %112 = vst [vmem:[%s107] sm:$0xff] %v111
    %s113 = scalar_lea.vmem %s108, 8 [#allocation0]
    %s114 = scalar_lea.vmem %s113, 7 [#allocation0]
    %v115 = vld [vmem:[%s114] ss:$-1 sm:$0xff]
    %v116 = vrot.slane %v115, 1
    %v117 = vlaneseq
    %v118 = vshrl.u32 %v117, 7
    %vm119 = vcmp.lt.s32.totalorder %v118, 7
    %120 = vst.msk [vmem:[%s107] sm:$0xff] %vm119, %v116
    %s121 = scalar_lea.vmem [#allocation1], 16
    %s122 = scalar_lea.vmem [#allocation0], 32
    %s123 = scalar_lea.vmem %s122, 7 [#allocation0]
    %v124 = vld [vmem:[%s123] ss:$-1 sm:$0xff]
    %v125 = vrot.slane %v124, 1
    %126 = vst [vmem:[%s121] sm:$0xff] %v125
    %s127 = scalar_lea.vmem %s122, 8 [#allocation0]
    %s128 = scalar_lea.vmem %s127, 7 [#allocation0]
    %v129 = vld [vmem:[%s128] ss:$-1 sm:$0xff]
    %v130 = vrot.slane %v129, 1
    %v131 = vlaneseq
    %v132 = vshrl.u32 %v131, 7
    %vm133 = vcmp.lt.s32.totalorder %v132, 7
    %134 = vst.msk [vmem:[%s121] sm:$0xff] %vm133, %v130
    %s135 = scalar_lea.vmem [#allocation1], 24
    %s136 = scalar_lea.vmem [#allocation0], 48
    %s137 = scalar_lea.vmem %s136, 7 [#allocation0]
    %v138 = vld [vmem:[%s137] ss:$-1 sm:$0xff]
    %v139 = vrot.slane %v138, 1
    %140 = vst [vmem:[%s135] sm:$0xff] %v139
    %s141 = scalar_lea.vmem %s136, 8 [#allocation0]
    %s142 = scalar_lea.vmem %s141, 7 [#allocation0]
    %v143 = vld [vmem:[%s142] ss:$-1 sm:$0xff]
    %v144 = vrot.slane %v143, 1
    %v145 = vlaneseq
    %v146 = vshrl.u32 %v145, 7
    %vm147 = vcmp.lt.s32.totalorder %v146, 7
    %148 = vst.msk [vmem:[%s135] sm:$0xff] %vm147, %v144
    %s149 = scalar_lea.vmem [#allocation1], 32
    %s150 = scalar_lea.vmem [#allocation0], 64
    %s151 = scalar_lea.vmem %s150, 7 [#allocation0]
    %v152 = vld [vmem:[%s151] ss:$-1 sm:$0xff]
    %v153 = vrot.slane %v152, 1
    %154 = vst [vmem:[%s149] sm:$0xff] %v153
    %s155 = scalar_lea.vmem %s150, 8 [#allocation0]
    %s156 = scalar_lea.vmem %s155, 7 [#allocation0]
    %v157 = vld [vmem:[%s156] ss:$-1 sm:$0xff]
    %v158 = vrot.slane %v157, 1
    %v159 = vlaneseq
    %v160 = vshrl.u32 %v159, 7
    %vm161 = vcmp.lt.s32.totalorder %v160, 7
    %162 = vst.msk [vmem:[%s149] sm:$0xff] %vm161, %v158
    %s163 = scalar_lea.vmem [#allocation1], 40
    %s164 = scalar_lea.vmem [#allocation0], 80
    %s165 = scalar_lea.vmem %s164, 7 [#allocation0]
    %v166 = vld [vmem:[%s165] ss:$-1 sm:$0xff]
    %v167 = vrot.slane %v166, 1
    %168 = vst [vmem:[%s163] sm:$0xff] %v167
    %s169 = scalar_lea.vmem %s164, 8 [#allocation0]
    %s170 = scalar_lea.vmem %s169, 7 [#allocation0]
    %v171 = vld [vmem:[%s170] ss:$-1 sm:$0xff]
    %v172 = vrot.slane %v171, 1
    %v173 = vlaneseq
    %v174 = vshrl.u32 %v173, 7
    %vm175 = vcmp.lt.s32.totalorder %v174, 7
    %176 = vst.msk [vmem:[%s163] sm:$0xff] %vm175, %v172
    %s177 = scalar_lea.vmem [#allocation1], 48
    %s178 = scalar_lea.vmem [#allocation0], 96
    %s179 = scalar_lea.vmem %s178, 7 [#allocation0]
    %v180 = vld [vmem:[%s179] ss:$-1 sm:$0xff]
    %v181 = vrot.slane %v180, 1
    %182 = vst [vmem:[%s177] sm:$0xff] %v181
    %s183 = scalar_lea.vmem %s178, 8 [#allocation0]
    %s184 = scalar_lea.vmem %s183, 7 [#allocation0]
    %v185 = vld [vmem:[%s184] ss:$-1 sm:$0xff]
    %v186 = vrot.slane %v185, 1
    %v187 = vlaneseq
    %v188 = vshrl.u32 %v187, 7
    %vm189 = vcmp.lt.s32.totalorder %v188, 7
    %190 = vst.msk [vmem:[%s177] sm:$0xff] %vm189, %v186
    %s191 = scalar_lea.vmem [#allocation1], 56
    %s192 = scalar_lea.vmem [#allocation0], 112
    %s193 = scalar_lea.vmem %s192, 7 [#allocation0]
    %v194 = vld [vmem:[%s193] ss:$-1 sm:$0xff]
    %v195 = vrot.slane %v194, 1
    %196 = vst [vmem:[%s191] sm:$0xff] %v195
    %s197 = scalar_lea.vmem %s192, 8 [#allocation0]
    %s198 = scalar_lea.vmem %s197, 7 [#allocation0]
    %v199 = vld [vmem:[%s198] ss:$-1 sm:$0xff]
    %v200 = vrot.slane %v199, 1
    %v201 = vlaneseq
    %v202 = vshrl.u32 %v201, 7
    %vm203 = vcmp.lt.s32.totalorder %v202, 7
    %204 = vst.msk [vmem:[%s191] sm:$0xff] %vm203, %v200
    %s205 = scalar_lea.vmem [#allocation1], 64
    %s206 = scalar_lea.vmem [#allocation0], 128
    %s207 = scalar_lea.vmem %s206, 7 [#allocation0]
    %v208 = vld [vmem:[%s207] ss:$-1 sm:$0xff]
    %v209 = vrot.slane %v208, 1
    %210 = vst [vmem:[%s205] sm:$0xff] %v209
    %s211 = scalar_lea.vmem %s206, 8 [#allocation0]
    %s212 = scalar_lea.vmem %s211, 7 [#allocation0]
    %v213 = vld [vmem:[%s212] ss:$-1 sm:$0xff]
    %v214 = vrot.slane %v213, 1
    %v215 = vlaneseq
    %v216 = vshrl.u32 %v215, 7
    %vm217 = vcmp.lt.s32.totalorder %v216, 7
    %218 = vst.msk [vmem:[%s205] sm:$0xff] %vm217, %v214
    %s219 = scalar_lea.vmem [#allocation1], 72
    %s220 = scalar_lea.vmem [#allocation0], 144
    %s221 = scalar_lea.vmem %s220, 7 [#allocation0]
    %v222 = vld [vmem:[%s221] ss:$-1 sm:$0xff]
    %v223 = vrot.slane %v222, 1
    %224 = vst [vmem:[%s219] sm:$0xff] %v223
    %s225 = scalar_lea.vmem %s220, 8 [#allocation0]
    %s226 = scalar_lea.vmem %s225, 7 [#allocation0]
    %v227 = vld [vmem:[%s226] ss:$-1 sm:$0xff]
    %v228 = vrot.slane %v227, 1
    %v229 = vlaneseq
    %v230 = vshrl.u32 %v229, 7
    %vm231 = vcmp.lt.s32.totalorder %v230, 7
    %232 = vst.msk [vmem:[%s219] sm:$0xff] %vm231, %v228
    %s233 = scalar_lea.vmem [#allocation1], 80
    %s234 = scalar_lea.vmem [#allocation0], 160
    %s235 = scalar_lea.vmem %s234, 7 [#allocation0]
    %v236 = vld [vmem:[%s235] ss:$-1 sm:$0xff]
    %v237 = vrot.slane %v236, 1
    %238 = vst [vmem:[%s233] sm:$0xff] %v237
    %s239 = scalar_lea.vmem %s234, 8 [#allocation0]
    %s240 = scalar_lea.vmem %s239, 7 [#allocation0]
    %v241 = vld [vmem:[%s240] ss:$-1 sm:$0xff]
    %v242 = vrot.slane %v241, 1
    %v243 = vlaneseq
    %v244 = vshrl.u32 %v243, 7
    %vm245 = vcmp.lt.s32.totalorder %v244, 7
    %246 = vst.msk [vmem:[%s233] sm:$0xff] %vm245, %v242
    %s247 = scalar_lea.vmem [#allocation1], 88
    %s248 = scalar_lea.vmem [#allocation0], 176
    %s249 = scalar_lea.vmem %s248, 7 [#allocation0]
    %v250 = vld [vmem:[%s249] ss:$-1 sm:$0xff]
    %v251 = vrot.slane %v250, 1
    %252 = vst [vmem:[%s247] sm:$0xff] %v251
    %s253 = scalar_lea.vmem %s248, 8 [#allocation0]
    %s254 = scalar_lea.vmem %s253, 7 [#allocation0]
    %v255 = vld [vmem:[%s254] ss:$-1 sm:$0xff]
    %v256 = vrot.slane %v255, 1
    %v257 = vlaneseq
    %v258 = vshrl.u32 %v257, 7
    %vm259 = vcmp.lt.s32.totalorder %v258, 7
    %260 = vst.msk [vmem:[%s247] sm:$0xff] %vm259, %v256
    %s261 = scalar_lea.vmem [#allocation1], 96
    %s262 = scalar_lea.vmem [#allocation0], 192
    %s263 = scalar_lea.vmem %s262, 7 [#allocation0]
    %v264 = vld [vmem:[%s263] ss:$-1 sm:$0xff]
    %v265 = vrot.slane %v264, 1
    %266 = vst [vmem:[%s261] sm:$0xff] %v265
    %s267 = scalar_lea.vmem %s262, 8 [#allocation0]
    %s268 = scalar_lea.vmem %s267, 7 [#allocation0]
    %v269 = vld [vmem:[%s268] ss:$-1 sm:$0xff]
    %v270 = vrot.slane %v269, 1
    %v271 = vlaneseq
    %v272 = vshrl.u32 %v271, 7
    %vm273 = vcmp.lt.s32.totalorder %v272, 7
    %274 = vst.msk [vmem:[%s261] sm:$0xff] %vm273, %v270
    %s275 = scalar_lea.vmem [#allocation1], 104
    %s276 = scalar_lea.vmem [#allocation0], 208
    %s277 = scalar_lea.vmem %s276, 7 [#allocation0]
    %v278 = vld [vmem:[%s277] ss:$-1 sm:$0xff]
    %v279 = vrot.slane %v278, 1
    %280 = vst [vmem:[%s275] sm:$0xff] %v279
    %s281 = scalar_lea.vmem %s276, 8 [#allocation0]
    %s282 = scalar_lea.vmem %s281, 7 [#allocation0]
    %v283 = vld [vmem:[%s282] ss:$-1 sm:$0xff]
    %v284 = vrot.slane %v283, 1
    %v285 = vlaneseq
    %v286 = vshrl.u32 %v285, 7
    %vm287 = vcmp.lt.s32.totalorder %v286, 7
    %288 = vst.msk [vmem:[%s275] sm:$0xff] %vm287, %v284
    %s289 = scalar_lea.vmem [#allocation1], 112
    %s290 = scalar_lea.vmem [#allocation0], 224
    %s291 = scalar_lea.vmem %s290, 7 [#allocation0]
    %v292 = vld [vmem:[%s291] ss:$-1 sm:$0xff]
    %v293 = vrot.slane %v292, 1
    %294 = vst [vmem:[%s289] sm:$0xff] %v293
    %s295 = scalar_lea.vmem %s290, 8 [#allocation0]
    %s296 = scalar_lea.vmem %s295, 7 [#allocation0]
    %v297 = vld [vmem:[%s296] ss:$-1 sm:$0xff]
    %v298 = vrot.slane %v297, 1
    %v299 = vlaneseq
    %v300 = vshrl.u32 %v299, 7
    %vm301 = vcmp.lt.s32.totalorder %v300, 7
    %302 = vst.msk [vmem:[%s289] sm:$0xff] %vm301, %v298
    %s303 = scalar_lea.vmem [#allocation1], 120
    %s304 = scalar_lea.vmem [#allocation0], 240
    %s305 = scalar_lea.vmem %s304, 7 [#allocation0]
    %v306 = vld [vmem:[%s305] ss:$-1 sm:$0xff]
    %v307 = vrot.slane %v306, 1
    %308 = vst [vmem:[%s303] sm:$0xff] %v307
    %s309 = scalar_lea.vmem %s304, 8 [#allocation0]
    %s310 = scalar_lea.vmem %s309, 7 [#allocation0]
    %v311 = vld [vmem:[%s310] ss:$-1 sm:$0xff]
    %v312 = vrot.slane %v311, 1
    %v313 = vlaneseq
    %v314 = vshrl.u32 %v313, 7
    %vm315 = vcmp.lt.s32.totalorder %v314, 7
    %316 = vst.msk [vmem:[%s303] sm:$0xff] %vm315, %v312
    // Predicated region
    $region36: #{reverse.5} parent=1 // pred_check
      _
    $region37: #{reverse.5} parent=1 // pred_check_branch
      %318 = sbr.rel (0) target = $region39
    $region38: #{reverse.5} parent=1 // pred_region
      // Predicated region
      $region40: #{reverse.5} parent=38 // pred_check
        _
      $region41: #{reverse.5} parent=38 // pred_check_branch
        %320 = sbr.rel (0) target = $region43
      $region42: #{reverse.5} parent=38 // pred_region
        // Predicated region
        $region55: #{reverse.5} parent=42 // pred_check
          _
        $region56: #{reverse.5} parent=42 // pred_check_branch
          %365 = sbr.rel (0) target = $region58
        $region57: #{reverse.5} parent=42 // pred_region
          loop: start=0, step=1, limit=1
          $region59: #{reverse.5} parent=57 // loop_pre_header
            _
          $region60: #{reverse.5} parent=57 // loop_header
            %s367 = sphi 0, %s371
            %p368 = scmp.ge.s32.totalorder %s367, 1
            %s372 = sphi [#allocation1], [#allocation1]
            %s373 = sphi %s1, %s1
          $region61: #{reverse.5} parent=57 // loop_header_branch
            %370 = sbr.rel (%p368) target = $region65
          $region62: #{reverse.5} parent=57 // loop_body
            %v374 = vld [vmem:[%s372] sm:$0xff]
            %375 = vst [vmem:[%s373] sm:$0xff] %v374
            %v376 = vld [vmem:[%s372 + $0x8] sm:$0xff]
            %377 = vst [vmem:[%s373 + $0x8] sm:$0xff] %v376
            %v378 = vld [vmem:[%s372 + $0x10] sm:$0xff]
            %379 = vst [vmem:[%s373 + $0x10] sm:$0xff] %v378
            %v380 = vld [vmem:[%s372 + $0x18] sm:$0xff]
            %381 = vst [vmem:[%s373 + $0x18] sm:$0xff] %v380
            %v382 = vld [vmem:[%s372 + $0x20] sm:$0xff]
            %383 = vst [vmem:[%s373 + $0x20] sm:$0xff] %v382
            %v384 = vld [vmem:[%s372 + $0x28] sm:$0xff]
            %385 = vst [vmem:[%s373 + $0x28] sm:$0xff] %v384
            %v386 = vld [vmem:[%s372 + $0x30] sm:$0xff]
            %387 = vst [vmem:[%s373 + $0x30] sm:$0xff] %v386
            %v388 = vld [vmem:[%s372 + $0x38] sm:$0xff]
            %389 = vst [vmem:[%s373 + $0x38] sm:$0xff] %v388
            %v390 = vld [vmem:[%s372 + $0x40] sm:$0xff]
            %391 = vst [vmem:[%s373 + $0x40] sm:$0xff] %v390
            %v392 = vld [vmem:[%s372 + $0x48] sm:$0xff]
            %393 = vst [vmem:[%s373 + $0x48] sm:$0xff] %v392
            %v394 = vld [vmem:[%s372 + $0x50] sm:$0xff]
            %395 = vst [vmem:[%s373 + $0x50] sm:$0xff] %v394
            %v396 = vld [vmem:[%s372 + $0x58] sm:$0xff]
            %397 = vst [vmem:[%s373 + $0x58] sm:$0xff] %v396
            %v398 = vld [vmem:[%s372 + $0x60] sm:$0xff]
            %399 = vst [vmem:[%s373 + $0x60] sm:$0xff] %v398
            %v400 = vld [vmem:[%s372 + $0x68] sm:$0xff]
            %401 = vst [vmem:[%s373 + $0x68] sm:$0xff] %v400
            %v402 = vld [vmem:[%s372 + $0x70] sm:$0xff]
            %403 = vst [vmem:[%s373 + $0x70] sm:$0xff] %v402
            %v404 = vld [vmem:[%s372 + $0x78] sm:$0xff]
            %405 = vst [vmem:[%s373 + $0x78] sm:$0xff] %v404
          $region63: #{reverse.5} parent=57 // loop_footer
            %s371 = sadd.s32 1, %s367
          $region64: #{reverse.5} parent=57 // loop_footer_branch
            %366 = sbr.rel target = $region60
          $region65: #{reverse.5} parent=57 // loop_exit
            _
        $region58: #{reverse.5} parent=42 // pred_fallthru
          _
        // Predicated region
        $region66: #{reverse.5} parent=42 // pred_check
          _
        $region67: #{reverse.5} parent=42 // pred_check_branch
          %407 = sbr.rel target = $region69
        $region68: #{reverse.5} parent=42 // pred_region
          _
        $region69: #{reverse.5} parent=42 // pred_fallthru
          _
      $region43: #{reverse.5} parent=38 // pred_fallthru
        _
      // Predicated region
      $region44: #{reverse.5} parent=38 // pred_check
        _
      $region45: #{reverse.5} parent=38 // pred_check_branch
        %322 = sbr.rel target = $region47
      $region46: #{reverse.5} parent=38 // pred_region
        loop: start=0, step=1, limit=1
        $region48: #{reverse.5} parent=46 // loop_pre_header
          _
        $region49: #{reverse.5} parent=46 // loop_header
          %s325 = sphi 0, %s329
          %p326 = scmp.ge.s32.totalorder %s325, 1
          %s330 = sphi [#allocation1], [#allocation1]
          %s331 = sphi %s1, %s1
        $region50: #{reverse.5} parent=46 // loop_header_branch
          %328 = sbr.rel (%p326) target = $region54
        $region51: #{reverse.5} parent=46 // loop_body
          %v332 = vld [vmem:[%s330] sm:$0xff]
          %333 = vst [vmem:[%s331] sm:$0xff] %v332
          %v334 = vld [vmem:[%s330 + $0x8] sm:$0xff]
          %335 = vst [vmem:[%s331 + $0x8] sm:$0xff] %v334
          %v336 = vld [vmem:[%s330 + $0x10] sm:$0xff]
          %337 = vst [vmem:[%s331 + $0x10] sm:$0xff] %v336
          %v338 = vld [vmem:[%s330 + $0x18] sm:$0xff]
          %339 = vst [vmem:[%s331 + $0x18] sm:$0xff] %v338
          %v340 = vld [vmem:[%s330 + $0x20] sm:$0xff]
          %341 = vst [vmem:[%s331 + $0x20] sm:$0xff] %v340
          %v342 = vld [vmem:[%s330 + $0x28] sm:$0xff]
          %343 = vst [vmem:[%s331 + $0x28] sm:$0xff] %v342
          %v344 = vld [vmem:[%s330 + $0x30] sm:$0xff]
          %345 = vst [vmem:[%s331 + $0x30] sm:$0xff] %v344
          %v346 = vld [vmem:[%s330 + $0x38] sm:$0xff]
          %347 = vst [vmem:[%s331 + $0x38] sm:$0xff] %v346
          %v348 = vld [vmem:[%s330 + $0x40] sm:$0xff]
          %349 = vst [vmem:[%s331 + $0x40] sm:$0xff] %v348
          %v350 = vld [vmem:[%s330 + $0x48] sm:$0xff]
          %351 = vst [vmem:[%s331 + $0x48] sm:$0xff] %v350
          %v352 = vld [vmem:[%s330 + $0x50] sm:$0xff]
          %353 = vst [vmem:[%s331 + $0x50] sm:$0xff] %v352
          %v354 = vld [vmem:[%s330 + $0x58] sm:$0xff]
          %355 = vst [vmem:[%s331 + $0x58] sm:$0xff] %v354
          %v356 = vld [vmem:[%s330 + $0x60] sm:$0xff]
          %357 = vst [vmem:[%s331 + $0x60] sm:$0xff] %v356
          %v358 = vld [vmem:[%s330 + $0x68] sm:$0xff]
          %359 = vst [vmem:[%s331 + $0x68] sm:$0xff] %v358
          %v360 = vld [vmem:[%s330 + $0x70] sm:$0xff]
          %361 = vst [vmem:[%s331 + $0x70] sm:$0xff] %v360
          %v362 = vld [vmem:[%s330 + $0x78] sm:$0xff]
          %363 = vst [vmem:[%s331 + $0x78] sm:$0xff] %v362
        $region52: #{reverse.5} parent=46 // loop_footer
          %s329 = sadd.s32 1, %s325
        $region53: #{reverse.5} parent=46 // loop_footer_branch
          %324 = sbr.rel target = $region49
        $region54: #{reverse.5} parent=46 // loop_exit
          _
      $region47: #{reverse.5} parent=38 // pred_fallthru
        _
    $region39: #{reverse.5} parent=1 // pred_fallthru
      _
    %408 = vnop

// kernel: state_de_forward.5
$region0: #{state_de_forward.5}
  #allocation0 [shape = 'u32[]', space=smem, size = 0x4, offset = 0x4, fixed_abs, tag = 'smem constant byte address 0x4 - core index']
  #allocation1 [shape = 'u32[144,128]{1,0:T(1,128)}', space=vmem, size = 0x12000, scoped, tag = 'internal scratch']
  %s0 = inlined_call_operand.vmem [shape: f32[8,2,32], index: 0, kind: input, shape index: {}]
  %s1 = inlined_call_operand.vmem [shape: f32[8,2,32], index: 1, kind: input, shape index: {}]
  %s2 = inlined_call_operand.vmem [shape: f32[8,1,256], index: 2, kind: input, shape index: {}]
  %s3 = inlined_call_operand.vmem [shape: f32[8,1,256], index: 3, kind: input, shape index: {}]
  %s4 = inlined_call_operand.vmem [shape: f32[8,1,256], index: 4, kind: input, shape index: {}]
  %s5 = inlined_call_operand.vmem [shape: f32[2,256], index: 5, kind: output, shape index: {0}]
  %s6 = inlined_call_operand.vmem [shape: f32[2,256], index: 6, kind: output, shape index: {1}]
  %7 = xla_tuple %s5, %s6
  %s8 = sld [smem:[#allocation0]]
  $region38: #{state_de_forward.5} parent=0
    _
  %s10 = ssub.s32 1, %s8
  %s11 = scalar_select 0, %s10, %s8
  // Predicated region
  $region2: #{state_de_forward.5} parent=0 // pred_check
    _
  $region3: #{state_de_forward.5} parent=0 // pred_check_branch
    %13 = sbr.rel (0) target = $region5
  $region4: #{state_de_forward.5} parent=0 // pred_region
    _
  $region5: #{state_de_forward.5} parent=0 // pred_fallthru
    _
  // Predicated region
  $region6: #{state_de_forward.5} parent=0 // pred_check
    _
  $region7: #{state_de_forward.5} parent=0 // pred_check_branch
    %15 = sbr.rel (0) target = $region9
  $region8: #{state_de_forward.5} parent=0 // pred_region
    _
  $region9: #{state_de_forward.5} parent=0 // pred_fallthru
    _
  // Predicated region
  $region10: #{state_de_forward.5} parent=0 // pred_check
    _
  $region11: #{state_de_forward.5} parent=0 // pred_check_branch
    %17 = sbr.rel (0) target = $region13
  $region12: #{state_de_forward.5} parent=0 // pred_region
    _
  $region13: #{state_de_forward.5} parent=0 // pred_fallthru
    _
  // Predicated region
  $region14: #{state_de_forward.5} parent=0 // pred_check
    _
  $region15: #{state_de_forward.5} parent=0 // pred_check_branch
    %19 = sbr.rel (0) target = $region17
  $region16: #{state_de_forward.5} parent=0 // pred_region
    _
  $region17: #{state_de_forward.5} parent=0 // pred_fallthru
    _
  // Predicated region
  $region18: #{state_de_forward.5} parent=0 // pred_check
    _
  $region19: #{state_de_forward.5} parent=0 // pred_check_branch
    %21 = sbr.rel (0) target = $region21
  $region20: #{state_de_forward.5} parent=0 // pred_region
    _
  $region21: #{state_de_forward.5} parent=0 // pred_fallthru
    _
  %v22 = vld [vmem:[%s0] sm:$0x3]
  %24 = vrot.lane.b32.xlu0 %v22, 32
  %v25 = vpop.permute.xlu0 %24
  %vm27 = vcmask 261120
  %v28 = vsel %vm27, %v22, %v25
  %30 = vrot.lane.b32.xlu0 %v28, 64
  %v31 = vpop.permute.xlu0 %30
  %vm33 = vcmask 523264
  %v34 = vsel %vm33, %v28, %v31
  %v35 = vld [vmem:[%s1] sm:$0x3]
  %37 = vrot.lane.b32.xlu0 %v35, 32
  %v38 = vpop.permute.xlu0 %37
  %v40 = vsel %vm27, %v35, %v38
  %42 = vrot.lane.b32.xlu0 %v40, 64
  %v43 = vpop.permute.xlu0 %42
  %v45 = vsel %vm33, %v40, %v43
  %v46 = vld [vmem:[%s2] sm:$0x3]
  %v47 = vadd.f32 %v34, %v45
  %v49 = vlaneseq
  %v50 = vshrl.u32 %v49, 7
  %v51 = vsub.s32 0, %v50
  %v52 = vrot.slane %v46, %v51
  %v53 = vlaneseq
  %v54 = vshrl.u32 %v53, 7
  %v55 = vsub.s32 1, %v54
  %v56 = vrot.slane %v46, %v55
  %v59 = vmul.f32 %v52, %v47
  %v60 = vmul.f32 %v56, %v47
  %v61 = vld [vmem:[%s4] sm:$0x3]
  %v63 = vlaneseq
  %v64 = vshrl.u32 %v63, 7
  %v65 = vsub.s32 0, %v64
  %v66 = vrot.slane %v61, %v65
  %v67 = vlaneseq
  %v68 = vshrl.u32 %v67, 7
  %v69 = vsub.s32 1, %v68
  %v70 = vrot.slane %v61, %v69
  %v73 = vmul.f32 %v45, %v66
  %v74 = vmul.f32 %v45, %v70
  %v75 = vsub.f32 %v59, %v73
  %v76 = vsub.f32 %v60, %v74
  %v77 = vadd.f32 %v75, 0.0
  %v78 = vadd.f32 %v76, 0.0
  %v79 = vld [vmem:[%s3] sm:$0x3]
  %v81 = vlaneseq
  %v82 = vshrl.u32 %v81, 7
  %v83 = vsub.s32 0, %v82
  %v84 = vrot.slane %v79, %v83
  %v85 = vlaneseq
  %v86 = vshrl.u32 %v85, 7
  %v87 = vsub.s32 1, %v86
  %v88 = vrot.slane %v79, %v87
  %v91 = vmul.f32 %v34, %v84
  %v92 = vmul.f32 %v34, %v88
  %v93 = vadd.f32 %v59, %v91
  %v94 = vadd.f32 %v60, %v92
  %v95 = vadd.f32 %v93, 0.0
  %v96 = vadd.f32 %v94, 0.0
  %s97 = scalar_lea.vmem %s0, 2
  %v98 = vld [vmem:[%s97] sm:$0x3]
  %100 = vrot.lane.b32.xlu0 %v98, 32
  %v101 = vpop.permute.xlu0 %100
  %v103 = vsel %vm27, %v98, %v101
  %105 = vrot.lane.b32.xlu0 %v103, 64
  %v106 = vpop.permute.xlu0 %105
  %v108 = vsel %vm33, %v103, %v106
  %s109 = scalar_lea.vmem %s1, 2
  %v110 = vld [vmem:[%s109] sm:$0x3]
  %112 = vrot.lane.b32.xlu0 %v110, 32
  %v113 = vpop.permute.xlu0 %112
  %v115 = vsel %vm27, %v110, %v113
  %117 = vrot.lane.b32.xlu0 %v115, 64
  %v118 = vpop.permute.xlu0 %117
  %v120 = vsel %vm33, %v115, %v118
  %s121 = scalar_lea.vmem %s2, 2
  %v122 = vld [vmem:[%s121] sm:$0x3]
  %v123 = vadd.f32 %v108, %v120
  %v125 = vlaneseq
  %v126 = vshrl.u32 %v125, 7
  %v127 = vsub.s32 0, %v126
  %v128 = vrot.slane %v122, %v127
  %v129 = vlaneseq
  %v130 = vshrl.u32 %v129, 7
  %v131 = vsub.s32 1, %v130
  %v132 = vrot.slane %v122, %v131
  %v135 = vmul.f32 %v128, %v123
  %v136 = vmul.f32 %v132, %v123
  %s137 = scalar_lea.vmem %s4, 2
  %v138 = vld [vmem:[%s137] sm:$0x3]
  %v140 = vlaneseq
  %v141 = vshrl.u32 %v140, 7
  %v142 = vsub.s32 0, %v141
  %v143 = vrot.slane %v138, %v142
  %v144 = vlaneseq
  %v145 = vshrl.u32 %v144, 7
  %v146 = vsub.s32 1, %v145
  %v147 = vrot.slane %v138, %v146
  %v150 = vmul.f32 %v120, %v143
  %v151 = vmul.f32 %v120, %v147
  %v152 = vsub.f32 %v135, %v150
  %v153 = vsub.f32 %v136, %v151
  %v154 = vadd.f32 %v77, %v152
  %v155 = vadd.f32 %v78, %v153
  %s156 = scalar_lea.vmem %s3, 2
  %v157 = vld [vmem:[%s156] sm:$0x3]
  %v159 = vlaneseq
  %v160 = vshrl.u32 %v159, 7
  %v161 = vsub.s32 0, %v160
  %v162 = vrot.slane %v157, %v161
  %v163 = vlaneseq
  %v164 = vshrl.u32 %v163, 7
  %v165 = vsub.s32 1, %v164
  %v166 = vrot.slane %v157, %v165
  %v169 = vmul.f32 %v108, %v162
  %v170 = vmul.f32 %v108, %v166
  %v171 = vadd.f32 %v135, %v169
  %v172 = vadd.f32 %v136, %v170
  %v173 = vadd.f32 %v95, %v171
  %v174 = vadd.f32 %v96, %v172
  %s175 = scalar_lea.vmem %s0, 4
  %v176 = vld [vmem:[%s175] sm:$0x3]
  %178 = vrot.lane.b32.xlu0 %v176, 32
  %v179 = vpop.permute.xlu0 %178
  %v181 = vsel %vm27, %v176, %v179
  %183 = vrot.lane.b32.xlu0 %v181, 64
  %v184 = vpop.permute.xlu0 %183
  %v186 = vsel %vm33, %v181, %v184
  %s187 = scalar_lea.vmem %s1, 4
  %v188 = vld [vmem:[%s187] sm:$0x3]
  %190 = vrot.lane.b32.xlu0 %v188, 32
  %v191 = vpop.permute.xlu0 %190
  %v193 = vsel %vm27, %v188, %v191
  %195 = vrot.lane.b32.xlu0 %v193, 64
  %v196 = vpop.permute.xlu0 %195
  %v198 = vsel %vm33, %v193, %v196
  %s199 = scalar_lea.vmem %s2, 4
  %v200 = vld [vmem:[%s199] sm:$0x3]
  %v201 = vadd.f32 %v186, %v198
  %v203 = vlaneseq
  %v204 = vshrl.u32 %v203, 7
  %v205 = vsub.s32 0, %v204
  %v206 = vrot.slane %v200, %v205
  %v207 = vlaneseq
  %v208 = vshrl.u32 %v207, 7
  %v209 = vsub.s32 1, %v208
  %v210 = vrot.slane %v200, %v209
  %v213 = vmul.f32 %v206, %v201
  %v214 = vmul.f32 %v210, %v201
  %s215 = scalar_lea.vmem %s4, 4
  %v216 = vld [vmem:[%s215] sm:$0x3]
  %v218 = vlaneseq
  %v219 = vshrl.u32 %v218, 7
  %v220 = vsub.s32 0, %v219
  %v221 = vrot.slane %v216, %v220
  %v222 = vlaneseq
  %v223 = vshrl.u32 %v222, 7
  %v224 = vsub.s32 1, %v223
  %v225 = vrot.slane %v216, %v224
  %v228 = vmul.f32 %v198, %v221
  %v229 = vmul.f32 %v198, %v225
  %v230 = vsub.f32 %v213, %v228
  %v231 = vsub.f32 %v214, %v229
  %v232 = vadd.f32 %v154, %v230
  %v233 = vadd.f32 %v155, %v231
  %s234 = scalar_lea.vmem %s3, 4
  %v235 = vld [vmem:[%s234] sm:$0x3]
  %v237 = vlaneseq
  %v238 = vshrl.u32 %v237, 7
  %v239 = vsub.s32 0, %v238
  %v240 = vrot.slane %v235, %v239
  %v241 = vlaneseq
  %v242 = vshrl.u32 %v241, 7
  %v243 = vsub.s32 1, %v242
  %v244 = vrot.slane %v235, %v243
  %v247 = vmul.f32 %v186, %v240
  %v248 = vmul.f32 %v186, %v244
  %v249 = vadd.f32 %v213, %v247
  %v250 = vadd.f32 %v214, %v248
  %v251 = vadd.f32 %v173, %v249
  %v252 = vadd.f32 %v174, %v250
  %s253 = scalar_lea.vmem %s0, 6
  %v254 = vld [vmem:[%s253] sm:$0x3]
  %256 = vrot.lane.b32.xlu0 %v254, 32
  %v257 = vpop.permute.xlu0 %256
  %v259 = vsel %vm27, %v254, %v257
  %261 = vrot.lane.b32.xlu0 %v259, 64
  %v262 = vpop.permute.xlu0 %261
  %v264 = vsel %vm33, %v259, %v262
  %s265 = scalar_lea.vmem %s1, 6
  %v266 = vld [vmem:[%s265] sm:$0x3]
  %268 = vrot.lane.b32.xlu0 %v266, 32
  %v269 = vpop.permute.xlu0 %268
  %v271 = vsel %vm27, %v266, %v269
  %273 = vrot.lane.b32.xlu0 %v271, 64
  %v274 = vpop.permute.xlu0 %273
  %v276 = vsel %vm33, %v271, %v274
  %s277 = scalar_lea.vmem %s2, 6
  %v278 = vld [vmem:[%s277] sm:$0x3]
  %v279 = vadd.f32 %v264, %v276
  %v281 = vlaneseq
  %v282 = vshrl.u32 %v281, 7
  %v283 = vsub.s32 0, %v282
  %v284 = vrot.slane %v278, %v283
  %v285 = vlaneseq
  %v286 = vshrl.u32 %v285, 7
  %v287 = vsub.s32 1, %v286
  %v288 = vrot.slane %v278, %v287
  %v291 = vmul.f32 %v284, %v279
  %v292 = vmul.f32 %v288, %v279
  %s293 = scalar_lea.vmem %s4, 6
  %v294 = vld [vmem:[%s293] sm:$0x3]
  %v296 = vlaneseq
  %v297 = vshrl.u32 %v296, 7
  %v298 = vsub.s32 0, %v297
  %v299 = vrot.slane %v294, %v298
  %v300 = vlaneseq
  %v301 = vshrl.u32 %v300, 7
  %v302 = vsub.s32 1, %v301
  %v303 = vrot.slane %v294, %v302
  %v306 = vmul.f32 %v276, %v299
  %v307 = vmul.f32 %v276, %v303
  %v308 = vsub.f32 %v291, %v306
  %v309 = vsub.f32 %v292, %v307
  %v310 = vadd.f32 %v232, %v308
  %v311 = vadd.f32 %v233, %v309
  %s312 = scalar_lea.vmem %s3, 6
  %v313 = vld [vmem:[%s312] sm:$0x3]
  %v315 = vlaneseq
  %v316 = vshrl.u32 %v315, 7
  %v317 = vsub.s32 0, %v316
  %v318 = vrot.slane %v313, %v317
  %v319 = vlaneseq
  %v320 = vshrl.u32 %v319, 7
  %v321 = vsub.s32 1, %v320
  %v322 = vrot.slane %v313, %v321
  %v325 = vmul.f32 %v264, %v318
  %v326 = vmul.f32 %v264, %v322
  %v327 = vadd.f32 %v291, %v325
  %v328 = vadd.f32 %v292, %v326
  %v329 = vadd.f32 %v251, %v327
  %v330 = vadd.f32 %v252, %v328
  %s331 = scalar_lea.vmem %s0, 8
  %v332 = vld [vmem:[%s331] sm:$0x3]
  %334 = vrot.lane.b32.xlu0 %v332, 32
  %v335 = vpop.permute.xlu0 %334
  %v337 = vsel %vm27, %v332, %v335
  %339 = vrot.lane.b32.xlu0 %v337, 64
  %v340 = vpop.permute.xlu0 %339
  %v342 = vsel %vm33, %v337, %v340
  %s343 = scalar_lea.vmem %s1, 8
  %v344 = vld [vmem:[%s343] sm:$0x3]
  %346 = vrot.lane.b32.xlu0 %v344, 32
  %v347 = vpop.permute.xlu0 %346
  %v349 = vsel %vm27, %v344, %v347
  %351 = vrot.lane.b32.xlu0 %v349, 64
  %v352 = vpop.permute.xlu0 %351
  %v354 = vsel %vm33, %v349, %v352
  %s355 = scalar_lea.vmem %s2, 8
  %v356 = vld [vmem:[%s355] sm:$0x3]
  %v357 = vadd.f32 %v342, %v354
  %v359 = vlaneseq
  %v360 = vshrl.u32 %v359, 7
  %v361 = vsub.s32 0, %v360
  %v362 = vrot.slane %v356, %v361
  %v363 = vlaneseq
  %v364 = vshrl.u32 %v363, 7
  %v365 = vsub.s32 1, %v364
  %v366 = vrot.slane %v356, %v365
  %v369 = vmul.f32 %v362, %v357
  %v370 = vmul.f32 %v366, %v357
  %s371 = scalar_lea.vmem %s4, 8
  %v372 = vld [vmem:[%s371] sm:$0x3]
  %v374 = vlaneseq
  %v375 = vshrl.u32 %v374, 7
  %v376 = vsub.s32 0, %v375
  %v377 = vrot.slane %v372, %v376
  %v378 = vlaneseq
  %v379 = vshrl.u32 %v378, 7
  %v380 = vsub.s32 1, %v379
  %v381 = vrot.slane %v372, %v380
  %v384 = vmul.f32 %v354, %v377
  %v385 = vmul.f32 %v354, %v381
  %v386 = vsub.f32 %v369, %v384
  %v387 = vsub.f32 %v370, %v385
  %v388 = vadd.f32 %v310, %v386
  %v389 = vadd.f32 %v311, %v387
  %s390 = scalar_lea.vmem %s3, 8
  %v391 = vld [vmem:[%s390] sm:$0x3]
  %v393 = vlaneseq
  %v394 = vshrl.u32 %v393, 7
  %v395 = vsub.s32 0, %v394
  %v396 = vrot.slane %v391, %v395
  %v397 = vlaneseq
  %v398 = vshrl.u32 %v397, 7
  %v399 = vsub.s32 1, %v398
  %v400 = vrot.slane %v391, %v399
  %v403 = vmul.f32 %v342, %v396
  %v404 = vmul.f32 %v342, %v400
  %v405 = vadd.f32 %v369, %v403
  %v406 = vadd.f32 %v370, %v404
  %v407 = vadd.f32 %v329, %v405
  %v408 = vadd.f32 %v330, %v406
  %s409 = scalar_lea.vmem %s0, 10
  %v410 = vld [vmem:[%s409] sm:$0x3]
  %412 = vrot.lane.b32.xlu0 %v410, 32
  %v413 = vpop.permute.xlu0 %412
  %v415 = vsel %vm27, %v410, %v413
  %417 = vrot.lane.b32.xlu0 %v415, 64
  %v418 = vpop.permute.xlu0 %417
  %v420 = vsel %vm33, %v415, %v418
  %s421 = scalar_lea.vmem %s1, 10
  %v422 = vld [vmem:[%s421] sm:$0x3]
  %424 = vrot.lane.b32.xlu0 %v422, 32
  %v425 = vpop.permute.xlu0 %424
  %v427 = vsel %vm27, %v422, %v425
  %429 = vrot.lane.b32.xlu0 %v427, 64
  %v430 = vpop.permute.xlu0 %429
  %v432 = vsel %vm33, %v427, %v430
  %s433 = scalar_lea.vmem %s2, 10
  %v434 = vld [vmem:[%s433] sm:$0x3]
  %v435 = vadd.f32 %v420, %v432
  %v437 = vlaneseq
  %v438 = vshrl.u32 %v437, 7
  %v439 = vsub.s32 0, %v438
  %v440 = vrot.slane %v434, %v439
  %v441 = vlaneseq
  %v442 = vshrl.u32 %v441, 7
  %v443 = vsub.s32 1, %v442
  %v444 = vrot.slane %v434, %v443
  %v447 = vmul.f32 %v440, %v435
  %v448 = vmul.f32 %v444, %v435
  %s449 = scalar_lea.vmem %s4, 10
  %v450 = vld [vmem:[%s449] sm:$0x3]
  %v452 = vlaneseq
  %v453 = vshrl.u32 %v452, 7
  %v454 = vsub.s32 0, %v453
  %v455 = vrot.slane %v450, %v454
  %v456 = vlaneseq
  %v457 = vshrl.u32 %v456, 7
  %v458 = vsub.s32 1, %v457
  %v459 = vrot.slane %v450, %v458
  %v462 = vmul.f32 %v432, %v455
  %v463 = vmul.f32 %v432, %v459
  %v464 = vsub.f32 %v447, %v462
  %v465 = vsub.f32 %v448, %v463
  %v466 = vadd.f32 %v388, %v464
  %v467 = vadd.f32 %v389, %v465
  %s468 = scalar_lea.vmem %s3, 10
  %v469 = vld [vmem:[%s468] sm:$0x3]
  %v471 = vlaneseq
  %v472 = vshrl.u32 %v471, 7
  %v473 = vsub.s32 0, %v472
  %v474 = vrot.slane %v469, %v473
  %v475 = vlaneseq
  %v476 = vshrl.u32 %v475, 7
  %v477 = vsub.s32 1, %v476
  %v478 = vrot.slane %v469, %v477
  %v481 = vmul.f32 %v420, %v474
  %v482 = vmul.f32 %v420, %v478
  %v483 = vadd.f32 %v447, %v481
  %v484 = vadd.f32 %v448, %v482
  %v485 = vadd.f32 %v407, %v483
  %v486 = vadd.f32 %v408, %v484
  %s487 = scalar_lea.vmem %s0, 12
  %v488 = vld [vmem:[%s487] sm:$0x3]
  %490 = vrot.lane.b32.xlu0 %v488, 32
  %v491 = vpop.permute.xlu0 %490
  %v493 = vsel %vm27, %v488, %v491
  %495 = vrot.lane.b32.xlu0 %v493, 64
  %v496 = vpop.permute.xlu0 %495
  %v498 = vsel %vm33, %v493, %v496
  %s499 = scalar_lea.vmem %s1, 12
  %v500 = vld [vmem:[%s499] sm:$0x3]
  %502 = vrot.lane.b32.xlu0 %v500, 32
  %v503 = vpop.permute.xlu0 %502
  %v505 = vsel %vm27, %v500, %v503
  %507 = vrot.lane.b32.xlu0 %v505, 64
  %v508 = vpop.permute.xlu0 %507
  %v510 = vsel %vm33, %v505, %v508
  %s511 = scalar_lea.vmem %s2, 12
  %v512 = vld [vmem:[%s511] sm:$0x3]
  %v513 = vadd.f32 %v498, %v510
  %v515 = vlaneseq
  %v516 = vshrl.u32 %v515, 7
  %v517 = vsub.s32 0, %v516
  %v518 = vrot.slane %v512, %v517
  %v519 = vlaneseq
  %v520 = vshrl.u32 %v519, 7
  %v521 = vsub.s32 1, %v520
  %v522 = vrot.slane %v512, %v521
  %v525 = vmul.f32 %v518, %v513
  %v526 = vmul.f32 %v522, %v513
  %s527 = scalar_lea.vmem %s4, 12
  %v528 = vld [vmem:[%s527] sm:$0x3]
  %v530 = vlaneseq
  %v531 = vshrl.u32 %v530, 7
  %v532 = vsub.s32 0, %v531
  %v533 = vrot.slane %v528, %v532
  %v534 = vlaneseq
  %v535 = vshrl.u32 %v534, 7
  %v536 = vsub.s32 1, %v535
  %v537 = vrot.slane %v528, %v536
  %v540 = vmul.f32 %v510, %v533
  %v541 = vmul.f32 %v510, %v537
  %v542 = vsub.f32 %v525, %v540
  %v543 = vsub.f32 %v526, %v541
  %v544 = vadd.f32 %v466, %v542
  %v545 = vadd.f32 %v467, %v543
  %s546 = scalar_lea.vmem %s3, 12
  %v547 = vld [vmem:[%s546] sm:$0x3]
  %v549 = vlaneseq
  %v550 = vshrl.u32 %v549, 7
  %v551 = vsub.s32 0, %v550
  %v552 = vrot.slane %v547, %v551
  %v553 = vlaneseq
  %v554 = vshrl.u32 %v553, 7
  %v555 = vsub.s32 1, %v554
  %v556 = vrot.slane %v547, %v555
  %v559 = vmul.f32 %v498, %v552
  %v560 = vmul.f32 %v498, %v556
  %v561 = vadd.f32 %v525, %v559
  %v562 = vadd.f32 %v526, %v560
  %v563 = vadd.f32 %v485, %v561
  %v564 = vadd.f32 %v486, %v562
  %s565 = scalar_lea.vmem %s0, 14
  %v566 = vld [vmem:[%s565] sm:$0x3]
  %568 = vrot.lane.b32.xlu0 %v566, 32
  %v569 = vpop.permute.xlu0 %568
  %v571 = vsel %vm27, %v566, %v569
  %573 = vrot.lane.b32.xlu0 %v571, 64
  %v574 = vpop.permute.xlu0 %573
  %v576 = vsel %vm33, %v571, %v574
  %s577 = scalar_lea.vmem %s1, 14
  %v578 = vld [vmem:[%s577] sm:$0x3]
  %580 = vrot.lane.b32.xlu0 %v578, 32
  %v581 = vpop.permute.xlu0 %580
  %v583 = vsel %vm27, %v578, %v581
  %585 = vrot.lane.b32.xlu0 %v583, 64
  %v586 = vpop.permute.xlu0 %585
  %v588 = vsel %vm33, %v583, %v586
  %s589 = scalar_lea.vmem %s2, 14
  %v590 = vld [vmem:[%s589] sm:$0x3]
  %v591 = vadd.f32 %v576, %v588
  %v593 = vlaneseq
  %v594 = vshrl.u32 %v593, 7
  %v595 = vsub.s32 0, %v594
  %v596 = vrot.slane %v590, %v595
  %v597 = vlaneseq
  %v598 = vshrl.u32 %v597, 7
  %v599 = vsub.s32 1, %v598
  %v600 = vrot.slane %v590, %v599
  %v603 = vmul.f32 %v596, %v591
  %v604 = vmul.f32 %v600, %v591
  %s605 = scalar_lea.vmem %s4, 14
  %v606 = vld [vmem:[%s605] sm:$0x3]
  %v608 = vlaneseq
  %v609 = vshrl.u32 %v608, 7
  %v610 = vsub.s32 0, %v609
  %v611 = vrot.slane %v606, %v610
  %v612 = vlaneseq
  %v613 = vshrl.u32 %v612, 7
  %v614 = vsub.s32 1, %v613
  %v615 = vrot.slane %v606, %v614
  %v618 = vmul.f32 %v588, %v611
  %v619 = vmul.f32 %v588, %v615
  %v620 = vsub.f32 %v603, %v618
  %v621 = vsub.f32 %v604, %v619
  %v622 = vadd.f32 %v544, %v620
  %v623 = vadd.f32 %v545, %v621
  %s624 = scalar_lea.vmem %s3, 14
  %v625 = vld [vmem:[%s624] sm:$0x3]
  %v627 = vlaneseq
  %v628 = vshrl.u32 %v627, 7
  %v629 = vsub.s32 0, %v628
  %v630 = vrot.slane %v625, %v629
  %v631 = vlaneseq
  %v632 = vshrl.u32 %v631, 7
  %v633 = vsub.s32 1, %v632
  %v634 = vrot.slane %v625, %v633
  %v637 = vmul.f32 %v576, %v630
  %v638 = vmul.f32 %v576, %v634
  %v639 = vadd.f32 %v603, %v637
  %v640 = vadd.f32 %v604, %v638
  %v641 = vadd.f32 %v563, %v639
  %v642 = vadd.f32 %v564, %v640
  %v645 = vcombine.low %v622, %v623
  %v647 = vunpack.c.l.s4 1983009808
  %v648 = vunpack.c.0.s8 %v647
  %v649 = vlaneseq
  %v650 = vshrl.u32 %v649, 7
  %v651 = vsub.s32 %v648, %v650
  %v652 = vrot.slane %v645, %v651
  %654 = vst [vmem:[%s5] sm:$0xf] %v652
  %v657 = vcombine.low %v641, %v642
  %v659 = vunpack.c.l.s4 1983009808
  %v660 = vunpack.c.0.s8 %v659
  %v661 = vlaneseq
  %v662 = vshrl.u32 %v661, 7
  %v663 = vsub.s32 %v660, %v662
  %v664 = vrot.slane %v657, %v663
  %666 = vst [vmem:[%s6] sm:$0xf] %v664
  // Predicated region
  $region22: #{state_de_forward.5} parent=0 // pred_check
    _
  $region23: #{state_de_forward.5} parent=0 // pred_check_branch
    %668 = sbr.rel (0) target = $region25
  $region24: #{state_de_forward.5} parent=0 // pred_region
    _
  $region25: #{state_de_forward.5} parent=0 // pred_fallthru
    _
  // Predicated region
  $region26: #{state_de_forward.5} parent=0 // pred_check
    _
  $region27: #{state_de_forward.5} parent=0 // pred_check_branch
    %670 = sbr.rel (0) target = $region29
  $region28: #{state_de_forward.5} parent=0 // pred_region
    _
  $region29: #{state_de_forward.5} parent=0 // pred_fallthru
    _
  // Predicated region
  $region30: #{state_de_forward.5} parent=0 // pred_check
    _
  $region31: #{state_de_forward.5} parent=0 // pred_check_branch
    %672 = sbr.rel (0) target = $region33
  $region32: #{state_de_forward.5} parent=0 // pred_region
    _
  $region33: #{state_de_forward.5} parent=0 // pred_fallthru
    _
  // Predicated region
  $region34: #{state_de_forward.5} parent=0 // pred_check
    _
  $region35: #{state_de_forward.5} parent=0 // pred_check_branch
    %674 = sbr.rel (0) target = $region37
  $region36: #{state_de_forward.5} parent=0 // pred_region
    _
  $region37: #{state_de_forward.5} parent=0 // pred_fallthru
    _

// kernel: state_de_forward.8
$region0: #{state_de_forward.8}
  #allocation0 [shape = 'u32[]', space=smem, size = 0x4, offset = 0x4, fixed_abs, tag = 'smem constant byte address 0x4 - core index']
  #allocation1 [shape = 'u32[144,128]{1,0:T(1,128)}', space=vmem, size = 0x12000, scoped, tag = 'internal scratch']
  %s0 = inlined_call_operand.vmem [shape: f32[2,8,256], index: 0, kind: input, shape index: {}]
  %s1 = inlined_call_operand.vmem [shape: f32[2,8,256], index: 1, kind: input, shape index: {}]
  %s2 = inlined_call_operand.vmem [shape: f32[8,8], index: 2, kind: input, shape index: {}]
  %s3 = inlined_call_operand.vmem [shape: f32[8,1], index: 3, kind: input, shape index: {}]
  %s4 = inlined_call_operand.vmem [shape: f32[2,8,256], index: 4, kind: output, shape index: {}]
  %s5 = sld [smem:[#allocation0]]
  $region159: #{state_de_forward.8} parent=0
    _
  %s7 = ssub.s32 1, %s5
  %s8 = scalar_select 0, %s7, %s5
  $region1: #{state_de_forward.8} parent=0
    #allocation2 [shape = 'u8[16384]{0}', space=vmem, size = 0x4000, scoped, tag = 'input window, operand 0']
    #allocation3 [shape = 'u8[16384]{0}', space=vmem, size = 0x4000, scoped, tag = 'input window, operand 1']
    #allocation4 [shape = 'u8[16384]{0}', space=vmem, size = 0x4000, scoped, tag = 'output window, operand 0']
    loop: start=0, step=1, limit=4
    $region2: #{state_de_forward.8} parent=1 // loop_pre_header
      _
    $region3: #{state_de_forward.8} parent=1 // loop_header
      %s10 = sphi 0, %s14
      %p11 = scmp.ge.s32.totalorder %s10, 4
      %s20 = sphi 0, %s22
      %s23 = sphi 0, %s20
      %s24 = sphi 0, %s23
      %s40 = sphi 0, %s24
      %s46 = sphi 0, %s48
      %s49 = sphi 0, %s46
      %s50 = sphi 0, %s49
      %s66 = sphi 0, %s50
      %s70 = sphi 0, %s70
      %s72 = sphi 0, %s70
      %s73 = sphi 0, %s72
      %s87 = sphi 0, %s73
      %s91 = sphi 0, %s91
      %s93 = sphi 0, %s91
      %s94 = sphi 0, %s93
      %s108 = sphi 0, %s94
      %s114 = sphi 0, %s116
      %s117 = sphi 0, %s114
      %s118 = sphi 0, %s117
      %s134 = sphi 0, %s118
    $region4: #{state_de_forward.8} parent=1 // loop_header_branch
      %13 = sbr.rel (%p11) target = $region8
    $region5: #{state_de_forward.8} parent=1 // loop_body
      %s15 = ssub.s32 %s10, 1
      %s16 = ssub.s32 %s10, 2
      %s17 = sadd.s32 %s10, 1
      %s18 = ssub.s32 %s10, %s17
      %p19 = scmp.eq.s32.totalorder %s18, 0
      %s21 = sadd.s32 %s20, 1
      %s22 = scalar_select %p19, %s20, %s21
      %p25 = pneg %p19
      %p26 = scmp.eq.s32.totalorder %s10, 1
      %p27 = por %p25, %p26
      %p28 = scmp.ne.s32.totalorder %s20, %s23
      %p29 = scmp.eq.s32.totalorder %s10, 0
      %p30 = por %p28, %p29
      %p31 = scmp.ne.s32.totalorder %s20, %s23
      %p32 = scmp.eq.s32.totalorder %s15, 1
      %p33 = por %p31, %p32
      %p34 = scmp.ne.s32.totalorder %s23, %s24
      %p35 = scmp.eq.s32.totalorder %s15, 0
      %p36 = por %p34, %p35
      %p37 = scmp.ne.s32.totalorder %s23, %s24
      %p38 = scmp.eq.s32.totalorder %s16, 1
      %p39 = por %p37, %p38
      %p41 = scmp.ne.s32.totalorder %s24, %s40
      %p42 = scmp.eq.s32.totalorder %s16, 0
      %p43 = por %p41, %p42
      %s44 = ssub.s32 %s10, %s17
      %p45 = scmp.eq.s32.totalorder %s44, 0
      %s47 = sadd.s32 %s46, 1
      %s48 = scalar_select %p45, %s46, %s47
      %p51 = pneg %p45
      %p52 = scmp.eq.s32.totalorder %s10, 1
      %p53 = por %p51, %p52
      %p54 = scmp.ne.s32.totalorder %s46, %s49
      %p55 = scmp.eq.s32.totalorder %s10, 0
      %p56 = por %p54, %p55
      %p57 = scmp.ne.s32.totalorder %s46, %s49
      %p58 = scmp.eq.s32.totalorder %s15, 1
      %p59 = por %p57, %p58
      %p60 = scmp.ne.s32.totalorder %s49, %s50
      %p61 = scmp.eq.s32.totalorder %s15, 0
      %p62 = por %p60, %p61
      %p63 = scmp.ne.s32.totalorder %s49, %s50
      %p64 = scmp.eq.s32.totalorder %s16, 1
      %p65 = por %p63, %p64
      %p67 = scmp.ne.s32.totalorder %s50, %s66
      %p68 = scmp.eq.s32.totalorder %s16, 0
      %p69 = por %p67, %p68
      %s71 = sadd.s32 %s70, 1
      %p74 = scmp.eq.s32.totalorder %s10, 1
      %p75 = scmp.ne.s32.totalorder %s70, %s72
      %p76 = scmp.eq.s32.totalorder %s10, 0
      %p77 = por %p75, %p76
      %p78 = scmp.ne.s32.totalorder %s70, %s72
      %p79 = scmp.eq.s32.totalorder %s15, 1
      %p80 = por %p78, %p79
      %p81 = scmp.ne.s32.totalorder %s72, %s73
      %p82 = scmp.eq.s32.totalorder %s15, 0
      %p83 = por %p81, %p82
      %p84 = scmp.ne.s32.totalorder %s72, %s73
      %p85 = scmp.eq.s32.totalorder %s16, 1
      %p86 = por %p84, %p85
      %p88 = scmp.ne.s32.totalorder %s73, %s87
      %p89 = scmp.eq.s32.totalorder %s16, 0
      %p90 = por %p88, %p89
      %s92 = sadd.s32 %s91, 1
      %p95 = scmp.eq.s32.totalorder %s10, 1
      %p96 = scmp.ne.s32.totalorder %s91, %s93
      %p97 = scmp.eq.s32.totalorder %s10, 0
      %p98 = por %p96, %p97
      %p99 = scmp.ne.s32.totalorder %s91, %s93
      %p100 = scmp.eq.s32.totalorder %s15, 1
      %p101 = por %p99, %p100
      %p102 = scmp.ne.s32.totalorder %s93, %s94
      %p103 = scmp.eq.s32.totalorder %s15, 0
      %p104 = por %p102, %p103
      %p105 = scmp.ne.s32.totalorder %s93, %s94
      %p106 = scmp.eq.s32.totalorder %s16, 1
      %p107 = por %p105, %p106
      %p109 = scmp.ne.s32.totalorder %s94, %s108
      %p110 = scmp.eq.s32.totalorder %s16, 0
      %p111 = por %p109, %p110
      %s112 = ssub.s32 %s10, %s17
      %p113 = scmp.eq.s32.totalorder %s112, 0
      %s115 = sadd.s32 %s114, 1
      %s116 = scalar_select %p113, %s114, %s115
      %p119 = pneg %p113
      %p120 = scmp.eq.s32.totalorder %s10, 1
      %p121 = por %p119, %p120
      %p122 = scmp.ne.s32.totalorder %s114, %s117
      %p123 = scmp.eq.s32.totalorder %s10, 0
      %p124 = por %p122, %p123
      %p125 = scmp.ne.s32.totalorder %s114, %s117
      %p126 = scmp.eq.s32.totalorder %s15, 1
      %p127 = por %p125, %p126
      %p128 = scmp.ne.s32.totalorder %s117, %s118
      %p129 = scmp.eq.s32.totalorder %s15, 0
      %p130 = por %p128, %p129
      %p131 = scmp.ne.s32.totalorder %s117, %s118
      %p132 = scmp.eq.s32.totalorder %s16, 1
      %p133 = por %p131, %p132
      %p135 = scmp.ne.s32.totalorder %s118, %s134
      %p136 = scmp.eq.s32.totalorder %s16, 0
      %p137 = por %p135, %p136
      %p138 = scmp.le.s32.totalorder 1, %s10
      %p139 = scmp.lt.s32.totalorder %s10, 3
      %p140 = pnand %p138, %p139
      %p141 = pneg %p140
      // Predicated region
      $region9: #{state_de_forward.8} parent=5 // pred_check
        _
      $region10: #{state_de_forward.8} parent=5 // pred_check_branch
        %143 = sbr.rel (%p140) target = $region12
      $region11: #{state_de_forward.8} parent=5 // pred_region
        %s144 = ssub.s32 %s10, 1
        // Predicated region
        $region13: #{state_de_forward.8} parent=11 // pred_check
          %p145 = pneg %p83
        $region14: #{state_de_forward.8} parent=11 // pred_check_branch
          %147 = sbr.rel (%p145) target = $region16
        $region15: #{state_de_forward.8} parent=11 // pred_region
          _
        $region16: #{state_de_forward.8} parent=11 // pred_fallthru
          _
        // Predicated region
        $region17: #{state_de_forward.8} parent=11 // pred_check
          %p148 = pneg %p104
        $region18: #{state_de_forward.8} parent=11 // pred_check_branch
          %150 = sbr.rel (%p148) target = $region20
        $region19: #{state_de_forward.8} parent=11 // pred_region
          _
        $region20: #{state_de_forward.8} parent=11 // pred_fallthru
          _
      $region12: #{state_de_forward.8} parent=5 // pred_fallthru
        _
      %p151 = scmp.lt.s32.totalorder %s10, 2
      // Predicated region
      $region21: #{state_de_forward.8} parent=5 // pred_check
        %p152 = pneg %p151
      $region22: #{state_de_forward.8} parent=5 // pred_check_branch
        %154 = sbr.rel (%p152) target = $region24
      $region23: #{state_de_forward.8} parent=5 // pred_region
        // Predicated region
        $region25: #{state_de_forward.8} parent=23 // pred_check
          %p155 = pneg %p30
        $region26: #{state_de_forward.8} parent=23 // pred_check_branch
          %157 = sbr.rel (%p155) target = $region28
        $region27: #{state_de_forward.8} parent=23 // pred_region
          %s158 = sand.u32 %s20, 1
          %s159 = sand.u32 %s20, 1
          %s160 = smul.addr %s159, 16
          %s161 = scalar_lea.vmem [#allocation2], %s160
          %s162 = smul.addr %s10, 8
          %s163 = scalar_lea.vmem %s0, %s162
          // Predicated region
          $region29: #{state_de_forward.8} parent=27 // pred_check
            _
          $region30: #{state_de_forward.8} parent=27 // pred_check_branch
            %165 = sbr.rel (0) target = $region32
          $region31: #{state_de_forward.8} parent=27 // pred_region
            // Predicated region
            $region33: #{state_de_forward.8} parent=31 // pred_check
              _
            $region34: #{state_de_forward.8} parent=31 // pred_check_branch
              %167 = sbr.rel (0) target = $region36
            $region35: #{state_de_forward.8} parent=31 // pred_region
              // Predicated region
              $region48: #{state_de_forward.8} parent=35 // pred_check
                _
              $region49: #{state_de_forward.8} parent=35 // pred_check_branch
                %184 = sbr.rel (0) target = $region51
              $region50: #{state_de_forward.8} parent=35 // pred_region
                loop: start=0, step=1, limit=1
                $region52: #{state_de_forward.8} parent=50 // loop_pre_header
                  _
                $region53: #{state_de_forward.8} parent=50 // loop_header
                  %s186 = sphi 0, %s190
                  %p187 = scmp.ge.s32.totalorder %s186, 1
                  %s191 = sphi %s163, %s163
                  %s192 = sphi %s161, %s161
                $region54: #{state_de_forward.8} parent=50 // loop_header_branch
                  %189 = sbr.rel (%p187) target = $region58
                $region55: #{state_de_forward.8} parent=50 // loop_body
                  %v193 = vld [vmem:[%s191] sm:$0xff]
                  %194 = vst [vmem:[%s192] sm:$0xff] %v193
                  %v195 = vld [vmem:[%s191 + $0x10] sm:$0xff]
                  %196 = vst [vmem:[%s192 + $0x8] sm:$0xff] %v195
                $region56: #{state_de_forward.8} parent=50 // loop_footer
                  %s190 = sadd.s32 1, %s186
                $region57: #{state_de_forward.8} parent=50 // loop_footer_branch
                  %185 = sbr.rel target = $region53
                $region58: #{state_de_forward.8} parent=50 // loop_exit
                  _
              $region51: #{state_de_forward.8} parent=35 // pred_fallthru
                _
              // Predicated region
              $region59: #{state_de_forward.8} parent=35 // pred_check
                _
              $region60: #{state_de_forward.8} parent=35 // pred_check_branch
                %198 = sbr.rel target = $region62
              $region61: #{state_de_forward.8} parent=35 // pred_region
                _
              $region62: #{state_de_forward.8} parent=35 // pred_fallthru
                _
            $region36: #{state_de_forward.8} parent=31 // pred_fallthru
              _
            // Predicated region
            $region37: #{state_de_forward.8} parent=31 // pred_check
              _
            $region38: #{state_de_forward.8} parent=31 // pred_check_branch
              %169 = sbr.rel target = $region40
            $region39: #{state_de_forward.8} parent=31 // pred_region
              loop: start=0, step=1, limit=1
              $region41: #{state_de_forward.8} parent=39 // loop_pre_header
                _
              $region42: #{state_de_forward.8} parent=39 // loop_header
                %s172 = sphi 0, %s176
                %p173 = scmp.ge.s32.totalorder %s172, 1
                %s177 = sphi %s163, %s163
                %s178 = sphi %s161, %s161
              $region43: #{state_de_forward.8} parent=39 // loop_header_branch
                %175 = sbr.rel (%p173) target = $region47
              $region44: #{state_de_forward.8} parent=39 // loop_body
                %v179 = vld [vmem:[%s177] sm:$0xff]
                %180 = vst [vmem:[%s178] sm:$0xff] %v179
                %v181 = vld [vmem:[%s177 + $0x10] sm:$0xff]
                %182 = vst [vmem:[%s178 + $0x8] sm:$0xff] %v181
              $region45: #{state_de_forward.8} parent=39 // loop_footer
                %s176 = sadd.s32 1, %s172
              $region46: #{state_de_forward.8} parent=39 // loop_footer_branch
                %171 = sbr.rel target = $region42
              $region47: #{state_de_forward.8} parent=39 // loop_exit
                _
            $region40: #{state_de_forward.8} parent=31 // pred_fallthru
              _
          $region32: #{state_de_forward.8} parent=27 // pred_fallthru
            _
          %199 = vnop
        $region28: #{state_de_forward.8} parent=23 // pred_fallthru
          _
        // Predicated region
        $region63: #{state_de_forward.8} parent=23 // pred_check
          %p200 = pneg %p56
        $region64: #{state_de_forward.8} parent=23 // pred_check_branch
          %202 = sbr.rel (%p200) target = $region66
        $region65: #{state_de_forward.8} parent=23 // pred_region
          %s203 = sand.u32 %s46, 1
          %s204 = sand.u32 %s46, 1
          %s205 = smul.addr %s204, 16
          %s206 = scalar_lea.vmem [#allocation3], %s205
          %s207 = smul.addr %s10, 8
          %s208 = scalar_lea.vmem %s1, %s207
          // Predicated region
          $region67: #{state_de_forward.8} parent=65 // pred_check
            _
          $region68: #{state_de_forward.8} parent=65 // pred_check_branch
            %210 = sbr.rel (0) target = $region70
          $region69: #{state_de_forward.8} parent=65 // pred_region
            // Predicated region
            $region71: #{state_de_forward.8} parent=69 // pred_check
              _
            $region72: #{state_de_forward.8} parent=69 // pred_check_branch
              %212 = sbr.rel (0) target = $region74
            $region73: #{state_de_forward.8} parent=69 // pred_region
              // Predicated region
              $region86: #{state_de_forward.8} parent=73 // pred_check
                _
              $region87: #{state_de_forward.8} parent=73 // pred_check_branch
                %229 = sbr.rel (0) target = $region89
              $region88: #{state_de_forward.8} parent=73 // pred_region
                loop: start=0, step=1, limit=1
                $region90: #{state_de_forward.8} parent=88 // loop_pre_header
                  _
                $region91: #{state_de_forward.8} parent=88 // loop_header
                  %s231 = sphi 0, %s235
                  %p232 = scmp.ge.s32.totalorder %s231, 1
                  %s236 = sphi %s208, %s208
                  %s237 = sphi %s206, %s206
                $region92: #{state_de_forward.8} parent=88 // loop_header_branch
                  %234 = sbr.rel (%p232) target = $region96
                $region93: #{state_de_forward.8} parent=88 // loop_body
                  %v238 = vld [vmem:[%s236] sm:$0xff]
                  %239 = vst [vmem:[%s237] sm:$0xff] %v238
                  %v240 = vld [vmem:[%s236 + $0x10] sm:$0xff]
                  %241 = vst [vmem:[%s237 + $0x8] sm:$0xff] %v240
                $region94: #{state_de_forward.8} parent=88 // loop_footer
                  %s235 = sadd.s32 1, %s231
                $region95: #{state_de_forward.8} parent=88 // loop_footer_branch
                  %230 = sbr.rel target = $region91
                $region96: #{state_de_forward.8} parent=88 // loop_exit
                  _
              $region89: #{state_de_forward.8} parent=73 // pred_fallthru
                _
              // Predicated region
              $region97: #{state_de_forward.8} parent=73 // pred_check
                _
              $region98: #{state_de_forward.8} parent=73 // pred_check_branch
                %243 = sbr.rel target = $region100
              $region99: #{state_de_forward.8} parent=73 // pred_region
                _
              $region100: #{state_de_forward.8} parent=73 // pred_fallthru
                _
            $region74: #{state_de_forward.8} parent=69 // pred_fallthru
              _
            // Predicated region
            $region75: #{state_de_forward.8} parent=69 // pred_check
              _
            $region76: #{state_de_forward.8} parent=69 // pred_check_branch
              %214 = sbr.rel target = $region78
            $region77: #{state_de_forward.8} parent=69 // pred_region
              loop: start=0, step=1, limit=1
              $region79: #{state_de_forward.8} parent=77 // loop_pre_header
                _
              $region80: #{state_de_forward.8} parent=77 // loop_header
                %s217 = sphi 0, %s221
                %p218 = scmp.ge.s32.totalorder %s217, 1
                %s222 = sphi %s208, %s208
                %s223 = sphi %s206, %s206
              $region81: #{state_de_forward.8} parent=77 // loop_header_branch
                %220 = sbr.rel (%p218) target = $region85
              $region82: #{state_de_forward.8} parent=77 // loop_body
                %v224 = vld [vmem:[%s222] sm:$0xff]
                %225 = vst [vmem:[%s223] sm:$0xff] %v224
                %v226 = vld [vmem:[%s222 + $0x10] sm:$0xff]
                %227 = vst [vmem:[%s223 + $0x8] sm:$0xff] %v226
              $region83: #{state_de_forward.8} parent=77 // loop_footer
                %s221 = sadd.s32 1, %s217
              $region84: #{state_de_forward.8} parent=77 // loop_footer_branch
                %216 = sbr.rel target = $region80
              $region85: #{state_de_forward.8} parent=77 // loop_exit
                _
            $region78: #{state_de_forward.8} parent=69 // pred_fallthru
              _
          $region70: #{state_de_forward.8} parent=65 // pred_fallthru
            _
          %244 = vnop
        $region66: #{state_de_forward.8} parent=23 // pred_fallthru
          _
      $region24: #{state_de_forward.8} parent=5 // pred_fallthru
        _
      %p245 = scmp.le.s32.totalorder 1, %s10
      %p246 = scmp.lt.s32.totalorder %s10, 3
      %p247 = pnand %p245, %p246
      %p248 = pneg %p247
      // Predicated region
      $region101: #{state_de_forward.8} parent=5 // pred_check
        _
      $region102: #{state_de_forward.8} parent=5 // pred_check_branch
        %250 = sbr.rel (%p247) target = $region104
      $region103: #{state_de_forward.8} parent=5 // pred_region
        %s251 = ssub.s32 %s10, 1
        %s252 = sand.u32 %s23, 1
        %s253 = sand.u32 %s23, 1
        %s254 = smul.addr %s253, 16
        %s255 = scalar_lea.vmem [#allocation2], %s254
        // Predicated region
        $region105: #{state_de_forward.8} parent=103 // pred_check
          %p256 = pneg %p36
        $region106: #{state_de_forward.8} parent=103 // pred_check_branch
          %258 = sbr.rel (%p256) target = $region108
        $region107: #{state_de_forward.8} parent=103 // pred_region
          _
        $region108: #{state_de_forward.8} parent=103 // pred_fallthru
          _
        %s259 = sand.u32 %s49, 1
        %s260 = sand.u32 %s49, 1
        %s261 = smul.addr %s260, 16
        %s262 = scalar_lea.vmem [#allocation3], %s261
        // Predicated region
        $region109: #{state_de_forward.8} parent=103 // pred_check
          %p263 = pneg %p62
        $region110: #{state_de_forward.8} parent=103 // pred_check_branch
          %265 = sbr.rel (%p263) target = $region112
        $region111: #{state_de_forward.8} parent=103 // pred_region
          _
        $region112: #{state_de_forward.8} parent=103 // pred_fallthru
          _
        %s266 = sand.u32 %s23, 1
        %s267 = sand.u32 %s23, 1
        %s268 = smul.addr %s267, 16
        %s269 = scalar_lea.vmem [#allocation2], %s268
        %p270 = pneg %p36
        %p271 = pneg %p33
        %s272 = sand.u32 %s49, 1
        %s273 = sand.u32 %s49, 1
        %s274 = smul.addr %s273, 16
        %s275 = scalar_lea.vmem [#allocation3], %s274
        %p276 = pneg %p62
        %p277 = pneg %p59
        %p278 = pneg %p83
        %p279 = pneg %p80
        %p280 = pneg %p104
        %p281 = pneg %p101
        %p282 = pneg %p130
        %p283 = pneg %p127
        %s284 = sand.u32 %s117, 1
        %s285 = sand.u32 %s117, 1
        %s286 = smul.addr %s285, 16
        %s287 = scalar_lea.vmem [#allocation4], %s286
        %v288 = vld [vmem:[%s2] sm:$0xff]
        %v289 = vld [vmem:[%s3] sm:$0xff]
        %v290 = vld [vmem:[%s255] sm:$0xff]
        %292 = vset.pattern.permute.xlu0 0
        %293 = vperm.xlu0 %292, %v289
        %v294 = vpop.permute.xlu0 %293
        %vm296 = vcmask 64512
        %v298 = vsel %vm296, %v288, 0
        %300 = vmatprep.subr.mxu0 0.0
        %301 = vmatpush1.msra.mxu0 %v290
        %302 = vmatprep.subr.mxu0 0.0
        %303 = vmatpush1.msra.mxu0 0.0
        %304 = vmatprep.subr.mxu0 0.0
        %305 = vmatpush1.msra.mxu0 0.0
        %306 = vmatprep.subr.mxu0 0.0
        %307 = vmatpush1.msra.mxu0 0.0
        %308 = vmatprep.subr.mxu0 0.0
        %309 = vmatpush1.msra.mxu0 0.0
        %310 = vmatprep.subr.mxu0 0.0
        %311 = vmatpush1.msra.mxu0 0.0
        %312 = vmatprep.subr.mxu0 0.0
        %313 = vmatpush1.msra.mxu0 0.0
        %314 = vmatprep.subr.mxu0 0.0
        %315 = vmatpush1.msra.mxu0 0.0
        %316 = vmatprep.subr.mxu0 0.0
        %317 = vmatpush1.msra.mxu0 0.0
        %318 = vmatprep.subr.mxu0 0.0
        %319 = vmatpush1.msra.mxu0 0.0
        %320 = vmatprep.subr.mxu0 0.0
        %321 = vmatpush1.msra.mxu0 0.0
        %322 = vmatprep.subr.mxu0 0.0
        %323 = vmatpush1.msra.mxu0 0.0
        %324 = vmatprep.subr.mxu0 0.0
        %325 = vmatpush1.msra.mxu0 0.0
        %326 = vmatprep.subr.mxu0 0.0
        %327 = vmatpush1.msra.mxu0 0.0
        %328 = vmatprep.subr.mxu0 0.0
        %329 = vmatpush1.msra.mxu0 0.0
        %330 = vmatprep.subr.mxu0 0.0
        %331 = vmatpush1.msra.mxu0 0.0
        %332 = vmatprep.subr.mxu0 0.0
        %333 = vmatpush1.msra.mxu0 0.0
        %334 = vmatprep.subr.mxu0 0.0
        %335 = vmatpush1.msra.mxu0 0.0
        %336 = vmatprep.subr.mxu0 0.0
        %337 = vmatpush1.msra.mxu0 0.0
        %338 = vmatprep.subr.mxu0 0.0
        %339 = vmatpush1.msra.mxu0 0.0
        %340 = vmatprep.subr.mxu0 0.0
        %341 = vmatpush1.msra.mxu0 0.0
        %342 = vmatprep.subr.mxu0 0.0
        %343 = vmatpush1.msra.mxu0 0.0
        %344 = vmatprep.subr.mxu0 0.0
        %345 = vmatpush1.msra.mxu0 0.0
        %346 = vmatprep.subr.mxu0 0.0
        %347 = vmatpush1.msra.mxu0 0.0
        %348 = vmatprep.subr.mxu0 0.0
        %349 = vmatpush1.msra.mxu0 0.0
        %350 = vmatprep.subr.mxu0 0.0
        %351 = vmatpush1.msra.mxu0 0.0
        %352 = vmatprep.subr.mxu0 0.0
        %353 = vmatpush1.msra.mxu0 0.0
        %354 = vmatprep.subr.mxu0 0.0
        %355 = vmatpush1.msra.mxu0 0.0
        %356 = vmatprep.subr.mxu0 0.0
        %357 = vmatpush1.msra.mxu0 0.0
        %358 = vmatprep.subr.mxu0 0.0
        %359 = vmatpush1.msra.mxu0 0.0
        %360 = vmatprep.subr.mxu0 0.0
        %361 = vmatpush1.msra.mxu0 0.0
        %362 = vmatprep.subr.mxu0 0.0
        %363 = vmatpush1.msra.mxu0 0.0
        %364 = vmatprep.mubr.f32.mxu0 0.0
        %365 = vmatmul.mubr.f32.gmra.mrb[0].mxu0 %v298
        %v366 = vpop.f32.mrb[0].mxu0
        %v367 = vadd.f32 %v294, %v366
        %v368 = vpop.f32.mrb[0].mxu0
        %369 = vdwg.mxu0
        %v370 = vld [vmem:[%s262] sm:$0xff]
        %v371 = vadd.f32 %v367, %v370
        %372 = vst [vmem:[%s287] sm:$0xff] %v371
        %s373 = scalar_lea.vmem %s255, 8 [#allocation2]
        %v374 = vld [vmem:[%s373] sm:$0xff]
        %375 = vmatprep.subr.mxu0 0.0
        %376 = vmatpush1.msra.mxu0 %v374
        %377 = vmatprep.subr.mxu0 0.0
        %378 = vmatpush1.msra.mxu0 0.0
        %379 = vmatprep.subr.mxu0 0.0
        %380 = vmatpush1.msra.mxu0 0.0
        %381 = vmatprep.subr.mxu0 0.0
        %382 = vmatpush1.msra.mxu0 0.0
        %383 = vmatprep.subr.mxu0 0.0
        %384 = vmatpush1.msra.mxu0 0.0
        %385 = vmatprep.subr.mxu0 0.0
        %386 = vmatpush1.msra.mxu0 0.0
        %387 = vmatprep.subr.mxu0 0.0
        %388 = vmatpush1.msra.mxu0 0.0
        %389 = vmatprep.subr.mxu0 0.0
        %390 = vmatpush1.msra.mxu0 0.0
        %391 = vmatprep.subr.mxu0 0.0
        %392 = vmatpush1.msra.mxu0 0.0
        %393 = vmatprep.subr.mxu0 0.0
        %394 = vmatpush1.msra.mxu0 0.0
        %395 = vmatprep.subr.mxu0 0.0
        %396 = vmatpush1.msra.mxu0 0.0
        %397 = vmatprep.subr.mxu0 0.0
        %398 = vmatpush1.msra.mxu0 0.0
        %399 = vmatprep.subr.mxu0 0.0
        %400 = vmatpush1.msra.mxu0 0.0
        %401 = vmatprep.subr.mxu0 0.0
        %402 = vmatpush1.msra.mxu0 0.0
        %403 = vmatprep.subr.mxu0 0.0
        %404 = vmatpush1.msra.mxu0 0.0
        %405 = vmatprep.subr.mxu0 0.0
        %406 = vmatpush1.msra.mxu0 0.0
        %407 = vmatprep.subr.mxu0 0.0
        %408 = vmatpush1.msra.mxu0 0.0
        %409 = vmatprep.subr.mxu0 0.0
        %410 = vmatpush1.msra.mxu0 0.0
        %411 = vmatprep.subr.mxu0 0.0
        %412 = vmatpush1.msra.mxu0 0.0
        %413 = vmatprep.subr.mxu0 0.0
        %414 = vmatpush1.msra.mxu0 0.0
        %415 = vmatprep.subr.mxu0 0.0
        %416 = vmatpush1.msra.mxu0 0.0
        %417 = vmatprep.subr.mxu0 0.0
        %418 = vmatpush1.msra.mxu0 0.0
        %419 = vmatprep.subr.mxu0 0.0
        %420 = vmatpush1.msra.mxu0 0.0
        %421 = vmatprep.subr.mxu0 0.0
        %422 = vmatpush1.msra.mxu0 0.0
        %423 = vmatprep.subr.mxu0 0.0
        %424 = vmatpush1.msra.mxu0 0.0
        %425 = vmatprep.subr.mxu0 0.0
        %426 = vmatpush1.msra.mxu0 0.0
        %427 = vmatprep.subr.mxu0 0.0
        %428 = vmatpush1.msra.mxu0 0.0
        %429 = vmatprep.subr.mxu0 0.0
        %430 = vmatpush1.msra.mxu0 0.0
        %431 = vmatprep.subr.mxu0 0.0
        %432 = vmatpush1.msra.mxu0 0.0
        %433 = vmatprep.subr.mxu0 0.0
        %434 = vmatpush1.msra.mxu0 0.0
        %435 = vmatprep.subr.mxu0 0.0
        %436 = vmatpush1.msra.mxu0 0.0
        %437 = vmatprep.subr.mxu0 0.0
        %438 = vmatpush1.msra.mxu0 0.0
        %439 = vmatprep.mubr.f32.mxu0 0.0
        %440 = vmatmul.mubr.f32.gmra.mrb[0].mxu0 %v298
        %v441 = vpop.f32.mrb[0].mxu0
        %v442 = vadd.f32 %v294, %v441
        %v443 = vpop.f32.mrb[0].mxu0
        %444 = vdwg.mxu0
        %s445 = scalar_lea.vmem %s262, 8 [#allocation3]
        %v446 = vld [vmem:[%s445] sm:$0xff]
        %v447 = vadd.f32 %v442, %v446
        %s448 = scalar_lea.vmem %s287, 8 [#allocation4]
        %449 = vst [vmem:[%s448] sm:$0xff] %v447
        %s450 = sand.u32 %s117, 1
        %s451 = sand.u32 %s117, 1
        %s452 = smul.addr %s451, 16
        %s453 = scalar_lea.vmem [#allocation4], %s452
        // Predicated region
        $region113: #{state_de_forward.8} parent=103 // pred_check
          %p454 = pneg %p127
        $region114: #{state_de_forward.8} parent=103 // pred_check_branch
          %456 = sbr.rel (%p454) target = $region116
        $region115: #{state_de_forward.8} parent=103 // pred_region
          %s457 = smul.addr %s15, 8
          %s458 = scalar_lea.vmem %s4, %s457
          // Predicated region
          $region117: #{state_de_forward.8} parent=115 // pred_check
            _
          $region118: #{state_de_forward.8} parent=115 // pred_check_branch
            %460 = sbr.rel (0) target = $region120
          $region119: #{state_de_forward.8} parent=115 // pred_region
            // Predicated region
            $region121: #{state_de_forward.8} parent=119 // pred_check
              _
            $region122: #{state_de_forward.8} parent=119 // pred_check_branch
              %462 = sbr.rel (0) target = $region124
            $region123: #{state_de_forward.8} parent=119 // pred_region
              // Predicated region
              $region136: #{state_de_forward.8} parent=123 // pred_check
                _
              $region137: #{state_de_forward.8} parent=123 // pred_check_branch
                %479 = sbr.rel (0) target = $region139
              $region138: #{state_de_forward.8} parent=123 // pred_region
                loop: start=0, step=1, limit=1
                $region140: #{state_de_forward.8} parent=138 // loop_pre_header
                  _
                $region141: #{state_de_forward.8} parent=138 // loop_header
                  %s481 = sphi 0, %s485
                  %p482 = scmp.ge.s32.totalorder %s481, 1
                  %s486 = sphi %s453, %s453
                  %s487 = sphi %s458, %s458
                $region142: #{state_de_forward.8} parent=138 // loop_header_branch
                  %484 = sbr.rel (%p482) target = $region146
                $region143: #{state_de_forward.8} parent=138 // loop_body
                  %v488 = vld [vmem:[%s486] sm:$0xff]
                  %489 = vst [vmem:[%s487] sm:$0xff] %v488
                  %v490 = vld [vmem:[%s486 + $0x8] sm:$0xff]
                  %491 = vst [vmem:[%s487 + $0x10] sm:$0xff] %v490
                $region144: #{state_de_forward.8} parent=138 // loop_footer
                  %s485 = sadd.s32 1, %s481
                $region145: #{state_de_forward.8} parent=138 // loop_footer_branch
                  %480 = sbr.rel target = $region141
                $region146: #{state_de_forward.8} parent=138 // loop_exit
                  _
              $region139: #{state_de_forward.8} parent=123 // pred_fallthru
                _
              // Predicated region
              $region147: #{state_de_forward.8} parent=123 // pred_check
                _
              $region148: #{state_de_forward.8} parent=123 // pred_check_branch
                %493 = sbr.rel target = $region150
              $region149: #{state_de_forward.8} parent=123 // pred_region
                _
              $region150: #{state_de_forward.8} parent=123 // pred_fallthru
                _
            $region124: #{state_de_forward.8} parent=119 // pred_fallthru
              _
            // Predicated region
            $region125: #{state_de_forward.8} parent=119 // pred_check
              _
            $region126: #{state_de_forward.8} parent=119 // pred_check_branch
              %464 = sbr.rel target = $region128
            $region127: #{state_de_forward.8} parent=119 // pred_region
              loop: start=0, step=1, limit=1
              $region129: #{state_de_forward.8} parent=127 // loop_pre_header
                _
              $region130: #{state_de_forward.8} parent=127 // loop_header
                %s467 = sphi 0, %s471
                %p468 = scmp.ge.s32.totalorder %s467, 1
                %s472 = sphi %s453, %s453
                %s473 = sphi %s458, %s458
              $region131: #{state_de_forward.8} parent=127 // loop_header_branch
                %470 = sbr.rel (%p468) target = $region135
              $region132: #{state_de_forward.8} parent=127 // loop_body
                %v474 = vld [vmem:[%s472] sm:$0xff]
                %475 = vst [vmem:[%s473] sm:$0xff] %v474
                %v476 = vld [vmem:[%s472 + $0x8] sm:$0xff]
                %477 = vst [vmem:[%s473 + $0x10] sm:$0xff] %v476
              $region133: #{state_de_forward.8} parent=127 // loop_footer
                %s471 = sadd.s32 1, %s467
              $region134: #{state_de_forward.8} parent=127 // loop_footer_branch
                %466 = sbr.rel target = $region130
              $region135: #{state_de_forward.8} parent=127 // loop_exit
                _
            $region128: #{state_de_forward.8} parent=119 // pred_fallthru
              _
          $region120: #{state_de_forward.8} parent=115 // pred_fallthru
            _
          %494 = vnop
        $region116: #{state_de_forward.8} parent=103 // pred_fallthru
          _
      $region104: #{state_de_forward.8} parent=5 // pred_fallthru
        _
      %p495 = scmp.le.s32.totalorder 2, %s10
      // Predicated region
      $region151: #{state_de_forward.8} parent=5 // pred_check
        %p496 = pneg %p495
      $region152: #{state_de_forward.8} parent=5 // pred_check_branch
        %498 = sbr.rel (%p496) target = $region154
      $region153: #{state_de_forward.8} parent=5 // pred_region
        %s499 = ssub.s32 %s10, 2
        // Predicated region
        $region155: #{state_de_forward.8} parent=153 // pred_check
          %p500 = pneg %p133
        $region156: #{state_de_forward.8} parent=153 // pred_check_branch
          %502 = sbr.rel (%p500) target = $region158
        $region157: #{state_de_forward.8} parent=153 // pred_region
          %s503 = sand.u32 %s118, 1
          %s504 = sand.u32 %s118, 1
          %s505 = smul.addr %s504, 16
          %s506 = scalar_lea.vmem [#allocation4], %s505
        $region158: #{state_de_forward.8} parent=153 // pred_fallthru
          _
      $region154: #{state_de_forward.8} parent=5 // pred_fallthru
        _
    $region6: #{state_de_forward.8} parent=1 // loop_footer
      %s14 = sadd.s32 1, %s10
    $region7: #{state_de_forward.8} parent=1 // loop_footer_branch
      %9 = sbr.rel target = $region3
    $region8: #{state_de_forward.8} parent=1 // loop_exit
      _

// kernel: state_de_forward.6
$region0: #{state_de_forward.6}
  #allocation0 [shape = 'u32[]', space=smem, size = 0x4, offset = 0x4, fixed_abs, tag = 'smem constant byte address 0x4 - core index']
  #allocation1 [shape = 'u32[144,128]{1,0:T(1,128)}', space=vmem, size = 0x12000, scoped, tag = 'internal scratch']
  %s0 = inlined_call_operand.vmem [shape: f32[2,8,256], index: 0, kind: input, shape index: {}]
  %s1 = inlined_call_operand.vmem [shape: f32[2,8,256], index: 1, kind: input, shape index: {}]
  %s2 = inlined_call_operand.vmem [shape: f32[8,8], index: 2, kind: input, shape index: {}]
  %s3 = inlined_call_operand.vmem [shape: f32[8,1], index: 3, kind: input, shape index: {}]
  %s4 = inlined_call_operand.vmem [shape: f32[2,8,256], index: 4, kind: output, shape index: {}]
  %s5 = sld [smem:[#allocation0]]
  $region159: #{state_de_forward.6} parent=0
    _
  %s7 = ssub.s32 1, %s5
  %s8 = scalar_select 0, %s7, %s5
  $region1: #{state_de_forward.6} parent=0
    #allocation2 [shape = 'u8[16384]{0}', space=vmem, size = 0x4000, scoped, tag = 'input window, operand 0']
    #allocation3 [shape = 'u8[16384]{0}', space=vmem, size = 0x4000, scoped, tag = 'input window, operand 1']
    #allocation4 [shape = 'u8[16384]{0}', space=vmem, size = 0x4000, scoped, tag = 'output window, operand 0']
    loop: start=0, step=1, limit=4
    $region2: #{state_de_forward.6} parent=1 // loop_pre_header
      _
    $region3: #{state_de_forward.6} parent=1 // loop_header
      %s10 = sphi 0, %s14
      %p11 = scmp.ge.s32.totalorder %s10, 4
      %s20 = sphi 0, %s22
      %s23 = sphi 0, %s20
      %s24 = sphi 0, %s23
      %s40 = sphi 0, %s24
      %s46 = sphi 0, %s48
      %s49 = sphi 0, %s46
      %s50 = sphi 0, %s49
      %s66 = sphi 0, %s50
      %s70 = sphi 0, %s70
      %s72 = sphi 0, %s70
      %s73 = sphi 0, %s72
      %s87 = sphi 0, %s73
      %s91 = sphi 0, %s91
      %s93 = sphi 0, %s91
      %s94 = sphi 0, %s93
      %s108 = sphi 0, %s94
      %s114 = sphi 0, %s116
      %s117 = sphi 0, %s114
      %s118 = sphi 0, %s117
      %s134 = sphi 0, %s118
    $region4: #{state_de_forward.6} parent=1 // loop_header_branch
      %13 = sbr.rel (%p11) target = $region8
    $region5: #{state_de_forward.6} parent=1 // loop_body
      %s15 = ssub.s32 %s10, 1
      %s16 = ssub.s32 %s10, 2
      %s17 = sadd.s32 %s10, 1
      %s18 = ssub.s32 %s10, %s17
      %p19 = scmp.eq.s32.totalorder %s18, 0
      %s21 = sadd.s32 %s20, 1
      %s22 = scalar_select %p19, %s20, %s21
      %p25 = pneg %p19
      %p26 = scmp.eq.s32.totalorder %s10, 1
      %p27 = por %p25, %p26
      %p28 = scmp.ne.s32.totalorder %s20, %s23
      %p29 = scmp.eq.s32.totalorder %s10, 0
      %p30 = por %p28, %p29
      %p31 = scmp.ne.s32.totalorder %s20, %s23
      %p32 = scmp.eq.s32.totalorder %s15, 1
      %p33 = por %p31, %p32
      %p34 = scmp.ne.s32.totalorder %s23, %s24
      %p35 = scmp.eq.s32.totalorder %s15, 0
      %p36 = por %p34, %p35
      %p37 = scmp.ne.s32.totalorder %s23, %s24
      %p38 = scmp.eq.s32.totalorder %s16, 1
      %p39 = por %p37, %p38
      %p41 = scmp.ne.s32.totalorder %s24, %s40
      %p42 = scmp.eq.s32.totalorder %s16, 0
      %p43 = por %p41, %p42
      %s44 = ssub.s32 %s10, %s17
      %p45 = scmp.eq.s32.totalorder %s44, 0
      %s47 = sadd.s32 %s46, 1
      %s48 = scalar_select %p45, %s46, %s47
      %p51 = pneg %p45
      %p52 = scmp.eq.s32.totalorder %s10, 1
      %p53 = por %p51, %p52
      %p54 = scmp.ne.s32.totalorder %s46, %s49
      %p55 = scmp.eq.s32.totalorder %s10, 0
      %p56 = por %p54, %p55
      %p57 = scmp.ne.s32.totalorder %s46, %s49
      %p58 = scmp.eq.s32.totalorder %s15, 1
      %p59 = por %p57, %p58
      %p60 = scmp.ne.s32.totalorder %s49, %s50
      %p61 = scmp.eq.s32.totalorder %s15, 0
      %p62 = por %p60, %p61
      %p63 = scmp.ne.s32.totalorder %s49, %s50
      %p64 = scmp.eq.s32.totalorder %s16, 1
      %p65 = por %p63, %p64
      %p67 = scmp.ne.s32.totalorder %s50, %s66
      %p68 = scmp.eq.s32.totalorder %s16, 0
      %p69 = por %p67, %p68
      %s71 = sadd.s32 %s70, 1
      %p74 = scmp.eq.s32.totalorder %s10, 1
      %p75 = scmp.ne.s32.totalorder %s70, %s72
      %p76 = scmp.eq.s32.totalorder %s10, 0
      %p77 = por %p75, %p76
      %p78 = scmp.ne.s32.totalorder %s70, %s72
      %p79 = scmp.eq.s32.totalorder %s15, 1
      %p80 = por %p78, %p79
      %p81 = scmp.ne.s32.totalorder %s72, %s73
      %p82 = scmp.eq.s32.totalorder %s15, 0
      %p83 = por %p81, %p82
      %p84 = scmp.ne.s32.totalorder %s72, %s73
      %p85 = scmp.eq.s32.totalorder %s16, 1
      %p86 = por %p84, %p85
      %p88 = scmp.ne.s32.totalorder %s73, %s87
      %p89 = scmp.eq.s32.totalorder %s16, 0
      %p90 = por %p88, %p89
      %s92 = sadd.s32 %s91, 1
      %p95 = scmp.eq.s32.totalorder %s10, 1
      %p96 = scmp.ne.s32.totalorder %s91, %s93
      %p97 = scmp.eq.s32.totalorder %s10, 0
      %p98 = por %p96, %p97
      %p99 = scmp.ne.s32.totalorder %s91, %s93
      %p100 = scmp.eq.s32.totalorder %s15, 1
      %p101 = por %p99, %p100
      %p102 = scmp.ne.s32.totalorder %s93, %s94
      %p103 = scmp.eq.s32.totalorder %s15, 0
      %p104 = por %p102, %p103
      %p105 = scmp.ne.s32.totalorder %s93, %s94
      %p106 = scmp.eq.s32.totalorder %s16, 1
      %p107 = por %p105, %p106
      %p109 = scmp.ne.s32.totalorder %s94, %s108
      %p110 = scmp.eq.s32.totalorder %s16, 0
      %p111 = por %p109, %p110
      %s112 = ssub.s32 %s10, %s17
      %p113 = scmp.eq.s32.totalorder %s112, 0
      %s115 = sadd.s32 %s114, 1
      %s116 = scalar_select %p113, %s114, %s115
      %p119 = pneg %p113
      %p120 = scmp.eq.s32.totalorder %s10, 1
      %p121 = por %p119, %p120
      %p122 = scmp.ne.s32.totalorder %s114, %s117
      %p123 = scmp.eq.s32.totalorder %s10, 0
      %p124 = por %p122, %p123
      %p125 = scmp.ne.s32.totalorder %s114, %s117
      %p126 = scmp.eq.s32.totalorder %s15, 1
      %p127 = por %p125, %p126
      %p128 = scmp.ne.s32.totalorder %s117, %s118
      %p129 = scmp.eq.s32.totalorder %s15, 0
      %p130 = por %p128, %p129
      %p131 = scmp.ne.s32.totalorder %s117, %s118
      %p132 = scmp.eq.s32.totalorder %s16, 1
      %p133 = por %p131, %p132
      %p135 = scmp.ne.s32.totalorder %s118, %s134
      %p136 = scmp.eq.s32.totalorder %s16, 0
      %p137 = por %p135, %p136
      %p138 = scmp.le.s32.totalorder 1, %s10
      %p139 = scmp.lt.s32.totalorder %s10, 3
      %p140 = pnand %p138, %p139
      %p141 = pneg %p140
      // Predicated region
      $region9: #{state_de_forward.6} parent=5 // pred_check
        _
      $region10: #{state_de_forward.6} parent=5 // pred_check_branch
        %143 = sbr.rel (%p140) target = $region12
      $region11: #{state_de_forward.6} parent=5 // pred_region
        %s144 = ssub.s32 %s10, 1
        // Predicated region
        $region13: #{state_de_forward.6} parent=11 // pred_check
          %p145 = pneg %p83
        $region14: #{state_de_forward.6} parent=11 // pred_check_branch
          %147 = sbr.rel (%p145) target = $region16
        $region15: #{state_de_forward.6} parent=11 // pred_region
          _
        $region16: #{state_de_forward.6} parent=11 // pred_fallthru
          _
        // Predicated region
        $region17: #{state_de_forward.6} parent=11 // pred_check
          %p148 = pneg %p104
        $region18: #{state_de_forward.6} parent=11 // pred_check_branch
          %150 = sbr.rel (%p148) target = $region20
        $region19: #{state_de_forward.6} parent=11 // pred_region
          _
        $region20: #{state_de_forward.6} parent=11 // pred_fallthru
          _
      $region12: #{state_de_forward.6} parent=5 // pred_fallthru
        _
      %p151 = scmp.lt.s32.totalorder %s10, 2
      // Predicated region
      $region21: #{state_de_forward.6} parent=5 // pred_check
        %p152 = pneg %p151
      $region22: #{state_de_forward.6} parent=5 // pred_check_branch
        %154 = sbr.rel (%p152) target = $region24
      $region23: #{state_de_forward.6} parent=5 // pred_region
        // Predicated region
        $region25: #{state_de_forward.6} parent=23 // pred_check
          %p155 = pneg %p30
        $region26: #{state_de_forward.6} parent=23 // pred_check_branch
          %157 = sbr.rel (%p155) target = $region28
        $region27: #{state_de_forward.6} parent=23 // pred_region
          %s158 = sand.u32 %s20, 1
          %s159 = sand.u32 %s20, 1
          %s160 = smul.addr %s159, 16
          %s161 = scalar_lea.vmem [#allocation2], %s160
          %s162 = smul.addr %s10, 8
          %s163 = scalar_lea.vmem %s0, %s162
          // Predicated region
          $region29: #{state_de_forward.6} parent=27 // pred_check
            _
          $region30: #{state_de_forward.6} parent=27 // pred_check_branch
            %165 = sbr.rel (0) target = $region32
          $region31: #{state_de_forward.6} parent=27 // pred_region
            // Predicated region
            $region33: #{state_de_forward.6} parent=31 // pred_check
              _
            $region34: #{state_de_forward.6} parent=31 // pred_check_branch
              %167 = sbr.rel (0) target = $region36
            $region35: #{state_de_forward.6} parent=31 // pred_region
              // Predicated region
              $region48: #{state_de_forward.6} parent=35 // pred_check
                _
              $region49: #{state_de_forward.6} parent=35 // pred_check_branch
                %184 = sbr.rel (0) target = $region51
              $region50: #{state_de_forward.6} parent=35 // pred_region
                loop: start=0, step=1, limit=1
                $region52: #{state_de_forward.6} parent=50 // loop_pre_header
                  _
                $region53: #{state_de_forward.6} parent=50 // loop_header
                  %s186 = sphi 0, %s190
                  %p187 = scmp.ge.s32.totalorder %s186, 1
                  %s191 = sphi %s163, %s163
                  %s192 = sphi %s161, %s161
                $region54: #{state_de_forward.6} parent=50 // loop_header_branch
                  %189 = sbr.rel (%p187) target = $region58
                $region55: #{state_de_forward.6} parent=50 // loop_body
                  %v193 = vld [vmem:[%s191] sm:$0xff]
                  %194 = vst [vmem:[%s192] sm:$0xff] %v193
                  %v195 = vld [vmem:[%s191 + $0x10] sm:$0xff]
                  %196 = vst [vmem:[%s192 + $0x8] sm:$0xff] %v195
                $region56: #{state_de_forward.6} parent=50 // loop_footer
                  %s190 = sadd.s32 1, %s186
                $region57: #{state_de_forward.6} parent=50 // loop_footer_branch
                  %185 = sbr.rel target = $region53
                $region58: #{state_de_forward.6} parent=50 // loop_exit
                  _
              $region51: #{state_de_forward.6} parent=35 // pred_fallthru
                _
              // Predicated region
              $region59: #{state_de_forward.6} parent=35 // pred_check
                _
              $region60: #{state_de_forward.6} parent=35 // pred_check_branch
                %198 = sbr.rel target = $region62
              $region61: #{state_de_forward.6} parent=35 // pred_region
                _
              $region62: #{state_de_forward.6} parent=35 // pred_fallthru
                _
            $region36: #{state_de_forward.6} parent=31 // pred_fallthru
              _
            // Predicated region
            $region37: #{state_de_forward.6} parent=31 // pred_check
              _
            $region38: #{state_de_forward.6} parent=31 // pred_check_branch
              %169 = sbr.rel target = $region40
            $region39: #{state_de_forward.6} parent=31 // pred_region
              loop: start=0, step=1, limit=1
              $region41: #{state_de_forward.6} parent=39 // loop_pre_header
                _
              $region42: #{state_de_forward.6} parent=39 // loop_header
                %s172 = sphi 0, %s176
                %p173 = scmp.ge.s32.totalorder %s172, 1
                %s177 = sphi %s163, %s163
                %s178 = sphi %s161, %s161
              $region43: #{state_de_forward.6} parent=39 // loop_header_branch
                %175 = sbr.rel (%p173) target = $region47
              $region44: #{state_de_forward.6} parent=39 // loop_body
                %v179 = vld [vmem:[%s177] sm:$0xff]
                %180 = vst [vmem:[%s178] sm:$0xff] %v179
                %v181 = vld [vmem:[%s177 + $0x10] sm:$0xff]
                %182 = vst [vmem:[%s178 + $0x8] sm:$0xff] %v181
              $region45: #{state_de_forward.6} parent=39 // loop_footer
                %s176 = sadd.s32 1, %s172
              $region46: #{state_de_forward.6} parent=39 // loop_footer_branch
                %171 = sbr.rel target = $region42
              $region47: #{state_de_forward.6} parent=39 // loop_exit
                _
            $region40: #{state_de_forward.6} parent=31 // pred_fallthru
              _
          $region32: #{state_de_forward.6} parent=27 // pred_fallthru
            _
          %199 = vnop
        $region28: #{state_de_forward.6} parent=23 // pred_fallthru
          _
        // Predicated region
        $region63: #{state_de_forward.6} parent=23 // pred_check
          %p200 = pneg %p56
        $region64: #{state_de_forward.6} parent=23 // pred_check_branch
          %202 = sbr.rel (%p200) target = $region66
        $region65: #{state_de_forward.6} parent=23 // pred_region
          %s203 = sand.u32 %s46, 1
          %s204 = sand.u32 %s46, 1
          %s205 = smul.addr %s204, 16
          %s206 = scalar_lea.vmem [#allocation3], %s205
          %s207 = smul.addr %s10, 8
          %s208 = scalar_lea.vmem %s1, %s207
          // Predicated region
          $region67: #{state_de_forward.6} parent=65 // pred_check
            _
          $region68: #{state_de_forward.6} parent=65 // pred_check_branch
            %210 = sbr.rel (0) target = $region70
          $region69: #{state_de_forward.6} parent=65 // pred_region
            // Predicated region
            $region71: #{state_de_forward.6} parent=69 // pred_check
              _
            $region72: #{state_de_forward.6} parent=69 // pred_check_branch
              %212 = sbr.rel (0) target = $region74
            $region73: #{state_de_forward.6} parent=69 // pred_region
              // Predicated region
              $region86: #{state_de_forward.6} parent=73 // pred_check
                _
              $region87: #{state_de_forward.6} parent=73 // pred_check_branch
                %229 = sbr.rel (0) target = $region89
              $region88: #{state_de_forward.6} parent=73 // pred_region
                loop: start=0, step=1, limit=1
                $region90: #{state_de_forward.6} parent=88 // loop_pre_header
                  _
                $region91: #{state_de_forward.6} parent=88 // loop_header
                  %s231 = sphi 0, %s235
                  %p232 = scmp.ge.s32.totalorder %s231, 1
                  %s236 = sphi %s208, %s208
                  %s237 = sphi %s206, %s206
                $region92: #{state_de_forward.6} parent=88 // loop_header_branch
                  %234 = sbr.rel (%p232) target = $region96
                $region93: #{state_de_forward.6} parent=88 // loop_body
                  %v238 = vld [vmem:[%s236] sm:$0xff]
                  %239 = vst [vmem:[%s237] sm:$0xff] %v238
                  %v240 = vld [vmem:[%s236 + $0x10] sm:$0xff]
                  %241 = vst [vmem:[%s237 + $0x8] sm:$0xff] %v240
                $region94: #{state_de_forward.6} parent=88 // loop_footer
                  %s235 = sadd.s32 1, %s231
                $region95: #{state_de_forward.6} parent=88 // loop_footer_branch
                  %230 = sbr.rel target = $region91
                $region96: #{state_de_forward.6} parent=88 // loop_exit
                  _
              $region89: #{state_de_forward.6} parent=73 // pred_fallthru
                _
              // Predicated region
              $region97: #{state_de_forward.6} parent=73 // pred_check
                _
              $region98: #{state_de_forward.6} parent=73 // pred_check_branch
                %243 = sbr.rel target = $region100
              $region99: #{state_de_forward.6} parent=73 // pred_region
                _
              $region100: #{state_de_forward.6} parent=73 // pred_fallthru
                _
            $region74: #{state_de_forward.6} parent=69 // pred_fallthru
              _
            // Predicated region
            $region75: #{state_de_forward.6} parent=69 // pred_check
              _
            $region76: #{state_de_forward.6} parent=69 // pred_check_branch
              %214 = sbr.rel target = $region78
            $region77: #{state_de_forward.6} parent=69 // pred_region
              loop: start=0, step=1, limit=1
              $region79: #{state_de_forward.6} parent=77 // loop_pre_header
                _
              $region80: #{state_de_forward.6} parent=77 // loop_header
                %s217 = sphi 0, %s221
                %p218 = scmp.ge.s32.totalorder %s217, 1
                %s222 = sphi %s208, %s208
                %s223 = sphi %s206, %s206
              $region81: #{state_de_forward.6} parent=77 // loop_header_branch
                %220 = sbr.rel (%p218) target = $region85
              $region82: #{state_de_forward.6} parent=77 // loop_body
                %v224 = vld [vmem:[%s222] sm:$0xff]
                %225 = vst [vmem:[%s223] sm:$0xff] %v224
                %v226 = vld [vmem:[%s222 + $0x10] sm:$0xff]
                %227 = vst [vmem:[%s223 + $0x8] sm:$0xff] %v226
              $region83: #{state_de_forward.6} parent=77 // loop_footer
                %s221 = sadd.s32 1, %s217
              $region84: #{state_de_forward.6} parent=77 // loop_footer_branch
                %216 = sbr.rel target = $region80
              $region85: #{state_de_forward.6} parent=77 // loop_exit
                _
            $region78: #{state_de_forward.6} parent=69 // pred_fallthru
              _
          $region70: #{state_de_forward.6} parent=65 // pred_fallthru
            _
          %244 = vnop
        $region66: #{state_de_forward.6} parent=23 // pred_fallthru
          _
      $region24: #{state_de_forward.6} parent=5 // pred_fallthru
        _
      %p245 = scmp.le.s32.totalorder 1, %s10
      %p246 = scmp.lt.s32.totalorder %s10, 3
      %p247 = pnand %p245, %p246
      %p248 = pneg %p247
      // Predicated region
      $region101: #{state_de_forward.6} parent=5 // pred_check
        _
      $region102: #{state_de_forward.6} parent=5 // pred_check_branch
        %250 = sbr.rel (%p247) target = $region104
      $region103: #{state_de_forward.6} parent=5 // pred_region
        %s251 = ssub.s32 %s10, 1
        %s252 = sand.u32 %s23, 1
        %s253 = sand.u32 %s23, 1
        %s254 = smul.addr %s253, 16
        %s255 = scalar_lea.vmem [#allocation2], %s254
        // Predicated region
        $region105: #{state_de_forward.6} parent=103 // pred_check
          %p256 = pneg %p36
        $region106: #{state_de_forward.6} parent=103 // pred_check_branch
          %258 = sbr.rel (%p256) target = $region108
        $region107: #{state_de_forward.6} parent=103 // pred_region
          _
        $region108: #{state_de_forward.6} parent=103 // pred_fallthru
          _
        %s259 = sand.u32 %s49, 1
        %s260 = sand.u32 %s49, 1
        %s261 = smul.addr %s260, 16
        %s262 = scalar_lea.vmem [#allocation3], %s261
        // Predicated region
        $region109: #{state_de_forward.6} parent=103 // pred_check
          %p263 = pneg %p62
        $region110: #{state_de_forward.6} parent=103 // pred_check_branch
          %265 = sbr.rel (%p263) target = $region112
        $region111: #{state_de_forward.6} parent=103 // pred_region
          _
        $region112: #{state_de_forward.6} parent=103 // pred_fallthru
          _
        %s266 = sand.u32 %s23, 1
        %s267 = sand.u32 %s23, 1
        %s268 = smul.addr %s267, 16
        %s269 = scalar_lea.vmem [#allocation2], %s268
        %p270 = pneg %p36
        %p271 = pneg %p33
        %s272 = sand.u32 %s49, 1
        %s273 = sand.u32 %s49, 1
        %s274 = smul.addr %s273, 16
        %s275 = scalar_lea.vmem [#allocation3], %s274
        %p276 = pneg %p62
        %p277 = pneg %p59
        %p278 = pneg %p83
        %p279 = pneg %p80
        %p280 = pneg %p104
        %p281 = pneg %p101
        %p282 = pneg %p130
        %p283 = pneg %p127
        %s284 = sand.u32 %s117, 1
        %s285 = sand.u32 %s117, 1
        %s286 = smul.addr %s285, 16
        %s287 = scalar_lea.vmem [#allocation4], %s286
        %v288 = vld [vmem:[%s2] sm:$0xff]
        %v289 = vld [vmem:[%s3] sm:$0xff]
        %v290 = vld [vmem:[%s255] sm:$0xff]
        %292 = vset.pattern.permute.xlu0 0
        %293 = vperm.xlu0 %292, %v289
        %v294 = vpop.permute.xlu0 %293
        %vm296 = vcmask 64512
        %v298 = vsel %vm296, %v288, 0
        %300 = vmatprep.subr.mxu0 0.0
        %301 = vmatpush1.msra.mxu0 %v290
        %302 = vmatprep.subr.mxu0 0.0
        %303 = vmatpush1.msra.mxu0 0.0
        %304 = vmatprep.subr.mxu0 0.0
        %305 = vmatpush1.msra.mxu0 0.0
        %306 = vmatprep.subr.mxu0 0.0
        %307 = vmatpush1.msra.mxu0 0.0
        %308 = vmatprep.subr.mxu0 0.0
        %309 = vmatpush1.msra.mxu0 0.0
        %310 = vmatprep.subr.mxu0 0.0
        %311 = vmatpush1.msra.mxu0 0.0
        %312 = vmatprep.subr.mxu0 0.0
        %313 = vmatpush1.msra.mxu0 0.0
        %314 = vmatprep.subr.mxu0 0.0
        %315 = vmatpush1.msra.mxu0 0.0
        %316 = vmatprep.subr.mxu0 0.0
        %317 = vmatpush1.msra.mxu0 0.0
        %318 = vmatprep.subr.mxu0 0.0
        %319 = vmatpush1.msra.mxu0 0.0
        %320 = vmatprep.subr.mxu0 0.0
        %321 = vmatpush1.msra.mxu0 0.0
        %322 = vmatprep.subr.mxu0 0.0
        %323 = vmatpush1.msra.mxu0 0.0
        %324 = vmatprep.subr.mxu0 0.0
        %325 = vmatpush1.msra.mxu0 0.0
        %326 = vmatprep.subr.mxu0 0.0
        %327 = vmatpush1.msra.mxu0 0.0
        %328 = vmatprep.subr.mxu0 0.0
        %329 = vmatpush1.msra.mxu0 0.0
        %330 = vmatprep.subr.mxu0 0.0
        %331 = vmatpush1.msra.mxu0 0.0
        %332 = vmatprep.subr.mxu0 0.0
        %333 = vmatpush1.msra.mxu0 0.0
        %334 = vmatprep.subr.mxu0 0.0
        %335 = vmatpush1.msra.mxu0 0.0
        %336 = vmatprep.subr.mxu0 0.0
        %337 = vmatpush1.msra.mxu0 0.0
        %338 = vmatprep.subr.mxu0 0.0
        %339 = vmatpush1.msra.mxu0 0.0
        %340 = vmatprep.subr.mxu0 0.0
        %341 = vmatpush1.msra.mxu0 0.0
        %342 = vmatprep.subr.mxu0 0.0
        %343 = vmatpush1.msra.mxu0 0.0
        %344 = vmatprep.subr.mxu0 0.0
        %345 = vmatpush1.msra.mxu0 0.0
        %346 = vmatprep.subr.mxu0 0.0
        %347 = vmatpush1.msra.mxu0 0.0
        %348 = vmatprep.subr.mxu0 0.0
        %349 = vmatpush1.msra.mxu0 0.0
        %350 = vmatprep.subr.mxu0 0.0
        %351 = vmatpush1.msra.mxu0 0.0
        %352 = vmatprep.subr.mxu0 0.0
        %353 = vmatpush1.msra.mxu0 0.0
        %354 = vmatprep.subr.mxu0 0.0
        %355 = vmatpush1.msra.mxu0 0.0
        %356 = vmatprep.subr.mxu0 0.0
        %357 = vmatpush1.msra.mxu0 0.0
        %358 = vmatprep.subr.mxu0 0.0
        %359 = vmatpush1.msra.mxu0 0.0
        %360 = vmatprep.subr.mxu0 0.0
        %361 = vmatpush1.msra.mxu0 0.0
        %362 = vmatprep.subr.mxu0 0.0
        %363 = vmatpush1.msra.mxu0 0.0
        %364 = vmatprep.mubr.f32.mxu0 0.0
        %365 = vmatmul.mubr.f32.gmra.mrb[0].mxu0 %v298
        %v366 = vpop.f32.mrb[0].mxu0
        %v367 = vadd.f32 %v294, %v366
        %v368 = vpop.f32.mrb[0].mxu0
        %369 = vdwg.mxu0
        %v370 = vld [vmem:[%s262] sm:$0xff]
        %v371 = vadd.f32 %v367, %v370
        %v372 = vmul.f32 %v371, 0.5
        %v373 = vmul.f32 %v371, 0.70710677
        %v374 = vmax.f32 %v373, -3.832507
        %v375 = vmin.f32 %v374, 3.832507
        %v376 = vmul.f32 %v375, %v375
        %v377 = vmul.f32 %v376, 0.00022905065
        %v378 = vadd.f32 %v377, 0.003408291
        %v379 = vmul.f32 %v378, %v376
        %v380 = vadd.f32 %v379, 0.050955694
        %v381 = vmul.f32 %v380, %v376
        %v382 = vadd.f32 %v381, 0.18520832
        %v383 = vmul.f32 %v382, %v376
        %v384 = vadd.f32 %v383, 1.1283791
        %v385 = vmul.f32 %v375, %v384
        %v386 = vmul.f32 %v376, -1.1791603e-07
        %v387 = vadd.f32 %v386, 2.3547966e-05
        %v388 = vmul.f32 %v387, %v376
        %v389 = vadd.f32 %v388, 0.0010179626
        %v390 = vmul.f32 %v389, %v376
        %v391 = vadd.f32 %v390, 0.01407047
        %v392 = vmul.f32 %v391, %v376
        %v393 = vadd.f32 %v392, 0.11098505
        %v394 = vmul.f32 %v393, %v376
        %v395 = vadd.f32 %v394, 0.49746925
        %v396 = vmul.f32 %v395, %v376
        %v397 = vadd.f32 %v396, 1.0
        %v398 = vrcp.pop %v397
        %v399 = vmul.f32 %v385, %v398
        %v400 = vadd.f32 %v399, 1.0
        %v401 = vmul.f32 %v372, %v400
        %402 = vst [vmem:[%s287] sm:$0xff] %v401
        %s403 = scalar_lea.vmem %s255, 8 [#allocation2]
        %v404 = vld [vmem:[%s403] sm:$0xff]
        %405 = vmatprep.subr.mxu0 0.0
        %406 = vmatpush1.msra.mxu0 %v404
        %407 = vmatprep.subr.mxu0 0.0
        %408 = vmatpush1.msra.mxu0 0.0
        %409 = vmatprep.subr.mxu0 0.0
        %410 = vmatpush1.msra.mxu0 0.0
        %411 = vmatprep.subr.mxu0 0.0
        %412 = vmatpush1.msra.mxu0 0.0
        %413 = vmatprep.subr.mxu0 0.0
        %414 = vmatpush1.msra.mxu0 0.0
        %415 = vmatprep.subr.mxu0 0.0
        %416 = vmatpush1.msra.mxu0 0.0
        %417 = vmatprep.subr.mxu0 0.0
        %418 = vmatpush1.msra.mxu0 0.0
        %419 = vmatprep.subr.mxu0 0.0
        %420 = vmatpush1.msra.mxu0 0.0
        %421 = vmatprep.subr.mxu0 0.0
        %422 = vmatpush1.msra.mxu0 0.0
        %423 = vmatprep.subr.mxu0 0.0
        %424 = vmatpush1.msra.mxu0 0.0
        %425 = vmatprep.subr.mxu0 0.0
        %426 = vmatpush1.msra.mxu0 0.0
        %427 = vmatprep.subr.mxu0 0.0
        %428 = vmatpush1.msra.mxu0 0.0
        %429 = vmatprep.subr.mxu0 0.0
        %430 = vmatpush1.msra.mxu0 0.0
        %431 = vmatprep.subr.mxu0 0.0
        %432 = vmatpush1.msra.mxu0 0.0
        %433 = vmatprep.subr.mxu0 0.0
        %434 = vmatpush1.msra.mxu0 0.0
        %435 = vmatprep.subr.mxu0 0.0
        %436 = vmatpush1.msra.mxu0 0.0
        %437 = vmatprep.subr.mxu0 0.0
        %438 = vmatpush1.msra.mxu0 0.0
        %439 = vmatprep.subr.mxu0 0.0
        %440 = vmatpush1.msra.mxu0 0.0
        %441 = vmatprep.subr.mxu0 0.0
        %442 = vmatpush1.msra.mxu0 0.0
        %443 = vmatprep.subr.mxu0 0.0
        %444 = vmatpush1.msra.mxu0 0.0
        %445 = vmatprep.subr.mxu0 0.0
        %446 = vmatpush1.msra.mxu0 0.0
        %447 = vmatprep.subr.mxu0 0.0
        %448 = vmatpush1.msra.mxu0 0.0
        %449 = vmatprep.subr.mxu0 0.0
        %450 = vmatpush1.msra.mxu0 0.0
        %451 = vmatprep.subr.mxu0 0.0
        %452 = vmatpush1.msra.mxu0 0.0
        %453 = vmatprep.subr.mxu0 0.0
        %454 = vmatpush1.msra.mxu0 0.0
        %455 = vmatprep.subr.mxu0 0.0
        %456 = vmatpush1.msra.mxu0 0.0
        %457 = vmatprep.subr.mxu0 0.0
        %458 = vmatpush1.msra.mxu0 0.0
        %459 = vmatprep.subr.mxu0 0.0
        %460 = vmatpush1.msra.mxu0 0.0
        %461 = vmatprep.subr.mxu0 0.0
        %462 = vmatpush1.msra.mxu0 0.0
        %463 = vmatprep.subr.mxu0 0.0
        %464 = vmatpush1.msra.mxu0 0.0
        %465 = vmatprep.subr.mxu0 0.0
        %466 = vmatpush1.msra.mxu0 0.0
        %467 = vmatprep.subr.mxu0 0.0
        %468 = vmatpush1.msra.mxu0 0.0
        %469 = vmatprep.mubr.f32.mxu0 0.0
        %470 = vmatmul.mubr.f32.gmra.mrb[0].mxu0 %v298
        %v471 = vpop.f32.mrb[0].mxu0
        %v472 = vadd.f32 %v294, %v471
        %v473 = vpop.f32.mrb[0].mxu0
        %474 = vdwg.mxu0
        %s475 = scalar_lea.vmem %s262, 8 [#allocation3]
        %v476 = vld [vmem:[%s475] sm:$0xff]
        %v477 = vadd.f32 %v472, %v476
        %v478 = vmul.f32 %v477, 0.5
        %v479 = vmul.f32 %v477, 0.70710677
        %v480 = vmax.f32 %v479, -3.832507
        %v481 = vmin.f32 %v480, 3.832507
        %v482 = vmul.f32 %v481, %v481
        %v483 = vmul.f32 %v482, 0.00022905065
        %v484 = vadd.f32 %v483, 0.003408291
        %v485 = vmul.f32 %v484, %v482
        %v486 = vadd.f32 %v485, 0.050955694
        %v487 = vmul.f32 %v486, %v482
        %v488 = vadd.f32 %v487, 0.18520832
        %v489 = vmul.f32 %v488, %v482
        %v490 = vadd.f32 %v489, 1.1283791
        %v491 = vmul.f32 %v481, %v490
        %v492 = vmul.f32 %v482, -1.1791603e-07
        %v493 = vadd.f32 %v492, 2.3547966e-05
        %v494 = vmul.f32 %v493, %v482
        %v495 = vadd.f32 %v494, 0.0010179626
        %v496 = vmul.f32 %v495, %v482
        %v497 = vadd.f32 %v496, 0.01407047
        %v498 = vmul.f32 %v497, %v482
        %v499 = vadd.f32 %v498, 0.11098505
        %v500 = vmul.f32 %v499, %v482
        %v501 = vadd.f32 %v500, 0.49746925
        %v502 = vmul.f32 %v501, %v482
        %v503 = vadd.f32 %v502, 1.0
        %v504 = vrcp.pop %v503
        %v505 = vmul.f32 %v491, %v504
        %v506 = vadd.f32 %v505, 1.0
        %v507 = vmul.f32 %v478, %v506
        %s508 = scalar_lea.vmem %s287, 8 [#allocation4]
        %509 = vst [vmem:[%s508] sm:$0xff] %v507
        %s510 = sand.u32 %s117, 1
        %s511 = sand.u32 %s117, 1
        %s512 = smul.addr %s511, 16
        %s513 = scalar_lea.vmem [#allocation4], %s512
        // Predicated region
        $region113: #{state_de_forward.6} parent=103 // pred_check
          %p514 = pneg %p127
        $region114: #{state_de_forward.6} parent=103 // pred_check_branch
          %516 = sbr.rel (%p514) target = $region116
        $region115: #{state_de_forward.6} parent=103 // pred_region
          %s517 = smul.addr %s15, 8
          %s518 = scalar_lea.vmem %s4, %s517
          // Predicated region
          $region117: #{state_de_forward.6} parent=115 // pred_check
            _
          $region118: #{state_de_forward.6} parent=115 // pred_check_branch
            %520 = sbr.rel (0) target = $region120
          $region119: #{state_de_forward.6} parent=115 // pred_region
            // Predicated region
            $region121: #{state_de_forward.6} parent=119 // pred_check
              _
            $region122: #{state_de_forward.6} parent=119 // pred_check_branch
              %522 = sbr.rel (0) target = $region124
            $region123: #{state_de_forward.6} parent=119 // pred_region
              // Predicated region
              $region136: #{state_de_forward.6} parent=123 // pred_check
                _
              $region137: #{state_de_forward.6} parent=123 // pred_check_branch
                %539 = sbr.rel (0) target = $region139
              $region138: #{state_de_forward.6} parent=123 // pred_region
                loop: start=0, step=1, limit=1
                $region140: #{state_de_forward.6} parent=138 // loop_pre_header
                  _
                $region141: #{state_de_forward.6} parent=138 // loop_header
                  %s541 = sphi 0, %s545
                  %p542 = scmp.ge.s32.totalorder %s541, 1
                  %s546 = sphi %s513, %s513
                  %s547 = sphi %s518, %s518
                $region142: #{state_de_forward.6} parent=138 // loop_header_branch
                  %544 = sbr.rel (%p542) target = $region146
                $region143: #{state_de_forward.6} parent=138 // loop_body
                  %v548 = vld [vmem:[%s546] sm:$0xff]
                  %549 = vst [vmem:[%s547] sm:$0xff] %v548
                  %v550 = vld [vmem:[%s546 + $0x8] sm:$0xff]
                  %551 = vst [vmem:[%s547 + $0x10] sm:$0xff] %v550
                $region144: #{state_de_forward.6} parent=138 // loop_footer
                  %s545 = sadd.s32 1, %s541
                $region145: #{state_de_forward.6} parent=138 // loop_footer_branch
                  %540 = sbr.rel target = $region141
                $region146: #{state_de_forward.6} parent=138 // loop_exit
                  _
              $region139: #{state_de_forward.6} parent=123 // pred_fallthru
                _
              // Predicated region
              $region147: #{state_de_forward.6} parent=123 // pred_check
                _
              $region148: #{state_de_forward.6} parent=123 // pred_check_branch
                %553 = sbr.rel target = $region150
              $region149: #{state_de_forward.6} parent=123 // pred_region
                _
              $region150: #{state_de_forward.6} parent=123 // pred_fallthru
                _
            $region124: #{state_de_forward.6} parent=119 // pred_fallthru
              _
            // Predicated region
            $region125: #{state_de_forward.6} parent=119 // pred_check
              _
            $region126: #{state_de_forward.6} parent=119 // pred_check_branch
              %524 = sbr.rel target = $region128
            $region127: #{state_de_forward.6} parent=119 // pred_region
              loop: start=0, step=1, limit=1
              $region129: #{state_de_forward.6} parent=127 // loop_pre_header
                _
              $region130: #{state_de_forward.6} parent=127 // loop_header
                %s527 = sphi 0, %s531
                %p528 = scmp.ge.s32.totalorder %s527, 1
                %s532 = sphi %s513, %s513
                %s533 = sphi %s518, %s518
              $region131: #{state_de_forward.6} parent=127 // loop_header_branch
                %530 = sbr.rel (%p528) target = $region135
              $region132: #{state_de_forward.6} parent=127 // loop_body
                %v534 = vld [vmem:[%s532] sm:$0xff]
                %535 = vst [vmem:[%s533] sm:$0xff] %v534
                %v536 = vld [vmem:[%s532 + $0x8] sm:$0xff]
                %537 = vst [vmem:[%s533 + $0x10] sm:$0xff] %v536
              $region133: #{state_de_forward.6} parent=127 // loop_footer
                %s531 = sadd.s32 1, %s527
              $region134: #{state_de_forward.6} parent=127 // loop_footer_branch
                %526 = sbr.rel target = $region130
              $region135: #{state_de_forward.6} parent=127 // loop_exit
                _
            $region128: #{state_de_forward.6} parent=119 // pred_fallthru
              _
          $region120: #{state_de_forward.6} parent=115 // pred_fallthru
            _
          %554 = vnop
        $region116: #{state_de_forward.6} parent=103 // pred_fallthru
          _
      $region104: #{state_de_forward.6} parent=5 // pred_fallthru
        _
      %p555 = scmp.le.s32.totalorder 2, %s10
      // Predicated region
      $region151: #{state_de_forward.6} parent=5 // pred_check
        %p556 = pneg %p555
      $region152: #{state_de_forward.6} parent=5 // pred_check_branch
        %558 = sbr.rel (%p556) target = $region154
      $region153: #{state_de_forward.6} parent=5 // pred_region
        %s559 = ssub.s32 %s10, 2
        // Predicated region
        $region155: #{state_de_forward.6} parent=153 // pred_check
          %p560 = pneg %p133
        $region156: #{state_de_forward.6} parent=153 // pred_check_branch
          %562 = sbr.rel (%p560) target = $region158
        $region157: #{state_de_forward.6} parent=153 // pred_region
          %s563 = sand.u32 %s118, 1
          %s564 = sand.u32 %s118, 1
          %s565 = smul.addr %s564, 16
          %s566 = scalar_lea.vmem [#allocation4], %s565
        $region158: #{state_de_forward.6} parent=153 // pred_fallthru
          _
      $region154: #{state_de_forward.6} parent=5 // pred_fallthru
        _
    $region6: #{state_de_forward.6} parent=1 // loop_footer
      %s14 = sadd.s32 1, %s10
    $region7: #{state_de_forward.6} parent=1 // loop_footer_branch
      %9 = sbr.rel target = $region3
    $region8: #{state_de_forward.6} parent=1 // loop_exit
      _

// kernel: state_de_forward.9
$region0: #{state_de_forward.9}
  #allocation0 [shape = 'u32[]', space=smem, size = 0x4, offset = 0x4, fixed_abs, tag = 'smem constant byte address 0x4 - core index']
  #allocation1 [shape = 'u32[144,128]{1,0:T(1,128)}', space=vmem, size = 0x12000, scoped, tag = 'internal scratch']
  %s0 = inlined_call_operand.vmem [shape: f32[2,8,256], index: 0, kind: input, shape index: {}]
  %s1 = inlined_call_operand.vmem [shape: f32[128,8], index: 1, kind: input, shape index: {}]
  %s2 = inlined_call_operand.vmem [shape: f32[128,1], index: 2, kind: input, shape index: {}]
  %s3 = inlined_call_operand.vmem [shape: f32[5,128], index: 3, kind: input, shape index: {}]
  %s4 = inlined_call_operand.vmem [shape: f32[5,1], index: 4, kind: input, shape index: {}]
  %s5 = inlined_call_operand.vmem [shape: f32[2,5,256], index: 5, kind: output, shape index: {}]
  %s6 = sld [smem:[#allocation0]]
  $region125: #{state_de_forward.9} parent=0
    _
  %s8 = ssub.s32 1, %s6
  %s9 = scalar_select 0, %s8, %s6
  $region1: #{state_de_forward.9} parent=0
    #allocation2 [shape = 'u8[16384]{0}', space=vmem, size = 0x4000, scoped, tag = 'input window, operand 0']
    #allocation3 [shape = 'u8[16384]{0}', space=vmem, size = 0x4000, scoped, tag = 'output window, operand 0']
    loop: start=0, step=1, limit=4
    $region2: #{state_de_forward.9} parent=1 // loop_pre_header
      _
    $region3: #{state_de_forward.9} parent=1 // loop_header
      %s11 = sphi 0, %s15
      %p12 = scmp.ge.s32.totalorder %s11, 4
      %s21 = sphi 0, %s23
      %s24 = sphi 0, %s21
      %s25 = sphi 0, %s24
      %s41 = sphi 0, %s25
      %s45 = sphi 0, %s45
      %s47 = sphi 0, %s45
      %s48 = sphi 0, %s47
      %s62 = sphi 0, %s48
      %s66 = sphi 0, %s66
      %s68 = sphi 0, %s66
      %s69 = sphi 0, %s68
      %s83 = sphi 0, %s69
      %s87 = sphi 0, %s87
      %s89 = sphi 0, %s87
      %s90 = sphi 0, %s89
      %s104 = sphi 0, %s90
      %s108 = sphi 0, %s108
      %s110 = sphi 0, %s108
      %s111 = sphi 0, %s110
      %s125 = sphi 0, %s111
      %s131 = sphi 0, %s133
      %s134 = sphi 0, %s131
      %s135 = sphi 0, %s134
      %s151 = sphi 0, %s135
    $region4: #{state_de_forward.9} parent=1 // loop_header_branch
      %14 = sbr.rel (%p12) target = $region8
    $region5: #{state_de_forward.9} parent=1 // loop_body
      %s16 = ssub.s32 %s11, 1
      %s17 = ssub.s32 %s11, 2
      %s18 = sadd.s32 %s11, 1
      %s19 = ssub.s32 %s11, %s18
      %p20 = scmp.eq.s32.totalorder %s19, 0
      %s22 = sadd.s32 %s21, 1
      %s23 = scalar_select %p20, %s21, %s22
      %p26 = pneg %p20
      %p27 = scmp.eq.s32.totalorder %s11, 1
      %p28 = por %p26, %p27
      %p29 = scmp.ne.s32.totalorder %s21, %s24
      %p30 = scmp.eq.s32.totalorder %s11, 0
      %p31 = por %p29, %p30
      %p32 = scmp.ne.s32.totalorder %s21, %s24
      %p33 = scmp.eq.s32.totalorder %s16, 1
      %p34 = por %p32, %p33
      %p35 = scmp.ne.s32.totalorder %s24, %s25
      %p36 = scmp.eq.s32.totalorder %s16, 0
      %p37 = por %p35, %p36
      %p38 = scmp.ne.s32.totalorder %s24, %s25
      %p39 = scmp.eq.s32.totalorder %s17, 1
      %p40 = por %p38, %p39
      %p42 = scmp.ne.s32.totalorder %s25, %s41
      %p43 = scmp.eq.s32.totalorder %s17, 0
      %p44 = por %p42, %p43
      %s46 = sadd.s32 %s45, 1
      %p49 = scmp.eq.s32.totalorder %s11, 1
      %p50 = scmp.ne.s32.totalorder %s45, %s47
      %p51 = scmp.eq.s32.totalorder %s11, 0
      %p52 = por %p50, %p51
      %p53 = scmp.ne.s32.totalorder %s45, %s47
      %p54 = scmp.eq.s32.totalorder %s16, 1
      %p55 = por %p53, %p54
      %p56 = scmp.ne.s32.totalorder %s47, %s48
      %p57 = scmp.eq.s32.totalorder %s16, 0
      %p58 = por %p56, %p57
      %p59 = scmp.ne.s32.totalorder %s47, %s48
      %p60 = scmp.eq.s32.totalorder %s17, 1
      %p61 = por %p59, %p60
      %p63 = scmp.ne.s32.totalorder %s48, %s62
      %p64 = scmp.eq.s32.totalorder %s17, 0
      %p65 = por %p63, %p64
      %s67 = sadd.s32 %s66, 1
      %p70 = scmp.eq.s32.totalorder %s11, 1
      %p71 = scmp.ne.s32.totalorder %s66, %s68
      %p72 = scmp.eq.s32.totalorder %s11, 0
      %p73 = por %p71, %p72
      %p74 = scmp.ne.s32.totalorder %s66, %s68
      %p75 = scmp.eq.s32.totalorder %s16, 1
      %p76 = por %p74, %p75
      %p77 = scmp.ne.s32.totalorder %s68, %s69
      %p78 = scmp.eq.s32.totalorder %s16, 0
      %p79 = por %p77, %p78
      %p80 = scmp.ne.s32.totalorder %s68, %s69
      %p81 = scmp.eq.s32.totalorder %s17, 1
      %p82 = por %p80, %p81
      %p84 = scmp.ne.s32.totalorder %s69, %s83
      %p85 = scmp.eq.s32.totalorder %s17, 0
      %p86 = por %p84, %p85
      %s88 = sadd.s32 %s87, 1
      %p91 = scmp.eq.s32.totalorder %s11, 1
      %p92 = scmp.ne.s32.totalorder %s87, %s89
      %p93 = scmp.eq.s32.totalorder %s11, 0
      %p94 = por %p92, %p93
      %p95 = scmp.ne.s32.totalorder %s87, %s89
      %p96 = scmp.eq.s32.totalorder %s16, 1
      %p97 = por %p95, %p96
      %p98 = scmp.ne.s32.totalorder %s89, %s90
      %p99 = scmp.eq.s32.totalorder %s16, 0
      %p100 = por %p98, %p99
      %p101 = scmp.ne.s32.totalorder %s89, %s90
      %p102 = scmp.eq.s32.totalorder %s17, 1
      %p103 = por %p101, %p102
      %p105 = scmp.ne.s32.totalorder %s90, %s104
      %p106 = scmp.eq.s32.totalorder %s17, 0
      %p107 = por %p105, %p106
      %s109 = sadd.s32 %s108, 1
      %p112 = scmp.eq.s32.totalorder %s11, 1
      %p113 = scmp.ne.s32.totalorder %s108, %s110
      %p114 = scmp.eq.s32.totalorder %s11, 0
      %p115 = por %p113, %p114
      %p116 = scmp.ne.s32.totalorder %s108, %s110
      %p117 = scmp.eq.s32.totalorder %s16, 1
      %p118 = por %p116, %p117
      %p119 = scmp.ne.s32.totalorder %s110, %s111
      %p120 = scmp.eq.s32.totalorder %s16, 0
      %p121 = por %p119, %p120
      %p122 = scmp.ne.s32.totalorder %s110, %s111
      %p123 = scmp.eq.s32.totalorder %s17, 1
      %p124 = por %p122, %p123
      %p126 = scmp.ne.s32.totalorder %s111, %s125
      %p127 = scmp.eq.s32.totalorder %s17, 0
      %p128 = por %p126, %p127
      %s129 = ssub.s32 %s11, %s18
      %p130 = scmp.eq.s32.totalorder %s129, 0
      %s132 = sadd.s32 %s131, 1
      %s133 = scalar_select %p130, %s131, %s132
      %p136 = pneg %p130
      %p137 = scmp.eq.s32.totalorder %s11, 1
      %p138 = por %p136, %p137
      %p139 = scmp.ne.s32.totalorder %s131, %s134
      %p140 = scmp.eq.s32.totalorder %s11, 0
      %p141 = por %p139, %p140
      %p142 = scmp.ne.s32.totalorder %s131, %s134
      %p143 = scmp.eq.s32.totalorder %s16, 1
      %p144 = por %p142, %p143
      %p145 = scmp.ne.s32.totalorder %s134, %s135
      %p146 = scmp.eq.s32.totalorder %s16, 0
      %p147 = por %p145, %p146
      %p148 = scmp.ne.s32.totalorder %s134, %s135
      %p149 = scmp.eq.s32.totalorder %s17, 1
      %p150 = por %p148, %p149
      %p152 = scmp.ne.s32.totalorder %s135, %s151
      %p153 = scmp.eq.s32.totalorder %s17, 0
      %p154 = por %p152, %p153
      %p155 = scmp.le.s32.totalorder 1, %s11
      %p156 = scmp.lt.s32.totalorder %s11, 3
      %p157 = pnand %p155, %p156
      %p158 = pneg %p157
      // Predicated region
      $region9: #{state_de_forward.9} parent=5 // pred_check
        _
      $region10: #{state_de_forward.9} parent=5 // pred_check_branch
        %160 = sbr.rel (%p157) target = $region12
      $region11: #{state_de_forward.9} parent=5 // pred_region
        %s161 = ssub.s32 %s11, 1
        // Predicated region
        $region13: #{state_de_forward.9} parent=11 // pred_check
          %p162 = pneg %p58
        $region14: #{state_de_forward.9} parent=11 // pred_check_branch
          %164 = sbr.rel (%p162) target = $region16
        $region15: #{state_de_forward.9} parent=11 // pred_region
          _
        $region16: #{state_de_forward.9} parent=11 // pred_fallthru
          _
        // Predicated region
        $region17: #{state_de_forward.9} parent=11 // pred_check
          %p165 = pneg %p79
        $region18: #{state_de_forward.9} parent=11 // pred_check_branch
          %167 = sbr.rel (%p165) target = $region20
        $region19: #{state_de_forward.9} parent=11 // pred_region
          _
        $region20: #{state_de_forward.9} parent=11 // pred_fallthru
          _
        // Predicated region
        $region21: #{state_de_forward.9} parent=11 // pred_check
          %p168 = pneg %p100
        $region22: #{state_de_forward.9} parent=11 // pred_check_branch
          %170 = sbr.rel (%p168) target = $region24
        $region23: #{state_de_forward.9} parent=11 // pred_region
          _
        $region24: #{state_de_forward.9} parent=11 // pred_fallthru
          _
        // Predicated region
        $region25: #{state_de_forward.9} parent=11 // pred_check
          %p171 = pneg %p121
        $region26: #{state_de_forward.9} parent=11 // pred_check_branch
          %173 = sbr.rel (%p171) target = $region28
        $region27: #{state_de_forward.9} parent=11 // pred_region
          _
        $region28: #{state_de_forward.9} parent=11 // pred_fallthru
          _
      $region12: #{state_de_forward.9} parent=5 // pred_fallthru
        _
      %p174 = scmp.lt.s32.totalorder %s11, 2
      // Predicated region
      $region29: #{state_de_forward.9} parent=5 // pred_check
        %p175 = pneg %p174
      $region30: #{state_de_forward.9} parent=5 // pred_check_branch
        %177 = sbr.rel (%p175) target = $region32
      $region31: #{state_de_forward.9} parent=5 // pred_region
        // Predicated region
        $region33: #{state_de_forward.9} parent=31 // pred_check
          %p178 = pneg %p31
        $region34: #{state_de_forward.9} parent=31 // pred_check_branch
          %180 = sbr.rel (%p178) target = $region36
        $region35: #{state_de_forward.9} parent=31 // pred_region
          %s181 = sand.u32 %s21, 1
          %s182 = sand.u32 %s21, 1
          %s183 = smul.addr %s182, 16
          %s184 = scalar_lea.vmem [#allocation2], %s183
          %s185 = smul.addr %s11, 8
          %s186 = scalar_lea.vmem %s0, %s185
          // Predicated region
          $region37: #{state_de_forward.9} parent=35 // pred_check
            _
          $region38: #{state_de_forward.9} parent=35 // pred_check_branch
            %188 = sbr.rel (0) target = $region40
          $region39: #{state_de_forward.9} parent=35 // pred_region
            // Predicated region
            $region41: #{state_de_forward.9} parent=39 // pred_check
              _
            $region42: #{state_de_forward.9} parent=39 // pred_check_branch
              %190 = sbr.rel (0) target = $region44
            $region43: #{state_de_forward.9} parent=39 // pred_region
              // Predicated region
              $region56: #{state_de_forward.9} parent=43 // pred_check
                _
              $region57: #{state_de_forward.9} parent=43 // pred_check_branch
                %207 = sbr.rel (0) target = $region59
              $region58: #{state_de_forward.9} parent=43 // pred_region
                loop: start=0, step=1, limit=1
                $region60: #{state_de_forward.9} parent=58 // loop_pre_header
                  _
                $region61: #{state_de_forward.9} parent=58 // loop_header
                  %s209 = sphi 0, %s213
                  %p210 = scmp.ge.s32.totalorder %s209, 1
                  %s214 = sphi %s186, %s186
                  %s215 = sphi %s184, %s184
                $region62: #{state_de_forward.9} parent=58 // loop_header_branch
                  %212 = sbr.rel (%p210) target = $region66
                $region63: #{state_de_forward.9} parent=58 // loop_body
                  %v216 = vld [vmem:[%s214] sm:$0xff]
                  %217 = vst [vmem:[%s215] sm:$0xff] %v216
                  %v218 = vld [vmem:[%s214 + $0x10] sm:$0xff]
                  %219 = vst [vmem:[%s215 + $0x8] sm:$0xff] %v218
                $region64: #{state_de_forward.9} parent=58 // loop_footer
                  %s213 = sadd.s32 1, %s209
                $region65: #{state_de_forward.9} parent=58 // loop_footer_branch
                  %208 = sbr.rel target = $region61
                $region66: #{state_de_forward.9} parent=58 // loop_exit
                  _
              $region59: #{state_de_forward.9} parent=43 // pred_fallthru
                _
              // Predicated region
              $region67: #{state_de_forward.9} parent=43 // pred_check
                _
              $region68: #{state_de_forward.9} parent=43 // pred_check_branch
                %221 = sbr.rel target = $region70
              $region69: #{state_de_forward.9} parent=43 // pred_region
                _
              $region70: #{state_de_forward.9} parent=43 // pred_fallthru
                _
            $region44: #{state_de_forward.9} parent=39 // pred_fallthru
              _
            // Predicated region
            $region45: #{state_de_forward.9} parent=39 // pred_check
              _
            $region46: #{state_de_forward.9} parent=39 // pred_check_branch
              %192 = sbr.rel target = $region48
            $region47: #{state_de_forward.9} parent=39 // pred_region
              loop: start=0, step=1, limit=1
              $region49: #{state_de_forward.9} parent=47 // loop_pre_header
                _
              $region50: #{state_de_forward.9} parent=47 // loop_header
                %s195 = sphi 0, %s199
                %p196 = scmp.ge.s32.totalorder %s195, 1
                %s200 = sphi %s186, %s186
                %s201 = sphi %s184, %s184
              $region51: #{state_de_forward.9} parent=47 // loop_header_branch
                %198 = sbr.rel (%p196) target = $region55
              $region52: #{state_de_forward.9} parent=47 // loop_body
                %v202 = vld [vmem:[%s200] sm:$0xff]
                %203 = vst [vmem:[%s201] sm:$0xff] %v202
                %v204 = vld [vmem:[%s200 + $0x10] sm:$0xff]
                %205 = vst [vmem:[%s201 + $0x8] sm:$0xff] %v204
              $region53: #{state_de_forward.9} parent=47 // loop_footer
                %s199 = sadd.s32 1, %s195
              $region54: #{state_de_forward.9} parent=47 // loop_footer_branch
                %194 = sbr.rel target = $region50
              $region55: #{state_de_forward.9} parent=47 // loop_exit
                _
            $region48: #{state_de_forward.9} parent=39 // pred_fallthru
              _
          $region40: #{state_de_forward.9} parent=35 // pred_fallthru
            _
          %222 = vnop
        $region36: #{state_de_forward.9} parent=31 // pred_fallthru
          _
      $region32: #{state_de_forward.9} parent=5 // pred_fallthru
        _
      %p223 = scmp.le.s32.totalorder 1, %s11
      %p224 = scmp.lt.s32.totalorder %s11, 3
      %p225 = pnand %p223, %p224
      %p226 = pneg %p225
      // Predicated region
      $region71: #{state_de_forward.9} parent=5 // pred_check
        _
      $region72: #{state_de_forward.9} parent=5 // pred_check_branch
        %228 = sbr.rel (%p225) target = $region74
      $region73: #{state_de_forward.9} parent=5 // pred_region
        %s229 = ssub.s32 %s11, 1
        %s230 = sand.u32 %s24, 1
        %s231 = sand.u32 %s24, 1
        %s232 = smul.addr %s231, 16
        %s233 = scalar_lea.vmem [#allocation2], %s232
        // Predicated region
        $region75: #{state_de_forward.9} parent=73 // pred_check
          %p234 = pneg %p37
        $region76: #{state_de_forward.9} parent=73 // pred_check_branch
          %236 = sbr.rel (%p234) target = $region78
        $region77: #{state_de_forward.9} parent=73 // pred_region
          _
        $region78: #{state_de_forward.9} parent=73 // pred_fallthru
          _
        %s237 = sand.u32 %s24, 1
        %s238 = sand.u32 %s24, 1
        %s239 = smul.addr %s238, 16
        %s240 = scalar_lea.vmem [#allocation2], %s239
        %p241 = pneg %p37
        %p242 = pneg %p34
        %p243 = pneg %p58
        %p244 = pneg %p55
        %p245 = pneg %p79
        %p246 = pneg %p76
        %p247 = pneg %p100
        %p248 = pneg %p97
        %p249 = pneg %p121
        %p250 = pneg %p118
        %p251 = pneg %p147
        %p252 = pneg %p144
        %s253 = sand.u32 %s134, 1
        %s254 = sand.u32 %s134, 1
        %s255 = smul.addr %s254, 16
        %s256 = scalar_lea.vmem [#allocation3], %s255
        %v257 = vld [vmem:[%s1] sm:$0xff]
        %v258 = vld [vmem:[%s1 + $0x8] sm:$0xff]
        %v259 = vld [vmem:[%s1 + $0x10] sm:$0xff]
        %v260 = vld [vmem:[%s1 + $0x18] sm:$0xff]
        %v261 = vld [vmem:[%s1 + $0x20] sm:$0xff]
        %v262 = vld [vmem:[%s1 + $0x28] sm:$0xff]
        %v263 = vld [vmem:[%s1 + $0x30] sm:$0xff]
        %v264 = vld [vmem:[%s1 + $0x38] sm:$0xff]
        %v265 = vld [vmem:[%s1 + $0x40] sm:$0xff]
        %v266 = vld [vmem:[%s1 + $0x48] sm:$0xff]
        %v267 = vld [vmem:[%s1 + $0x50] sm:$0xff]
        %v268 = vld [vmem:[%s1 + $0x58] sm:$0xff]
        %v269 = vld [vmem:[%s1 + $0x60] sm:$0xff]
        %v270 = vld [vmem:[%s1 + $0x68] sm:$0xff]
        %v271 = vld [vmem:[%s1 + $0x70] sm:$0xff]
        %v272 = vld [vmem:[%s1 + $0x78] sm:$0xff]
        %v273 = vld [vmem:[%s2] sm:$0xff]
        %v274 = vld [vmem:[%s2 + $0x8] sm:$0xff]
        %v275 = vld [vmem:[%s2 + $0x10] sm:$0xff]
        %v276 = vld [vmem:[%s2 + $0x18] sm:$0xff]
        %v277 = vld [vmem:[%s2 + $0x20] sm:$0xff]
        %v278 = vld [vmem:[%s2 + $0x28] sm:$0xff]
        %v279 = vld [vmem:[%s2 + $0x30] sm:$0xff]
        %v280 = vld [vmem:[%s2 + $0x38] sm:$0xff]
        %v281 = vld [vmem:[%s2 + $0x40] sm:$0xff]
        %v282 = vld [vmem:[%s2 + $0x48] sm:$0xff]
        %v283 = vld [vmem:[%s2 + $0x50] sm:$0xff]
        %v284 = vld [vmem:[%s2 + $0x58] sm:$0xff]
        %v285 = vld [vmem:[%s2 + $0x60] sm:$0xff]
        %v286 = vld [vmem:[%s2 + $0x68] sm:$0xff]
        %v287 = vld [vmem:[%s2 + $0x70] sm:$0xff]
        %v288 = vld [vmem:[%s2 + $0x78] sm:$0xff]
        %v289 = vld [vmem:[%s3] sm:$0x1f]
        %v290 = vld [vmem:[%s4] sm:$0x1f]
        %v291 = vld [vmem:[%s233] sm:$0xff]
        %293 = vset.pattern.permute.xlu0 0
        %294 = vperm.xlu0 %293, %v273
        %v295 = vpop.permute.xlu0 %294
        %298 = vset.pattern.permute.xlu0 0
        %299 = vperm.xlu0 %298, %v274
        %v300 = vpop.permute.xlu0 %299
        %303 = vset.pattern.permute.xlu0 0
        %304 = vperm.xlu0 %303, %v275
        %v305 = vpop.permute.xlu0 %304
        %308 = vset.pattern.permute.xlu0 0
        %309 = vperm.xlu0 %308, %v276
        %v310 = vpop.permute.xlu0 %309
        %313 = vset.pattern.permute.xlu0 0
        %314 = vperm.xlu0 %313, %v277
        %v315 = vpop.permute.xlu0 %314
        %318 = vset.pattern.permute.xlu0 0
        %319 = vperm.xlu0 %318, %v278
        %v320 = vpop.permute.xlu0 %319
        %323 = vset.pattern.permute.xlu0 0
        %324 = vperm.xlu0 %323, %v279
        %v325 = vpop.permute.xlu0 %324
        %328 = vset.pattern.permute.xlu0 0
        %329 = vperm.xlu0 %328, %v280
        %v330 = vpop.permute.xlu0 %329
        %333 = vset.pattern.permute.xlu0 0
        %334 = vperm.xlu0 %333, %v281
        %v335 = vpop.permute.xlu0 %334
        %338 = vset.pattern.permute.xlu0 0
        %339 = vperm.xlu0 %338, %v282
        %v340 = vpop.permute.xlu0 %339
        %343 = vset.pattern.permute.xlu0 0
        %344 = vperm.xlu0 %343, %v283
        %v345 = vpop.permute.xlu0 %344
        %348 = vset.pattern.permute.xlu0 0
        %349 = vperm.xlu0 %348, %v284
        %v350 = vpop.permute.xlu0 %349
        %353 = vset.pattern.permute.xlu0 0
        %354 = vperm.xlu0 %353, %v285
        %v355 = vpop.permute.xlu0 %354
        %358 = vset.pattern.permute.xlu0 0
        %359 = vperm.xlu0 %358, %v286
        %v360 = vpop.permute.xlu0 %359
        %363 = vset.pattern.permute.xlu0 0
        %364 = vperm.xlu0 %363, %v287
        %v365 = vpop.permute.xlu0 %364
        %368 = vset.pattern.permute.xlu0 0
        %369 = vperm.xlu0 %368, %v288
        %v370 = vpop.permute.xlu0 %369
        %vm372 = vcmask 64512
        %v374 = vsel %vm372, %v257, 0
        %v377 = vsel %vm372, %v258, 0
        %v380 = vsel %vm372, %v259, 0
        %v383 = vsel %vm372, %v260, 0
        %v386 = vsel %vm372, %v261, 0
        %v389 = vsel %vm372, %v262, 0
        %v392 = vsel %vm372, %v263, 0
        %v395 = vsel %vm372, %v264, 0
        %v398 = vsel %vm372, %v265, 0
        %v401 = vsel %vm372, %v266, 0
        %v404 = vsel %vm372, %v267, 0
        %v407 = vsel %vm372, %v268, 0
        %v410 = vsel %vm372, %v269, 0
        %v413 = vsel %vm372, %v270, 0
        %v416 = vsel %vm372, %v271, 0
        %v419 = vsel %vm372, %v272, 0
        %421 = vmatprep.subr.mxu0 0.0
        %422 = vmatpush1.msra.mxu0 %v291
        %423 = vmatprep.subr.mxu0 0.0
        %424 = vmatpush1.msra.mxu0 0.0
        %425 = vmatprep.subr.mxu0 0.0
        %426 = vmatpush1.msra.mxu0 0.0
        %427 = vmatprep.subr.mxu0 0.0
        %428 = vmatpush1.msra.mxu0 0.0
        %429 = vmatprep.subr.mxu0 0.0
        %430 = vmatpush1.msra.mxu0 0.0
        %431 = vmatprep.subr.mxu0 0.0
        %432 = vmatpush1.msra.mxu0 0.0
        %433 = vmatprep.subr.mxu0 0.0
        %434 = vmatpush1.msra.mxu0 0.0
        %435 = vmatprep.subr.mxu0 0.0
        %436 = vmatpush1.msra.mxu0 0.0
        %437 = vmatprep.subr.mxu0 0.0
        %438 = vmatpush1.msra.mxu0 0.0
        %439 = vmatprep.subr.mxu0 0.0
        %440 = vmatpush1.msra.mxu0 0.0
        %441 = vmatprep.subr.mxu0 0.0
        %442 = vmatpush1.msra.mxu0 0.0
        %443 = vmatprep.subr.mxu0 0.0
        %444 = vmatpush1.msra.mxu0 0.0
        %445 = vmatprep.subr.mxu0 0.0
        %446 = vmatpush1.msra.mxu0 0.0
        %447 = vmatprep.subr.mxu0 0.0
        %448 = vmatpush1.msra.mxu0 0.0
        %449 = vmatprep.subr.mxu0 0.0
        %450 = vmatpush1.msra.mxu0 0.0
        %451 = vmatprep.subr.mxu0 0.0
        %452 = vmatpush1.msra.mxu0 0.0
        %453 = vmatprep.subr.mxu0 0.0
        %454 = vmatpush1.msra.mxu0 0.0
        %455 = vmatprep.subr.mxu0 0.0
        %456 = vmatpush1.msra.mxu0 0.0
        %457 = vmatprep.subr.mxu0 0.0
        %458 = vmatpush1.msra.mxu0 0.0
        %459 = vmatprep.subr.mxu0 0.0
        %460 = vmatpush1.msra.mxu0 0.0
        %461 = vmatprep.subr.mxu0 0.0
        %462 = vmatpush1.msra.mxu0 0.0
        %463 = vmatprep.subr.mxu0 0.0
        %464 = vmatpush1.msra.mxu0 0.0
        %465 = vmatprep.subr.mxu0 0.0
        %466 = vmatpush1.msra.mxu0 0.0
        %467 = vmatprep.subr.mxu0 0.0
        %468 = vmatpush1.msra.mxu0 0.0
        %469 = vmatprep.subr.mxu0 0.0
        %470 = vmatpush1.msra.mxu0 0.0
        %471 = vmatprep.subr.mxu0 0.0
        %472 = vmatpush1.msra.mxu0 0.0
        %473 = vmatprep.subr.mxu0 0.0
        %474 = vmatpush1.msra.mxu0 0.0
        %475 = vmatprep.subr.mxu0 0.0
        %476 = vmatpush1.msra.mxu0 0.0
        %477 = vmatprep.subr.mxu0 0.0
        %478 = vmatpush1.msra.mxu0 0.0
        %479 = vmatprep.subr.mxu0 0.0
        %480 = vmatpush1.msra.mxu0 0.0
        %481 = vmatprep.subr.mxu0 0.0
        %482 = vmatpush1.msra.mxu0 0.0
        %483 = vmatprep.subr.mxu0 0.0
        %484 = vmatpush1.msra.mxu0 0.0
        %485 = vmatprep.mubr.f32.mxu0 0.0
        %486 = vmatmul.mubr.f32.gmra.mrb[0].mxu0 %v374
        %v487 = vpop.f32.mrb[0].mxu0
        %v488 = vadd.f32 %v295, %v487
        %v489 = vpop.f32.mrb[0].mxu0
        %490 = vmatprep.mubr.f32.mxu0 0.0
        %491 = vmatmul.mubr.f32.gmra.mrb[0].mxu0 %v377
        %v492 = vpop.f32.mrb[0].mxu0
        %v493 = vadd.f32 %v300, %v492
        %v494 = vpop.f32.mrb[0].mxu0
        %495 = vmatprep.mubr.f32.mxu0 0.0
        %496 = vmatmul.mubr.f32.gmra.mrb[0].mxu0 %v380
        %v497 = vpop.f32.mrb[0].mxu0
        %v498 = vadd.f32 %v305, %v497
        %v499 = vpop.f32.mrb[0].mxu0
        %500 = vmatprep.mubr.f32.mxu0 0.0
        %501 = vmatmul.mubr.f32.gmra.mrb[0].mxu0 %v383
        %v502 = vpop.f32.mrb[0].mxu0
        %v503 = vadd.f32 %v310, %v502
        %v504 = vpop.f32.mrb[0].mxu0
        %505 = vmatprep.mubr.f32.mxu0 0.0
        %506 = vmatmul.mubr.f32.gmra.mrb[0].mxu0 %v386
        %v507 = vpop.f32.mrb[0].mxu0
        %v508 = vadd.f32 %v315, %v507
        %v509 = vpop.f32.mrb[0].mxu0
        %510 = vmatprep.mubr.f32.mxu0 0.0
        %511 = vmatmul.mubr.f32.gmra.mrb[0].mxu0 %v389
        %v512 = vpop.f32.mrb[0].mxu0
        %v513 = vadd.f32 %v320, %v512
        %v514 = vpop.f32.mrb[0].mxu0
        %515 = vmatprep.mubr.f32.mxu0 0.0
        %516 = vmatmul.mubr.f32.gmra.mrb[0].mxu0 %v392
        %v517 = vpop.f32.mrb[0].mxu0
        %v518 = vadd.f32 %v325, %v517
        %v519 = vpop.f32.mrb[0].mxu0
        %520 = vmatprep.mubr.f32.mxu0 0.0
        %521 = vmatmul.mubr.f32.gmra.mrb[0].mxu0 %v395
        %v522 = vpop.f32.mrb[0].mxu0
        %v523 = vadd.f32 %v330, %v522
        %v524 = vpop.f32.mrb[0].mxu0
        %525 = vmatprep.mubr.f32.mxu0 0.0
        %526 = vmatmul.mubr.f32.gmra.mrb[0].mxu0 %v398
        %v527 = vpop.f32.mrb[0].mxu0
        %v528 = vadd.f32 %v335, %v527
        %v529 = vpop.f32.mrb[0].mxu0
        %530 = vmatprep.mubr.f32.mxu0 0.0
        %531 = vmatmul.mubr.f32.gmra.mrb[0].mxu0 %v401
        %v532 = vpop.f32.mrb[0].mxu0
        %v533 = vadd.f32 %v340, %v532
        %v534 = vpop.f32.mrb[0].mxu0
        %535 = vmatprep.mubr.f32.mxu0 0.0
        %536 = vmatmul.mubr.f32.gmra.mrb[0].mxu0 %v404
        %v537 = vpop.f32.mrb[0].mxu0
        %v538 = vadd.f32 %v345, %v537
        %v539 = vpop.f32.mrb[0].mxu0
        %540 = vmatprep.mubr.f32.mxu0 0.0
        %541 = vmatmul.mubr.f32.gmra.mrb[0].mxu0 %v407
        %v542 = vpop.f32.mrb[0].mxu0
        %v543 = vadd.f32 %v350, %v542
        %v544 = vpop.f32.mrb[0].mxu0
        %545 = vmatprep.mubr.f32.mxu0 0.0
        %546 = vmatmul.mubr.f32.gmra.mrb[0].mxu0 %v410
        %v547 = vpop.f32.mrb[0].mxu0
        %v548 = vadd.f32 %v355, %v547
        %v549 = vpop.f32.mrb[0].mxu0
        %550 = vmatprep.mubr.f32.mxu0 0.0
        %551 = vmatmul.mubr.f32.gmra.mrb[0].mxu0 %v413
        %v552 = vpop.f32.mrb[0].mxu0
        %v553 = vadd.f32 %v360, %v552
        %v554 = vpop.f32.mrb[0].mxu0
        %555 = vmatprep.mubr.f32.mxu0 0.0
        %556 = vmatmul.mubr.f32.gmra.mrb[0].mxu0 %v416
        %v557 = vpop.f32.mrb[0].mxu0
        %v558 = vadd.f32 %v365, %v557
        %v559 = vpop.f32.mrb[0].mxu0
        %560 = vmatprep.mubr.f32.mxu0 0.0
        %561 = vmatmul.mubr.f32.gmra.mrb[0].mxu0 %v419
        %v562 = vpop.f32.mrb[0].mxu0
        %v563 = vadd.f32 %v370, %v562
        %v564 = vpop.f32.mrb[0].mxu0
        %565 = vdwg.mxu0
        %v566 = vmul.f32 %v488, 0.5
        %v567 = vmul.f32 %v493, 0.5
        %v568 = vmul.f32 %v498, 0.5
        %v569 = vmul.f32 %v503, 0.5
        %v570 = vmul.f32 %v508, 0.5
        %v571 = vmul.f32 %v513, 0.5
        %v572 = vmul.f32 %v518, 0.5
        %v573 = vmul.f32 %v523, 0.5
        %v574 = vmul.f32 %v528, 0.5
        %v575 = vmul.f32 %v533, 0.5
        %v576 = vmul.f32 %v538, 0.5
        %v577 = vmul.f32 %v543, 0.5
        %v578 = vmul.f32 %v548, 0.5
        %v579 = vmul.f32 %v553, 0.5
        %v580 = vmul.f32 %v558, 0.5
        %v581 = vmul.f32 %v563, 0.5
        %v582 = vmul.f32 %v488, 0.70710677
        %v583 = vmul.f32 %v493, 0.70710677
        %v584 = vmul.f32 %v498, 0.70710677
        %v585 = vmul.f32 %v503, 0.70710677
        %v586 = vmul.f32 %v508, 0.70710677
        %v587 = vmul.f32 %v513, 0.70710677
        %v588 = vmul.f32 %v518, 0.70710677
        %v589 = vmul.f32 %v523, 0.70710677
        %v590 = vmul.f32 %v528, 0.70710677
        %v591 = vmul.f32 %v533, 0.70710677
        %v592 = vmul.f32 %v538, 0.70710677
        %v593 = vmul.f32 %v543, 0.70710677
        %v594 = vmul.f32 %v548, 0.70710677
        %v595 = vmul.f32 %v553, 0.70710677
        %v596 = vmul.f32 %v558, 0.70710677
        %v597 = vmul.f32 %v563, 0.70710677
        %v598 = vmax.f32 %v582, -3.832507
        %v599 = vmax.f32 %v583, -3.832507
        %v600 = vmax.f32 %v584, -3.832507
        %v601 = vmax.f32 %v585, -3.832507
        %v602 = vmax.f32 %v586, -3.832507
        %v603 = vmax.f32 %v587, -3.832507
        %v604 = vmax.f32 %v588, -3.832507
        %v605 = vmax.f32 %v589, -3.832507
        %v606 = vmax.f32 %v590, -3.832507
        %v607 = vmax.f32 %v591, -3.832507
        %v608 = vmax.f32 %v592, -3.832507
        %v609 = vmax.f32 %v593, -3.832507
        %v610 = vmax.f32 %v594, -3.832507
        %v611 = vmax.f32 %v595, -3.832507
        %v612 = vmax.f32 %v596, -3.832507
        %v613 = vmax.f32 %v597, -3.832507
        %v614 = vmin.f32 %v598, 3.832507
        %v615 = vmin.f32 %v599, 3.832507
        %v616 = vmin.f32 %v600, 3.832507
        %v617 = vmin.f32 %v601, 3.832507
        %v618 = vmin.f32 %v602, 3.832507
        %v619 = vmin.f32 %v603, 3.832507
        %v620 = vmin.f32 %v604, 3.832507
        %v621 = vmin.f32 %v605, 3.832507
        %v622 = vmin.f32 %v606, 3.832507
        %v623 = vmin.f32 %v607, 3.832507
        %v624 = vmin.f32 %v608, 3.832507
        %v625 = vmin.f32 %v609, 3.832507
        %v626 = vmin.f32 %v610, 3.832507
        %v627 = vmin.f32 %v611, 3.832507
        %v628 = vmin.f32 %v612, 3.832507
        %v629 = vmin.f32 %v613, 3.832507
        %v630 = vmul.f32 %v614, %v614
        %v631 = vmul.f32 %v615, %v615
        %v632 = vmul.f32 %v616, %v616
        %v633 = vmul.f32 %v617, %v617
        %v634 = vmul.f32 %v618, %v618
        %v635 = vmul.f32 %v619, %v619
        %v636 = vmul.f32 %v620, %v620
        %v637 = vmul.f32 %v621, %v621
        %v638 = vmul.f32 %v622, %v622
        %v639 = vmul.f32 %v623, %v623
        %v640 = vmul.f32 %v624, %v624
        %v641 = vmul.f32 %v625, %v625
        %v642 = vmul.f32 %v626, %v626
        %v643 = vmul.f32 %v627, %v627
        %v644 = vmul.f32 %v628, %v628
        %v645 = vmul.f32 %v629, %v629
        %v646 = vmul.f32 %v630, 0.00022905065
        %v647 = vmul.f32 %v631, 0.00022905065
        %v648 = vmul.f32 %v632, 0.00022905065
        %v649 = vmul.f32 %v633, 0.00022905065
        %v650 = vmul.f32 %v634, 0.00022905065
        %v651 = vmul.f32 %v635, 0.00022905065
        %v652 = vmul.f32 %v636, 0.00022905065
        %v653 = vmul.f32 %v637, 0.00022905065
        %v654 = vmul.f32 %v638, 0.00022905065
        %v655 = vmul.f32 %v639, 0.00022905065
        %v656 = vmul.f32 %v640, 0.00022905065
        %v657 = vmul.f32 %v641, 0.00022905065
        %v658 = vmul.f32 %v642, 0.00022905065
        %v659 = vmul.f32 %v643, 0.00022905065
        %v660 = vmul.f32 %v644, 0.00022905065
        %v661 = vmul.f32 %v645, 0.00022905065
        %v662 = vadd.f32 %v646, 0.003408291
        %v663 = vadd.f32 %v647, 0.003408291
        %v664 = vadd.f32 %v648, 0.003408291
        %v665 = vadd.f32 %v649, 0.003408291
        %v666 = vadd.f32 %v650, 0.003408291
        %v667 = vadd.f32 %v651, 0.003408291
        %v668 = vadd.f32 %v652, 0.003408291
        %v669 = vadd.f32 %v653, 0.003408291
        %v670 = vadd.f32 %v654, 0.003408291
        %v671 = vadd.f32 %v655, 0.003408291
        %v672 = vadd.f32 %v656, 0.003408291
        %v673 = vadd.f32 %v657, 0.003408291
        %v674 = vadd.f32 %v658, 0.003408291
        %v675 = vadd.f32 %v659, 0.003408291
        %v676 = vadd.f32 %v660, 0.003408291
        %v677 = vadd.f32 %v661, 0.003408291
        %v678 = vmul.f32 %v662, %v630
        %v679 = vmul.f32 %v663, %v631
        %v680 = vmul.f32 %v664, %v632
        %v681 = vmul.f32 %v665, %v633
        %v682 = vmul.f32 %v666, %v634
        %v683 = vmul.f32 %v667, %v635
        %v684 = vmul.f32 %v668, %v636
        %v685 = vmul.f32 %v669, %v637
        %v686 = vmul.f32 %v670, %v638
        %v687 = vmul.f32 %v671, %v639
        %v688 = vmul.f32 %v672, %v640
        %v689 = vmul.f32 %v673, %v641
        %v690 = vmul.f32 %v674, %v642
        %v691 = vmul.f32 %v675, %v643
        %v692 = vmul.f32 %v676, %v644
        %v693 = vmul.f32 %v677, %v645
        %v694 = vadd.f32 %v678, 0.050955694
        %v695 = vadd.f32 %v679, 0.050955694
        %v696 = vadd.f32 %v680, 0.050955694
        %v697 = vadd.f32 %v681, 0.050955694
        %v698 = vadd.f32 %v682, 0.050955694
        %v699 = vadd.f32 %v683, 0.050955694
        %v700 = vadd.f32 %v684, 0.050955694
        %v701 = vadd.f32 %v685, 0.050955694
        %v702 = vadd.f32 %v686, 0.050955694
        %v703 = vadd.f32 %v687, 0.050955694
        %v704 = vadd.f32 %v688, 0.050955694
        %v705 = vadd.f32 %v689, 0.050955694
        %v706 = vadd.f32 %v690, 0.050955694
        %v707 = vadd.f32 %v691, 0.050955694
        %v708 = vadd.f32 %v692, 0.050955694
        %v709 = vadd.f32 %v693, 0.050955694
        %v710 = vmul.f32 %v694, %v630
        %v711 = vmul.f32 %v695, %v631
        %v712 = vmul.f32 %v696, %v632
        %v713 = vmul.f32 %v697, %v633
        %v714 = vmul.f32 %v698, %v634
        %v715 = vmul.f32 %v699, %v635
        %v716 = vmul.f32 %v700, %v636
        %v717 = vmul.f32 %v701, %v637
        %v718 = vmul.f32 %v702, %v638
        %v719 = vmul.f32 %v703, %v639
        %v720 = vmul.f32 %v704, %v640
        %v721 = vmul.f32 %v705, %v641
        %v722 = vmul.f32 %v706, %v642
        %v723 = vmul.f32 %v707, %v643
        %v724 = vmul.f32 %v708, %v644
        %v725 = vmul.f32 %v709, %v645
        %v726 = vadd.f32 %v710, 0.18520832
        %v727 = vadd.f32 %v711, 0.18520832
        %v728 = vadd.f32 %v712, 0.18520832
        %v729 = vadd.f32 %v713, 0.18520832
        %v730 = vadd.f32 %v714, 0.18520832
        %v731 = vadd.f32 %v715, 0.18520832
        %v732 = vadd.f32 %v716, 0.18520832
        %v733 = vadd.f32 %v717, 0.18520832
        %v734 = vadd.f32 %v718, 0.18520832
        %v735 = vadd.f32 %v719, 0.18520832
        %v736 = vadd.f32 %v720, 0.18520832
        %v737 = vadd.f32 %v721, 0.18520832
        %v738 = vadd.f32 %v722, 0.18520832
        %v739 = vadd.f32 %v723, 0.18520832
        %v740 = vadd.f32 %v724, 0.18520832
        %v741 = vadd.f32 %v725, 0.18520832
        %v742 = vmul.f32 %v726, %v630
        %v743 = vmul.f32 %v727, %v631
        %v744 = vmul.f32 %v728, %v632
        %v745 = vmul.f32 %v729, %v633
        %v746 = vmul.f32 %v730, %v634
        %v747 = vmul.f32 %v731, %v635
        %v748 = vmul.f32 %v732, %v636
        %v749 = vmul.f32 %v733, %v637
        %v750 = vmul.f32 %v734, %v638
        %v751 = vmul.f32 %v735, %v639
        %v752 = vmul.f32 %v736, %v640
        %v753 = vmul.f32 %v737, %v641
        %v754 = vmul.f32 %v738, %v642
        %v755 = vmul.f32 %v739, %v643
        %v756 = vmul.f32 %v740, %v644
        %v757 = vmul.f32 %v741, %v645
        %v758 = vadd.f32 %v742, 1.1283791
        %v759 = vadd.f32 %v743, 1.1283791
        %v760 = vadd.f32 %v744, 1.1283791
        %v761 = vadd.f32 %v745, 1.1283791
        %v762 = vadd.f32 %v746, 1.1283791
        %v763 = vadd.f32 %v747, 1.1283791
        %v764 = vadd.f32 %v748, 1.1283791
        %v765 = vadd.f32 %v749, 1.1283791
        %v766 = vadd.f32 %v750, 1.1283791
        %v767 = vadd.f32 %v751, 1.1283791
        %v768 = vadd.f32 %v752, 1.1283791
        %v769 = vadd.f32 %v753, 1.1283791
        %v770 = vadd.f32 %v754, 1.1283791
        %v771 = vadd.f32 %v755, 1.1283791
        %v772 = vadd.f32 %v756, 1.1283791
        %v773 = vadd.f32 %v757, 1.1283791
        %v774 = vmul.f32 %v614, %v758
        %v775 = vmul.f32 %v615, %v759
        %v776 = vmul.f32 %v616, %v760
        %v777 = vmul.f32 %v617, %v761
        %v778 = vmul.f32 %v618, %v762
        %v779 = vmul.f32 %v619, %v763
        %v780 = vmul.f32 %v620, %v764
        %v781 = vmul.f32 %v621, %v765
        %v782 = vmul.f32 %v622, %v766
        %v783 = vmul.f32 %v623, %v767
        %v784 = vmul.f32 %v624, %v768
        %v785 = vmul.f32 %v625, %v769
        %v786 = vmul.f32 %v626, %v770
        %v787 = vmul.f32 %v627, %v771
        %v788 = vmul.f32 %v628, %v772
        %v789 = vmul.f32 %v629, %v773
        %v790 = vmul.f32 %v630, -1.1791603e-07
        %v791 = vmul.f32 %v631, -1.1791603e-07
        %v792 = vmul.f32 %v632, -1.1791603e-07
        %v793 = vmul.f32 %v633, -1.1791603e-07
        %v794 = vmul.f32 %v634, -1.1791603e-07
        %v795 = vmul.f32 %v635, -1.1791603e-07
        %v796 = vmul.f32 %v636, -1.1791603e-07
        %v797 = vmul.f32 %v637, -1.1791603e-07
        %v798 = vmul.f32 %v638, -1.1791603e-07
        %v799 = vmul.f32 %v639, -1.1791603e-07
        %v800 = vmul.f32 %v640, -1.1791603e-07
        %v801 = vmul.f32 %v641, -1.1791603e-07
        %v802 = vmul.f32 %v642, -1.1791603e-07
        %v803 = vmul.f32 %v643, -1.1791603e-07
        %v804 = vmul.f32 %v644, -1.1791603e-07
        %v805 = vmul.f32 %v645, -1.1791603e-07
        %v806 = vadd.f32 %v790, 2.3547966e-05
        %v807 = vadd.f32 %v791, 2.3547966e-05
        %v808 = vadd.f32 %v792, 2.3547966e-05
        %v809 = vadd.f32 %v793, 2.3547966e-05
        %v810 = vadd.f32 %v794, 2.3547966e-05
        %v811 = vadd.f32 %v795, 2.3547966e-05
        %v812 = vadd.f32 %v796, 2.3547966e-05
        %v813 = vadd.f32 %v797, 2.3547966e-05
        %v814 = vadd.f32 %v798, 2.3547966e-05
        %v815 = vadd.f32 %v799, 2.3547966e-05
        %v816 = vadd.f32 %v800, 2.3547966e-05
        %v817 = vadd.f32 %v801, 2.3547966e-05
        %v818 = vadd.f32 %v802, 2.3547966e-05
        %v819 = vadd.f32 %v803, 2.3547966e-05
        %v820 = vadd.f32 %v804, 2.3547966e-05
        %v821 = vadd.f32 %v805, 2.3547966e-05
        %v822 = vmul.f32 %v806, %v630
        %v823 = vmul.f32 %v807, %v631
        %v824 = vmul.f32 %v808, %v632
        %v825 = vmul.f32 %v809, %v633
        %v826 = vmul.f32 %v810, %v634
        %v827 = vmul.f32 %v811, %v635
        %v828 = vmul.f32 %v812, %v636
        %v829 = vmul.f32 %v813, %v637
        %v830 = vmul.f32 %v814, %v638
        %v831 = vmul.f32 %v815, %v639
        %v832 = vmul.f32 %v816, %v640
        %v833 = vmul.f32 %v817, %v641
        %v834 = vmul.f32 %v818, %v642
        %v835 = vmul.f32 %v819, %v643
        %v836 = vmul.f32 %v820, %v644
        %v837 = vmul.f32 %v821, %v645
        %v838 = vadd.f32 %v822, 0.0010179626
        %v839 = vadd.f32 %v823, 0.0010179626
        %v840 = vadd.f32 %v824, 0.0010179626
        %v841 = vadd.f32 %v825, 0.0010179626
        %v842 = vadd.f32 %v826, 0.0010179626
        %v843 = vadd.f32 %v827, 0.0010179626
        %v844 = vadd.f32 %v828, 0.0010179626
        %v845 = vadd.f32 %v829, 0.0010179626
        %v846 = vadd.f32 %v830, 0.0010179626
        %v847 = vadd.f32 %v831, 0.0010179626
        %v848 = vadd.f32 %v832, 0.0010179626
        %v849 = vadd.f32 %v833, 0.0010179626
        %v850 = vadd.f32 %v834, 0.0010179626
        %v851 = vadd.f32 %v835, 0.0010179626
        %v852 = vadd.f32 %v836, 0.0010179626
        %v853 = vadd.f32 %v837, 0.0010179626
        %v854 = vmul.f32 %v838, %v630
        %v855 = vmul.f32 %v839, %v631
        %v856 = vmul.f32 %v840, %v632
        %v857 = vmul.f32 %v841, %v633
        %v858 = vmul.f32 %v842, %v634
        %v859 = vmul.f32 %v843, %v635
        %v860 = vmul.f32 %v844, %v636
        %v861 = vmul.f32 %v845, %v637
        %v862 = vmul.f32 %v846, %v638
        %v863 = vmul.f32 %v847, %v639
        %v864 = vmul.f32 %v848, %v640
        %v865 = vmul.f32 %v849, %v641
        %v866 = vmul.f32 %v850, %v642
        %v867 = vmul.f32 %v851, %v643
        %v868 = vmul.f32 %v852, %v644
        %v869 = vmul.f32 %v853, %v645
        %v870 = vadd.f32 %v854, 0.01407047
        %v871 = vadd.f32 %v855, 0.01407047
        %v872 = vadd.f32 %v856, 0.01407047
        %v873 = vadd.f32 %v857, 0.01407047
        %v874 = vadd.f32 %v858, 0.01407047
        %v875 = vadd.f32 %v859, 0.01407047
        %v876 = vadd.f32 %v860, 0.01407047
        %v877 = vadd.f32 %v861, 0.01407047
        %v878 = vadd.f32 %v862, 0.01407047
        %v879 = vadd.f32 %v863, 0.01407047
        %v880 = vadd.f32 %v864, 0.01407047
        %v881 = vadd.f32 %v865, 0.01407047
        %v882 = vadd.f32 %v866, 0.01407047
        %v883 = vadd.f32 %v867, 0.01407047
        %v884 = vadd.f32 %v868, 0.01407047
        %v885 = vadd.f32 %v869, 0.01407047
        %v886 = vmul.f32 %v870, %v630
        %v887 = vmul.f32 %v871, %v631
        %v888 = vmul.f32 %v872, %v632
        %v889 = vmul.f32 %v873, %v633
        %v890 = vmul.f32 %v874, %v634
        %v891 = vmul.f32 %v875, %v635
        %v892 = vmul.f32 %v876, %v636
        %v893 = vmul.f32 %v877, %v637
        %v894 = vmul.f32 %v878, %v638
        %v895 = vmul.f32 %v879, %v639
        %v896 = vmul.f32 %v880, %v640
        %v897 = vmul.f32 %v881, %v641
        %v898 = vmul.f32 %v882, %v642
        %v899 = vmul.f32 %v883, %v643
        %v900 = vmul.f32 %v884, %v644
        %v901 = vmul.f32 %v885, %v645
        %v902 = vadd.f32 %v886, 0.11098505
        %v903 = vadd.f32 %v887, 0.11098505
        %v904 = vadd.f32 %v888, 0.11098505
        %v905 = vadd.f32 %v889, 0.11098505
        %v906 = vadd.f32 %v890, 0.11098505
        %v907 = vadd.f32 %v891, 0.11098505
        %v908 = vadd.f32 %v892, 0.11098505
        %v909 = vadd.f32 %v893, 0.11098505
        %v910 = vadd.f32 %v894, 0.11098505
        %v911 = vadd.f32 %v895, 0.11098505
        %v912 = vadd.f32 %v896, 0.11098505
        %v913 = vadd.f32 %v897, 0.11098505
        %v914 = vadd.f32 %v898, 0.11098505
        %v915 = vadd.f32 %v899, 0.11098505
        %v916 = vadd.f32 %v900, 0.11098505
        %v917 = vadd.f32 %v901, 0.11098505
        %v918 = vmul.f32 %v902, %v630
        %v919 = vmul.f32 %v903, %v631
        %v920 = vmul.f32 %v904, %v632
        %v921 = vmul.f32 %v905, %v633
        %v922 = vmul.f32 %v906, %v634
        %v923 = vmul.f32 %v907, %v635
        %v924 = vmul.f32 %v908, %v636
        %v925 = vmul.f32 %v909, %v637
        %v926 = vmul.f32 %v910, %v638
        %v927 = vmul.f32 %v911, %v639
        %v928 = vmul.f32 %v912, %v640
        %v929 = vmul.f32 %v913, %v641
        %v930 = vmul.f32 %v914, %v642
        %v931 = vmul.f32 %v915, %v643
        %v932 = vmul.f32 %v916, %v644
        %v933 = vmul.f32 %v917, %v645
        %v934 = vadd.f32 %v918, 0.49746925
        %v935 = vadd.f32 %v919, 0.49746925
        %v936 = vadd.f32 %v920, 0.49746925
        %v937 = vadd.f32 %v921, 0.49746925
        %v938 = vadd.f32 %v922, 0.49746925
        %v939 = vadd.f32 %v923, 0.49746925
        %v940 = vadd.f32 %v924, 0.49746925
        %v941 = vadd.f32 %v925, 0.49746925
        %v942 = vadd.f32 %v926, 0.49746925
        %v943 = vadd.f32 %v927, 0.49746925
        %v944 = vadd.f32 %v928, 0.49746925
        %v945 = vadd.f32 %v929, 0.49746925
        %v946 = vadd.f32 %v930, 0.49746925
        %v947 = vadd.f32 %v931, 0.49746925
        %v948 = vadd.f32 %v932, 0.49746925
        %v949 = vadd.f32 %v933, 0.49746925
        %v950 = vmul.f32 %v934, %v630
        %v951 = vmul.f32 %v935, %v631
        %v952 = vmul.f32 %v936, %v632
        %v953 = vmul.f32 %v937, %v633
        %v954 = vmul.f32 %v938, %v634
        %v955 = vmul.f32 %v939, %v635
        %v956 = vmul.f32 %v940, %v636
        %v957 = vmul.f32 %v941, %v637
        %v958 = vmul.f32 %v942, %v638
        %v959 = vmul.f32 %v943, %v639
        %v960 = vmul.f32 %v944, %v640
        %v961 = vmul.f32 %v945, %v641
        %v962 = vmul.f32 %v946, %v642
        %v963 = vmul.f32 %v947, %v643
        %v964 = vmul.f32 %v948, %v644
        %v965 = vmul.f32 %v949, %v645
        %v966 = vadd.f32 %v950, 1.0
        %v967 = vadd.f32 %v951, 1.0
        %v968 = vadd.f32 %v952, 1.0
        %v969 = vadd.f32 %v953, 1.0
        %v970 = vadd.f32 %v954, 1.0
        %v971 = vadd.f32 %v955, 1.0
        %v972 = vadd.f32 %v956, 1.0
        %v973 = vadd.f32 %v957, 1.0
        %v974 = vadd.f32 %v958, 1.0
        %v975 = vadd.f32 %v959, 1.0
        %v976 = vadd.f32 %v960, 1.0
        %v977 = vadd.f32 %v961, 1.0
        %v978 = vadd.f32 %v962, 1.0
        %v979 = vadd.f32 %v963, 1.0
        %v980 = vadd.f32 %v964, 1.0
        %v981 = vadd.f32 %v965, 1.0
        %v982 = vrcp.pop %v966
        %v983 = vrcp.pop %v967
        %v984 = vrcp.pop %v968
        %v985 = vrcp.pop %v969
        %v986 = vrcp.pop %v970
        %v987 = vrcp.pop %v971
        %v988 = vrcp.pop %v972
        %v989 = vrcp.pop %v973
        %v990 = vrcp.pop %v974
        %v991 = vrcp.pop %v975
        %v992 = vrcp.pop %v976
        %v993 = vrcp.pop %v977
        %v994 = vrcp.pop %v978
        %v995 = vrcp.pop %v979
        %v996 = vrcp.pop %v980
        %v997 = vrcp.pop %v981
        %v998 = vmul.f32 %v774, %v982
        %v999 = vmul.f32 %v775, %v983
        %v1000 = vmul.f32 %v776, %v984
        %v1001 = vmul.f32 %v777, %v985
        %v1002 = vmul.f32 %v778, %v986
        %v1003 = vmul.f32 %v779, %v987
        %v1004 = vmul.f32 %v780, %v988
        %v1005 = vmul.f32 %v781, %v989
        %v1006 = vmul.f32 %v782, %v990
        %v1007 = vmul.f32 %v783, %v991
        %v1008 = vmul.f32 %v784, %v992
        %v1009 = vmul.f32 %v785, %v993
        %v1010 = vmul.f32 %v786, %v994
        %v1011 = vmul.f32 %v787, %v995
        %v1012 = vmul.f32 %v788, %v996
        %v1013 = vmul.f32 %v789, %v997
        %v1014 = vadd.f32 %v998, 1.0
        %v1015 = vadd.f32 %v999, 1.0
        %v1016 = vadd.f32 %v1000, 1.0
        %v1017 = vadd.f32 %v1001, 1.0
        %v1018 = vadd.f32 %v1002, 1.0
        %v1019 = vadd.f32 %v1003, 1.0
        %v1020 = vadd.f32 %v1004, 1.0
        %v1021 = vadd.f32 %v1005, 1.0
        %v1022 = vadd.f32 %v1006, 1.0
        %v1023 = vadd.f32 %v1007, 1.0
        %v1024 = vadd.f32 %v1008, 1.0
        %v1025 = vadd.f32 %v1009, 1.0
        %v1026 = vadd.f32 %v1010, 1.0
        %v1027 = vadd.f32 %v1011, 1.0
        %v1028 = vadd.f32 %v1012, 1.0
        %v1029 = vadd.f32 %v1013, 1.0
        %v1030 = vmul.f32 %v566, %v1014
        %v1031 = vmul.f32 %v567, %v1015
        %v1032 = vmul.f32 %v568, %v1016
        %v1033 = vmul.f32 %v569, %v1017
        %v1034 = vmul.f32 %v570, %v1018
        %v1035 = vmul.f32 %v571, %v1019
        %v1036 = vmul.f32 %v572, %v1020
        %v1037 = vmul.f32 %v573, %v1021
        %v1038 = vmul.f32 %v574, %v1022
        %v1039 = vmul.f32 %v575, %v1023
        %v1040 = vmul.f32 %v576, %v1024
        %v1041 = vmul.f32 %v577, %v1025
        %v1042 = vmul.f32 %v578, %v1026
        %v1043 = vmul.f32 %v579, %v1027
        %v1044 = vmul.f32 %v580, %v1028
        %v1045 = vmul.f32 %v581, %v1029
        %1047 = vset.pattern.permute.xlu0 0
        %1048 = vperm.xlu0 %1047, %v290
        %v1049 = vpop.permute.xlu0 %1048
        %1051 = vmatprep.subr.mxu0 0.0
        %1052 = vmatpush1.msra.mxu0 %v1030
        %1053 = vmatprep.subr.mxu0 0.0
        %1054 = vmatpush1.msra.mxu0 %v1031
        %1055 = vmatprep.subr.mxu0 0.0
        %1056 = vmatpush1.msra.mxu0 %v1032
        %1057 = vmatprep.subr.mxu0 0.0
        %1058 = vmatpush1.msra.mxu0 %v1033
        %1059 = vmatprep.subr.mxu0 0.0
        %1060 = vmatpush1.msra.mxu0 %v1034
        %1061 = vmatprep.subr.mxu0 0.0
        %1062 = vmatpush1.msra.mxu0 %v1035
        %1063 = vmatprep.subr.mxu0 0.0
        %1064 = vmatpush1.msra.mxu0 %v1036
        %1065 = vmatprep.subr.mxu0 0.0
        %1066 = vmatpush1.msra.mxu0 %v1037
        %1067 = vmatprep.subr.mxu0 0.0
        %1068 = vmatpush1.msra.mxu0 %v1038
        %1069 = vmatprep.subr.mxu0 0.0
        %1070 = vmatpush1.msra.mxu0 %v1039
        %1071 = vmatprep.subr.mxu0 0.0
        %1072 = vmatpush1.msra.mxu0 %v1040
        %1073 = vmatprep.subr.mxu0 0.0
        %1074 = vmatpush1.msra.mxu0 %v1041
        %1075 = vmatprep.subr.mxu0 0.0
        %1076 = vmatpush1.msra.mxu0 %v1042
        %1077 = vmatprep.subr.mxu0 0.0
        %1078 = vmatpush1.msra.mxu0 %v1043
        %1079 = vmatprep.subr.mxu0 0.0
        %1080 = vmatpush1.msra.mxu0 %v1044
        %1081 = vmatprep.subr.mxu0 0.0
        %1082 = vmatpush1.msra.mxu0 %v1045
        %1083 = vmatprep.subr.mxu0 0.0
        %1084 = vmatpush1.msra.mxu0 0.0
        %1085 = vmatprep.subr.mxu0 0.0
        %1086 = vmatpush1.msra.mxu0 0.0
        %1087 = vmatprep.subr.mxu0 0.0
        %1088 = vmatpush1.msra.mxu0 0.0
        %1089 = vmatprep.subr.mxu0 0.0
        %1090 = vmatpush1.msra.mxu0 0.0
        %1091 = vmatprep.subr.mxu0 0.0
        %1092 = vmatpush1.msra.mxu0 0.0
        %1093 = vmatprep.subr.mxu0 0.0
        %1094 = vmatpush1.msra.mxu0 0.0
        %1095 = vmatprep.subr.mxu0 0.0
        %1096 = vmatpush1.msra.mxu0 0.0
        %1097 = vmatprep.subr.mxu0 0.0
        %1098 = vmatpush1.msra.mxu0 0.0
        %1099 = vmatprep.subr.mxu0 0.0
        %1100 = vmatpush1.msra.mxu0 0.0
        %1101 = vmatprep.subr.mxu0 0.0
        %1102 = vmatpush1.msra.mxu0 0.0
        %1103 = vmatprep.subr.mxu0 0.0
        %1104 = vmatpush1.msra.mxu0 0.0
        %1105 = vmatprep.subr.mxu0 0.0
        %1106 = vmatpush1.msra.mxu0 0.0
        %1107 = vmatprep.subr.mxu0 0.0
        %1108 = vmatpush1.msra.mxu0 0.0
        %1109 = vmatprep.subr.mxu0 0.0
        %1110 = vmatpush1.msra.mxu0 0.0
        %1111 = vmatprep.subr.mxu0 0.0
        %1112 = vmatpush1.msra.mxu0 0.0
        %1113 = vmatprep.subr.mxu0 0.0
        %1114 = vmatpush1.msra.mxu0 0.0
        %1115 = vmatprep.mubr.f32.mxu0 0.0
        %1116 = vmatmul.mubr.f32.gmra.mrb[0].mxu0 %v289
        %v1117 = vpop.f32.mrb[0].mxu0
        %v1118 = vadd.f32 %v1049, %v1117
        %v1119 = vpop.f32.mrb[0].mxu0
        %1120 = vdwg.mxu0
        %1121 = vst [vmem:[%s256] sm:$0x1f] %v1118
        %s1122 = scalar_lea.vmem %s233, 8 [#allocation2]
        %v1123 = vld [vmem:[%s1122] sm:$0xff]
        %1124 = vmatprep.subr.mxu0 0.0
        %1125 = vmatpush1.msra.mxu0 %v1123
        %1126 = vmatprep.subr.mxu0 0.0
        %1127 = vmatpush1.msra.mxu0 0.0
        %1128 = vmatprep.subr.mxu0 0.0
        %1129 = vmatpush1.msra.mxu0 0.0
        %1130 = vmatprep.subr.mxu0 0.0
        %1131 = vmatpush1.msra.mxu0 0.0
        %1132 = vmatprep.subr.mxu0 0.0
        %1133 = vmatpush1.msra.mxu0 0.0
        %1134 = vmatprep.subr.mxu0 0.0
        %1135 = vmatpush1.msra.mxu0 0.0
        %1136 = vmatprep.subr.mxu0 0.0
        %1137 = vmatpush1.msra.mxu0 0.0
        %1138 = vmatprep.subr.mxu0 0.0
        %1139 = vmatpush1.msra.mxu0 0.0
        %1140 = vmatprep.subr.mxu0 0.0
        %1141 = vmatpush1.msra.mxu0 0.0
        %1142 = vmatprep.subr.mxu0 0.0
        %1143 = vmatpush1.msra.mxu0 0.0
        %1144 = vmatprep.subr.mxu0 0.0
        %1145 = vmatpush1.msra.mxu0 0.0
        %1146 = vmatprep.subr.mxu0 0.0
        %1147 = vmatpush1.msra.mxu0 0.0
        %1148 = vmatprep.subr.mxu0 0.0
        %1149 = vmatpush1.msra.mxu0 0.0
        %1150 = vmatprep.subr.mxu0 0.0
        %1151 = vmatpush1.msra.mxu0 0.0
        %1152 = vmatprep.subr.mxu0 0.0
        %1153 = vmatpush1.msra.mxu0 0.0
        %1154 = vmatprep.subr.mxu0 0.0
        %1155 = vmatpush1.msra.mxu0 0.0
        %1156 = vmatprep.subr.mxu0 0.0
        %1157 = vmatpush1.msra.mxu0 0.0
        %1158 = vmatprep.subr.mxu0 0.0
        %1159 = vmatpush1.msra.mxu0 0.0
        %1160 = vmatprep.subr.mxu0 0.0
        %1161 = vmatpush1.msra.mxu0 0.0
        %1162 = vmatprep.subr.mxu0 0.0
        %1163 = vmatpush1.msra.mxu0 0.0
        %1164 = vmatprep.subr.mxu0 0.0
        %1165 = vmatpush1.msra.mxu0 0.0
        %1166 = vmatprep.subr.mxu0 0.0
        %1167 = vmatpush1.msra.mxu0 0.0
        %1168 = vmatprep.subr.mxu0 0.0
        %1169 = vmatpush1.msra.mxu0 0.0
        %1170 = vmatprep.subr.mxu0 0.0
        %1171 = vmatpush1.msra.mxu0 0.0
        %1172 = vmatprep.subr.mxu0 0.0
        %1173 = vmatpush1.msra.mxu0 0.0
        %1174 = vmatprep.subr.mxu0 0.0
        %1175 = vmatpush1.msra.mxu0 0.0
        %1176 = vmatprep.subr.mxu0 0.0
        %1177 = vmatpush1.msra.mxu0 0.0
        %1178 = vmatprep.subr.mxu0 0.0
        %1179 = vmatpush1.msra.mxu0 0.0
        %1180 = vmatprep.subr.mxu0 0.0
        %1181 = vmatpush1.msra.mxu0 0.0
        %1182 = vmatprep.subr.mxu0 0.0
        %1183 = vmatpush1.msra.mxu0 0.0
        %1184 = vmatprep.subr.mxu0 0.0
        %1185 = vmatpush1.msra.mxu0 0.0
        %1186 = vmatprep.subr.mxu0 0.0
        %1187 = vmatpush1.msra.mxu0 0.0
        %1188 = vmatprep.mubr.f32.mxu0 0.0
        %1189 = vmatmul.mubr.f32.gmra.mrb[0].mxu0 %v374
        %v1190 = vpop.f32.mrb[0].mxu0
        %v1191 = vadd.f32 %v295, %v1190
        %v1192 = vpop.f32.mrb[0].mxu0
        %1193 = vmatprep.mubr.f32.mxu0 0.0
        %1194 = vmatmul.mubr.f32.gmra.mrb[0].mxu0 %v377
        %v1195 = vpop.f32.mrb[0].mxu0
        %v1196 = vadd.f32 %v300, %v1195
        %v1197 = vpop.f32.mrb[0].mxu0
        %1198 = vmatprep.mubr.f32.mxu0 0.0
        %1199 = vmatmul.mubr.f32.gmra.mrb[0].mxu0 %v380
        %v1200 = vpop.f32.mrb[0].mxu0
        %v1201 = vadd.f32 %v305, %v1200
        %v1202 = vpop.f32.mrb[0].mxu0
        %1203 = vmatprep.mubr.f32.mxu0 0.0
        %1204 = vmatmul.mubr.f32.gmra.mrb[0].mxu0 %v383
        %v1205 = vpop.f32.mrb[0].mxu0
        %v1206 = vadd.f32 %v310, %v1205
        %v1207 = vpop.f32.mrb[0].mxu0
        %1208 = vmatprep.mubr.f32.mxu0 0.0
        %1209 = vmatmul.mubr.f32.gmra.mrb[0].mxu0 %v386
        %v1210 = vpop.f32.mrb[0].mxu0
        %v1211 = vadd.f32 %v315, %v1210
        %v1212 = vpop.f32.mrb[0].mxu0
        %1213 = vmatprep.mubr.f32.mxu0 0.0
        %1214 = vmatmul.mubr.f32.gmra.mrb[0].mxu0 %v389
        %v1215 = vpop.f32.mrb[0].mxu0
        %v1216 = vadd.f32 %v320, %v1215
        %v1217 = vpop.f32.mrb[0].mxu0
        %1218 = vmatprep.mubr.f32.mxu0 0.0
        %1219 = vmatmul.mubr.f32.gmra.mrb[0].mxu0 %v392
        %v1220 = vpop.f32.mrb[0].mxu0
        %v1221 = vadd.f32 %v325, %v1220
        %v1222 = vpop.f32.mrb[0].mxu0
        %1223 = vmatprep.mubr.f32.mxu0 0.0
        %1224 = vmatmul.mubr.f32.gmra.mrb[0].mxu0 %v395
        %v1225 = vpop.f32.mrb[0].mxu0
        %v1226 = vadd.f32 %v330, %v1225
        %v1227 = vpop.f32.mrb[0].mxu0
        %1228 = vmatprep.mubr.f32.mxu0 0.0
        %1229 = vmatmul.mubr.f32.gmra.mrb[0].mxu0 %v398
        %v1230 = vpop.f32.mrb[0].mxu0
        %v1231 = vadd.f32 %v335, %v1230
        %v1232 = vpop.f32.mrb[0].mxu0
        %1233 = vmatprep.mubr.f32.mxu0 0.0
        %1234 = vmatmul.mubr.f32.gmra.mrb[0].mxu0 %v401
        %v1235 = vpop.f32.mrb[0].mxu0
        %v1236 = vadd.f32 %v340, %v1235
        %v1237 = vpop.f32.mrb[0].mxu0
        %1238 = vmatprep.mubr.f32.mxu0 0.0
        %1239 = vmatmul.mubr.f32.gmra.mrb[0].mxu0 %v404
        %v1240 = vpop.f32.mrb[0].mxu0
        %v1241 = vadd.f32 %v345, %v1240
        %v1242 = vpop.f32.mrb[0].mxu0
        %1243 = vmatprep.mubr.f32.mxu0 0.0
        %1244 = vmatmul.mubr.f32.gmra.mrb[0].mxu0 %v407
        %v1245 = vpop.f32.mrb[0].mxu0
        %v1246 = vadd.f32 %v350, %v1245
        %v1247 = vpop.f32.mrb[0].mxu0
        %1248 = vmatprep.mubr.f32.mxu0 0.0
        %1249 = vmatmul.mubr.f32.gmra.mrb[0].mxu0 %v410
        %v1250 = vpop.f32.mrb[0].mxu0
        %v1251 = vadd.f32 %v355, %v1250
        %v1252 = vpop.f32.mrb[0].mxu0
        %1253 = vmatprep.mubr.f32.mxu0 0.0
        %1254 = vmatmul.mubr.f32.gmra.mrb[0].mxu0 %v413
        %v1255 = vpop.f32.mrb[0].mxu0
        %v1256 = vadd.f32 %v360, %v1255
        %v1257 = vpop.f32.mrb[0].mxu0
        %1258 = vmatprep.mubr.f32.mxu0 0.0
        %1259 = vmatmul.mubr.f32.gmra.mrb[0].mxu0 %v416
        %v1260 = vpop.f32.mrb[0].mxu0
        %v1261 = vadd.f32 %v365, %v1260
        %v1262 = vpop.f32.mrb[0].mxu0
        %1263 = vmatprep.mubr.f32.mxu0 0.0
        %1264 = vmatmul.mubr.f32.gmra.mrb[0].mxu0 %v419
        %v1265 = vpop.f32.mrb[0].mxu0
        %v1266 = vadd.f32 %v370, %v1265
        %v1267 = vpop.f32.mrb[0].mxu0
        %1268 = vdwg.mxu0
        %v1269 = vmul.f32 %v1191, 0.5
        %v1270 = vmul.f32 %v1196, 0.5
        %v1271 = vmul.f32 %v1201, 0.5
        %v1272 = vmul.f32 %v1206, 0.5
        %v1273 = vmul.f32 %v1211, 0.5
        %v1274 = vmul.f32 %v1216, 0.5
        %v1275 = vmul.f32 %v1221, 0.5
        %v1276 = vmul.f32 %v1226, 0.5
        %v1277 = vmul.f32 %v1231, 0.5
        %v1278 = vmul.f32 %v1236, 0.5
        %v1279 = vmul.f32 %v1241, 0.5
        %v1280 = vmul.f32 %v1246, 0.5
        %v1281 = vmul.f32 %v1251, 0.5
        %v1282 = vmul.f32 %v1256, 0.5
        %v1283 = vmul.f32 %v1261, 0.5
        %v1284 = vmul.f32 %v1266, 0.5
        %v1285 = vmul.f32 %v1191, 0.70710677
        %v1286 = vmul.f32 %v1196, 0.70710677
        %v1287 = vmul.f32 %v1201, 0.70710677
        %v1288 = vmul.f32 %v1206, 0.70710677
        %v1289 = vmul.f32 %v1211, 0.70710677
        %v1290 = vmul.f32 %v1216, 0.70710677
        %v1291 = vmul.f32 %v1221, 0.70710677
        %v1292 = vmul.f32 %v1226, 0.70710677
        %v1293 = vmul.f32 %v1231, 0.70710677
        %v1294 = vmul.f32 %v1236, 0.70710677
        %v1295 = vmul.f32 %v1241, 0.70710677
        %v1296 = vmul.f32 %v1246, 0.70710677
        %v1297 = vmul.f32 %v1251, 0.70710677
        %v1298 = vmul.f32 %v1256, 0.70710677
        %v1299 = vmul.f32 %v1261, 0.70710677
        %v1300 = vmul.f32 %v1266, 0.70710677
        %v1301 = vmax.f32 %v1285, -3.832507
        %v1302 = vmax.f32 %v1286, -3.832507
        %v1303 = vmax.f32 %v1287, -3.832507
        %v1304 = vmax.f32 %v1288, -3.832507
        %v1305 = vmax.f32 %v1289, -3.832507
        %v1306 = vmax.f32 %v1290, -3.832507
        %v1307 = vmax.f32 %v1291, -3.832507
        %v1308 = vmax.f32 %v1292, -3.832507
        %v1309 = vmax.f32 %v1293, -3.832507
        %v1310 = vmax.f32 %v1294, -3.832507
        %v1311 = vmax.f32 %v1295, -3.832507
        %v1312 = vmax.f32 %v1296, -3.832507
        %v1313 = vmax.f32 %v1297, -3.832507
        %v1314 = vmax.f32 %v1298, -3.832507
        %v1315 = vmax.f32 %v1299, -3.832507
        %v1316 = vmax.f32 %v1300, -3.832507
        %v1317 = vmin.f32 %v1301, 3.832507
        %v1318 = vmin.f32 %v1302, 3.832507
        %v1319 = vmin.f32 %v1303, 3.832507
        %v1320 = vmin.f32 %v1304, 3.832507
        %v1321 = vmin.f32 %v1305, 3.832507
        %v1322 = vmin.f32 %v1306, 3.832507
        %v1323 = vmin.f32 %v1307, 3.832507
        %v1324 = vmin.f32 %v1308, 3.832507
        %v1325 = vmin.f32 %v1309, 3.832507
        %v1326 = vmin.f32 %v1310, 3.832507
        %v1327 = vmin.f32 %v1311, 3.832507
        %v1328 = vmin.f32 %v1312, 3.832507
        %v1329 = vmin.f32 %v1313, 3.832507
        %v1330 = vmin.f32 %v1314, 3.832507
        %v1331 = vmin.f32 %v1315, 3.832507
        %v1332 = vmin.f32 %v1316, 3.832507
        %v1333 = vmul.f32 %v1317, %v1317
        %v1334 = vmul.f32 %v1318, %v1318
        %v1335 = vmul.f32 %v1319, %v1319
        %v1336 = vmul.f32 %v1320, %v1320
        %v1337 = vmul.f32 %v1321, %v1321
        %v1338 = vmul.f32 %v1322, %v1322
        %v1339 = vmul.f32 %v1323, %v1323
        %v1340 = vmul.f32 %v1324, %v1324
        %v1341 = vmul.f32 %v1325, %v1325
        %v1342 = vmul.f32 %v1326, %v1326
        %v1343 = vmul.f32 %v1327, %v1327
        %v1344 = vmul.f32 %v1328, %v1328
        %v1345 = vmul.f32 %v1329, %v1329
        %v1346 = vmul.f32 %v1330, %v1330
        %v1347 = vmul.f32 %v1331, %v1331
        %v1348 = vmul.f32 %v1332, %v1332
        %v1349 = vmul.f32 %v1333, 0.00022905065
        %v1350 = vmul.f32 %v1334, 0.00022905065
        %v1351 = vmul.f32 %v1335, 0.00022905065
        %v1352 = vmul.f32 %v1336, 0.00022905065
        %v1353 = vmul.f32 %v1337, 0.00022905065
        %v1354 = vmul.f32 %v1338, 0.00022905065
        %v1355 = vmul.f32 %v1339, 0.00022905065
        %v1356 = vmul.f32 %v1340, 0.00022905065
        %v1357 = vmul.f32 %v1341, 0.00022905065
        %v1358 = vmul.f32 %v1342, 0.00022905065
        %v1359 = vmul.f32 %v1343, 0.00022905065
        %v1360 = vmul.f32 %v1344, 0.00022905065
        %v1361 = vmul.f32 %v1345, 0.00022905065
        %v1362 = vmul.f32 %v1346, 0.00022905065
        %v1363 = vmul.f32 %v1347, 0.00022905065
        %v1364 = vmul.f32 %v1348, 0.00022905065
        %v1365 = vadd.f32 %v1349, 0.003408291
        %v1366 = vadd.f32 %v1350, 0.003408291
        %v1367 = vadd.f32 %v1351, 0.003408291
        %v1368 = vadd.f32 %v1352, 0.003408291
        %v1369 = vadd.f32 %v1353, 0.003408291
        %v1370 = vadd.f32 %v1354, 0.003408291
        %v1371 = vadd.f32 %v1355, 0.003408291
        %v1372 = vadd.f32 %v1356, 0.003408291
        %v1373 = vadd.f32 %v1357, 0.003408291
        %v1374 = vadd.f32 %v1358, 0.003408291
        %v1375 = vadd.f32 %v1359, 0.003408291
        %v1376 = vadd.f32 %v1360, 0.003408291
        %v1377 = vadd.f32 %v1361, 0.003408291
        %v1378 = vadd.f32 %v1362, 0.003408291
        %v1379 = vadd.f32 %v1363, 0.003408291
        %v1380 = vadd.f32 %v1364, 0.003408291
        %v1381 = vmul.f32 %v1365, %v1333
        %v1382 = vmul.f32 %v1366, %v1334
        %v1383 = vmul.f32 %v1367, %v1335
        %v1384 = vmul.f32 %v1368, %v1336
        %v1385 = vmul.f32 %v1369, %v1337
        %v1386 = vmul.f32 %v1370, %v1338
        %v1387 = vmul.f32 %v1371, %v1339
        %v1388 = vmul.f32 %v1372, %v1340
        %v1389 = vmul.f32 %v1373, %v1341
        %v1390 = vmul.f32 %v1374, %v1342
        %v1391 = vmul.f32 %v1375, %v1343
        %v1392 = vmul.f32 %v1376, %v1344
        %v1393 = vmul.f32 %v1377, %v1345
        %v1394 = vmul.f32 %v1378, %v1346
        %v1395 = vmul.f32 %v1379, %v1347
        %v1396 = vmul.f32 %v1380, %v1348
        %v1397 = vadd.f32 %v1381, 0.050955694
        %v1398 = vadd.f32 %v1382, 0.050955694
        %v1399 = vadd.f32 %v1383, 0.050955694
        %v1400 = vadd.f32 %v1384, 0.050955694
        %v1401 = vadd.f32 %v1385, 0.050955694
        %v1402 = vadd.f32 %v1386, 0.050955694
        %v1403 = vadd.f32 %v1387, 0.050955694
        %v1404 = vadd.f32 %v1388, 0.050955694
        %v1405 = vadd.f32 %v1389, 0.050955694
        %v1406 = vadd.f32 %v1390, 0.050955694
        %v1407 = vadd.f32 %v1391, 0.050955694
        %v1408 = vadd.f32 %v1392, 0.050955694
        %v1409 = vadd.f32 %v1393, 0.050955694
        %v1410 = vadd.f32 %v1394, 0.050955694
        %v1411 = vadd.f32 %v1395, 0.050955694
        %v1412 = vadd.f32 %v1396, 0.050955694
        %v1413 = vmul.f32 %v1397, %v1333
        %v1414 = vmul.f32 %v1398, %v1334
        %v1415 = vmul.f32 %v1399, %v1335
        %v1416 = vmul.f32 %v1400, %v1336
        %v1417 = vmul.f32 %v1401, %v1337
        %v1418 = vmul.f32 %v1402, %v1338
        %v1419 = vmul.f32 %v1403, %v1339
        %v1420 = vmul.f32 %v1404, %v1340
        %v1421 = vmul.f32 %v1405, %v1341
        %v1422 = vmul.f32 %v1406, %v1342
        %v1423 = vmul.f32 %v1407, %v1343
        %v1424 = vmul.f32 %v1408, %v1344
        %v1425 = vmul.f32 %v1409, %v1345
        %v1426 = vmul.f32 %v1410, %v1346
        %v1427 = vmul.f32 %v1411, %v1347
        %v1428 = vmul.f32 %v1412, %v1348
        %v1429 = vadd.f32 %v1413, 0.18520832
        %v1430 = vadd.f32 %v1414, 0.18520832
        %v1431 = vadd.f32 %v1415, 0.18520832
        %v1432 = vadd.f32 %v1416, 0.18520832
        %v1433 = vadd.f32 %v1417, 0.18520832
        %v1434 = vadd.f32 %v1418, 0.18520832
        %v1435 = vadd.f32 %v1419, 0.18520832
        %v1436 = vadd.f32 %v1420, 0.18520832
        %v1437 = vadd.f32 %v1421, 0.18520832
        %v1438 = vadd.f32 %v1422, 0.18520832
        %v1439 = vadd.f32 %v1423, 0.18520832
        %v1440 = vadd.f32 %v1424, 0.18520832
        %v1441 = vadd.f32 %v1425, 0.18520832
        %v1442 = vadd.f32 %v1426, 0.18520832
        %v1443 = vadd.f32 %v1427, 0.18520832
        %v1444 = vadd.f32 %v1428, 0.18520832
        %v1445 = vmul.f32 %v1429, %v1333
        %v1446 = vmul.f32 %v1430, %v1334
        %v1447 = vmul.f32 %v1431, %v1335
        %v1448 = vmul.f32 %v1432, %v1336
        %v1449 = vmul.f32 %v1433, %v1337
        %v1450 = vmul.f32 %v1434, %v1338
        %v1451 = vmul.f32 %v1435, %v1339
        %v1452 = vmul.f32 %v1436, %v1340
        %v1453 = vmul.f32 %v1437, %v1341
        %v1454 = vmul.f32 %v1438, %v1342
        %v1455 = vmul.f32 %v1439, %v1343
        %v1456 = vmul.f32 %v1440, %v1344
        %v1457 = vmul.f32 %v1441, %v1345
        %v1458 = vmul.f32 %v1442, %v1346
        %v1459 = vmul.f32 %v1443, %v1347
        %v1460 = vmul.f32 %v1444, %v1348
        %v1461 = vadd.f32 %v1445, 1.1283791
        %v1462 = vadd.f32 %v1446, 1.1283791
        %v1463 = vadd.f32 %v1447, 1.1283791
        %v1464 = vadd.f32 %v1448, 1.1283791
        %v1465 = vadd.f32 %v1449, 1.1283791
        %v1466 = vadd.f32 %v1450, 1.1283791
        %v1467 = vadd.f32 %v1451, 1.1283791
        %v1468 = vadd.f32 %v1452, 1.1283791
        %v1469 = vadd.f32 %v1453, 1.1283791
        %v1470 = vadd.f32 %v1454, 1.1283791
        %v1471 = vadd.f32 %v1455, 1.1283791
        %v1472 = vadd.f32 %v1456, 1.1283791
        %v1473 = vadd.f32 %v1457, 1.1283791
        %v1474 = vadd.f32 %v1458, 1.1283791
        %v1475 = vadd.f32 %v1459, 1.1283791
        %v1476 = vadd.f32 %v1460, 1.1283791
        %v1477 = vmul.f32 %v1317, %v1461
        %v1478 = vmul.f32 %v1318, %v1462
        %v1479 = vmul.f32 %v1319, %v1463
        %v1480 = vmul.f32 %v1320, %v1464
        %v1481 = vmul.f32 %v1321, %v1465
        %v1482 = vmul.f32 %v1322, %v1466
        %v1483 = vmul.f32 %v1323, %v1467
        %v1484 = vmul.f32 %v1324, %v1468
        %v1485 = vmul.f32 %v1325, %v1469
        %v1486 = vmul.f32 %v1326, %v1470
        %v1487 = vmul.f32 %v1327, %v1471
        %v1488 = vmul.f32 %v1328, %v1472
        %v1489 = vmul.f32 %v1329, %v1473
        %v1490 = vmul.f32 %v1330, %v1474
        %v1491 = vmul.f32 %v1331, %v1475
        %v1492 = vmul.f32 %v1332, %v1476
        %v1493 = vmul.f32 %v1333, -1.1791603e-07
        %v1494 = vmul.f32 %v1334, -1.1791603e-07
        %v1495 = vmul.f32 %v1335, -1.1791603e-07
        %v1496 = vmul.f32 %v1336, -1.1791603e-07
        %v1497 = vmul.f32 %v1337, -1.1791603e-07
        %v1498 = vmul.f32 %v1338, -1.1791603e-07
        %v1499 = vmul.f32 %v1339, -1.1791603e-07
        %v1500 = vmul.f32 %v1340, -1.1791603e-07
        %v1501 = vmul.f32 %v1341, -1.1791603e-07
        %v1502 = vmul.f32 %v1342, -1.1791603e-07
        %v1503 = vmul.f32 %v1343, -1.1791603e-07
        %v1504 = vmul.f32 %v1344, -1.1791603e-07
        %v1505 = vmul.f32 %v1345, -1.1791603e-07
        %v1506 = vmul.f32 %v1346, -1.1791603e-07
        %v1507 = vmul.f32 %v1347, -1.1791603e-07
        %v1508 = vmul.f32 %v1348, -1.1791603e-07
        %v1509 = vadd.f32 %v1493, 2.3547966e-05
        %v1510 = vadd.f32 %v1494, 2.3547966e-05
        %v1511 = vadd.f32 %v1495, 2.3547966e-05
        %v1512 = vadd.f32 %v1496, 2.3547966e-05
        %v1513 = vadd.f32 %v1497, 2.3547966e-05
        %v1514 = vadd.f32 %v1498, 2.3547966e-05
        %v1515 = vadd.f32 %v1499, 2.3547966e-05
        %v1516 = vadd.f32 %v1500, 2.3547966e-05
        %v1517 = vadd.f32 %v1501, 2.3547966e-05
        %v1518 = vadd.f32 %v1502, 2.3547966e-05
        %v1519 = vadd.f32 %v1503, 2.3547966e-05
        %v1520 = vadd.f32 %v1504, 2.3547966e-05
        %v1521 = vadd.f32 %v1505, 2.3547966e-05
        %v1522 = vadd.f32 %v1506, 2.3547966e-05
        %v1523 = vadd.f32 %v1507, 2.3547966e-05
        %v1524 = vadd.f32 %v1508, 2.3547966e-05
        %v1525 = vmul.f32 %v1509, %v1333
        %v1526 = vmul.f32 %v1510, %v1334
        %v1527 = vmul.f32 %v1511, %v1335
        %v1528 = vmul.f32 %v1512, %v1336
        %v1529 = vmul.f32 %v1513, %v1337
        %v1530 = vmul.f32 %v1514, %v1338
        %v1531 = vmul.f32 %v1515, %v1339
        %v1532 = vmul.f32 %v1516, %v1340
        %v1533 = vmul.f32 %v1517, %v1341
        %v1534 = vmul.f32 %v1518, %v1342
        %v1535 = vmul.f32 %v1519, %v1343
        %v1536 = vmul.f32 %v1520, %v1344
        %v1537 = vmul.f32 %v1521, %v1345
        %v1538 = vmul.f32 %v1522, %v1346
        %v1539 = vmul.f32 %v1523, %v1347
        %v1540 = vmul.f32 %v1524, %v1348
        %v1541 = vadd.f32 %v1525, 0.0010179626
        %v1542 = vadd.f32 %v1526, 0.0010179626
        %v1543 = vadd.f32 %v1527, 0.0010179626
        %v1544 = vadd.f32 %v1528, 0.0010179626
        %v1545 = vadd.f32 %v1529, 0.0010179626
        %v1546 = vadd.f32 %v1530, 0.0010179626
        %v1547 = vadd.f32 %v1531, 0.0010179626
        %v1548 = vadd.f32 %v1532, 0.0010179626
        %v1549 = vadd.f32 %v1533, 0.0010179626
        %v1550 = vadd.f32 %v1534, 0.0010179626
        %v1551 = vadd.f32 %v1535, 0.0010179626
        %v1552 = vadd.f32 %v1536, 0.0010179626
        %v1553 = vadd.f32 %v1537, 0.0010179626
        %v1554 = vadd.f32 %v1538, 0.0010179626
        %v1555 = vadd.f32 %v1539, 0.0010179626
        %v1556 = vadd.f32 %v1540, 0.0010179626
        %v1557 = vmul.f32 %v1541, %v1333
        %v1558 = vmul.f32 %v1542, %v1334
        %v1559 = vmul.f32 %v1543, %v1335
        %v1560 = vmul.f32 %v1544, %v1336
        %v1561 = vmul.f32 %v1545, %v1337
        %v1562 = vmul.f32 %v1546, %v1338
        %v1563 = vmul.f32 %v1547, %v1339
        %v1564 = vmul.f32 %v1548, %v1340
        %v1565 = vmul.f32 %v1549, %v1341
        %v1566 = vmul.f32 %v1550, %v1342
        %v1567 = vmul.f32 %v1551, %v1343
        %v1568 = vmul.f32 %v1552, %v1344
        %v1569 = vmul.f32 %v1553, %v1345
        %v1570 = vmul.f32 %v1554, %v1346
        %v1571 = vmul.f32 %v1555, %v1347
        %v1572 = vmul.f32 %v1556, %v1348
        %v1573 = vadd.f32 %v1557, 0.01407047
        %v1574 = vadd.f32 %v1558, 0.01407047
        %v1575 = vadd.f32 %v1559, 0.01407047
        %v1576 = vadd.f32 %v1560, 0.01407047
        %v1577 = vadd.f32 %v1561, 0.01407047
        %v1578 = vadd.f32 %v1562, 0.01407047
        %v1579 = vadd.f32 %v1563, 0.01407047
        %v1580 = vadd.f32 %v1564, 0.01407047
        %v1581 = vadd.f32 %v1565, 0.01407047
        %v1582 = vadd.f32 %v1566, 0.01407047
        %v1583 = vadd.f32 %v1567, 0.01407047
        %v1584 = vadd.f32 %v1568, 0.01407047
        %v1585 = vadd.f32 %v1569, 0.01407047
        %v1586 = vadd.f32 %v1570, 0.01407047
        %v1587 = vadd.f32 %v1571, 0.01407047
        %v1588 = vadd.f32 %v1572, 0.01407047
        %v1589 = vmul.f32 %v1573, %v1333
        %v1590 = vmul.f32 %v1574, %v1334
        %v1591 = vmul.f32 %v1575, %v1335
        %v1592 = vmul.f32 %v1576, %v1336
        %v1593 = vmul.f32 %v1577, %v1337
        %v1594 = vmul.f32 %v1578, %v1338
        %v1595 = vmul.f32 %v1579, %v1339
        %v1596 = vmul.f32 %v1580, %v1340
        %v1597 = vmul.f32 %v1581, %v1341
        %v1598 = vmul.f32 %v1582, %v1342
        %v1599 = vmul.f32 %v1583, %v1343
        %v1600 = vmul.f32 %v1584, %v1344
        %v1601 = vmul.f32 %v1585, %v1345
        %v1602 = vmul.f32 %v1586, %v1346
        %v1603 = vmul.f32 %v1587, %v1347
        %v1604 = vmul.f32 %v1588, %v1348
        %v1605 = vadd.f32 %v1589, 0.11098505
        %v1606 = vadd.f32 %v1590, 0.11098505
        %v1607 = vadd.f32 %v1591, 0.11098505
        %v1608 = vadd.f32 %v1592, 0.11098505
        %v1609 = vadd.f32 %v1593, 0.11098505
        %v1610 = vadd.f32 %v1594, 0.11098505
        %v1611 = vadd.f32 %v1595, 0.11098505
        %v1612 = vadd.f32 %v1596, 0.11098505
        %v1613 = vadd.f32 %v1597, 0.11098505
        %v1614 = vadd.f32 %v1598, 0.11098505
        %v1615 = vadd.f32 %v1599, 0.11098505
        %v1616 = vadd.f32 %v1600, 0.11098505
        %v1617 = vadd.f32 %v1601, 0.11098505
        %v1618 = vadd.f32 %v1602, 0.11098505
        %v1619 = vadd.f32 %v1603, 0.11098505
        %v1620 = vadd.f32 %v1604, 0.11098505
        %v1621 = vmul.f32 %v1605, %v1333
        %v1622 = vmul.f32 %v1606, %v1334
        %v1623 = vmul.f32 %v1607, %v1335
        %v1624 = vmul.f32 %v1608, %v1336
        %v1625 = vmul.f32 %v1609, %v1337
        %v1626 = vmul.f32 %v1610, %v1338
        %v1627 = vmul.f32 %v1611, %v1339
        %v1628 = vmul.f32 %v1612, %v1340
        %v1629 = vmul.f32 %v1613, %v1341
        %v1630 = vmul.f32 %v1614, %v1342
        %v1631 = vmul.f32 %v1615, %v1343
        %v1632 = vmul.f32 %v1616, %v1344
        %v1633 = vmul.f32 %v1617, %v1345
        %v1634 = vmul.f32 %v1618, %v1346
        %v1635 = vmul.f32 %v1619, %v1347
        %v1636 = vmul.f32 %v1620, %v1348
        %v1637 = vadd.f32 %v1621, 0.49746925
        %v1638 = vadd.f32 %v1622, 0.49746925
        %v1639 = vadd.f32 %v1623, 0.49746925
        %v1640 = vadd.f32 %v1624, 0.49746925
        %v1641 = vadd.f32 %v1625, 0.49746925
        %v1642 = vadd.f32 %v1626, 0.49746925
        %v1643 = vadd.f32 %v1627, 0.49746925
        %v1644 = vadd.f32 %v1628, 0.49746925
        %v1645 = vadd.f32 %v1629, 0.49746925
        %v1646 = vadd.f32 %v1630, 0.49746925
        %v1647 = vadd.f32 %v1631, 0.49746925
        %v1648 = vadd.f32 %v1632, 0.49746925
        %v1649 = vadd.f32 %v1633, 0.49746925
        %v1650 = vadd.f32 %v1634, 0.49746925
        %v1651 = vadd.f32 %v1635, 0.49746925
        %v1652 = vadd.f32 %v1636, 0.49746925
        %v1653 = vmul.f32 %v1637, %v1333
        %v1654 = vmul.f32 %v1638, %v1334
        %v1655 = vmul.f32 %v1639, %v1335
        %v1656 = vmul.f32 %v1640, %v1336
        %v1657 = vmul.f32 %v1641, %v1337
        %v1658 = vmul.f32 %v1642, %v1338
        %v1659 = vmul.f32 %v1643, %v1339
        %v1660 = vmul.f32 %v1644, %v1340
        %v1661 = vmul.f32 %v1645, %v1341
        %v1662 = vmul.f32 %v1646, %v1342
        %v1663 = vmul.f32 %v1647, %v1343
        %v1664 = vmul.f32 %v1648, %v1344
        %v1665 = vmul.f32 %v1649, %v1345
        %v1666 = vmul.f32 %v1650, %v1346
        %v1667 = vmul.f32 %v1651, %v1347
        %v1668 = vmul.f32 %v1652, %v1348
        %v1669 = vadd.f32 %v1653, 1.0
        %v1670 = vadd.f32 %v1654, 1.0
        %v1671 = vadd.f32 %v1655, 1.0
        %v1672 = vadd.f32 %v1656, 1.0
        %v1673 = vadd.f32 %v1657, 1.0
        %v1674 = vadd.f32 %v1658, 1.0
        %v1675 = vadd.f32 %v1659, 1.0
        %v1676 = vadd.f32 %v1660, 1.0
        %v1677 = vadd.f32 %v1661, 1.0
        %v1678 = vadd.f32 %v1662, 1.0
        %v1679 = vadd.f32 %v1663, 1.0
        %v1680 = vadd.f32 %v1664, 1.0
        %v1681 = vadd.f32 %v1665, 1.0
        %v1682 = vadd.f32 %v1666, 1.0
        %v1683 = vadd.f32 %v1667, 1.0
        %v1684 = vadd.f32 %v1668, 1.0
        %v1685 = vrcp.pop %v1669
        %v1686 = vrcp.pop %v1670
        %v1687 = vrcp.pop %v1671
        %v1688 = vrcp.pop %v1672
        %v1689 = vrcp.pop %v1673
        %v1690 = vrcp.pop %v1674
        %v1691 = vrcp.pop %v1675
        %v1692 = vrcp.pop %v1676
        %v1693 = vrcp.pop %v1677
        %v1694 = vrcp.pop %v1678
        %v1695 = vrcp.pop %v1679
        %v1696 = vrcp.pop %v1680
        %v1697 = vrcp.pop %v1681
        %v1698 = vrcp.pop %v1682
        %v1699 = vrcp.pop %v1683
        %v1700 = vrcp.pop %v1684
        %v1701 = vmul.f32 %v1477, %v1685
        %v1702 = vmul.f32 %v1478, %v1686
        %v1703 = vmul.f32 %v1479, %v1687
        %v1704 = vmul.f32 %v1480, %v1688
        %v1705 = vmul.f32 %v1481, %v1689
        %v1706 = vmul.f32 %v1482, %v1690
        %v1707 = vmul.f32 %v1483, %v1691
        %v1708 = vmul.f32 %v1484, %v1692
        %v1709 = vmul.f32 %v1485, %v1693
        %v1710 = vmul.f32 %v1486, %v1694
        %v1711 = vmul.f32 %v1487, %v1695
        %v1712 = vmul.f32 %v1488, %v1696
        %v1713 = vmul.f32 %v1489, %v1697
        %v1714 = vmul.f32 %v1490, %v1698
        %v1715 = vmul.f32 %v1491, %v1699
        %v1716 = vmul.f32 %v1492, %v1700
        %v1717 = vadd.f32 %v1701, 1.0
        %v1718 = vadd.f32 %v1702, 1.0
        %v1719 = vadd.f32 %v1703, 1.0
        %v1720 = vadd.f32 %v1704, 1.0
        %v1721 = vadd.f32 %v1705, 1.0
        %v1722 = vadd.f32 %v1706, 1.0
        %v1723 = vadd.f32 %v1707, 1.0
        %v1724 = vadd.f32 %v1708, 1.0
        %v1725 = vadd.f32 %v1709, 1.0
        %v1726 = vadd.f32 %v1710, 1.0
        %v1727 = vadd.f32 %v1711, 1.0
        %v1728 = vadd.f32 %v1712, 1.0
        %v1729 = vadd.f32 %v1713, 1.0
        %v1730 = vadd.f32 %v1714, 1.0
        %v1731 = vadd.f32 %v1715, 1.0
        %v1732 = vadd.f32 %v1716, 1.0
        %v1733 = vmul.f32 %v1269, %v1717
        %v1734 = vmul.f32 %v1270, %v1718
        %v1735 = vmul.f32 %v1271, %v1719
        %v1736 = vmul.f32 %v1272, %v1720
        %v1737 = vmul.f32 %v1273, %v1721
        %v1738 = vmul.f32 %v1274, %v1722
        %v1739 = vmul.f32 %v1275, %v1723
        %v1740 = vmul.f32 %v1276, %v1724
        %v1741 = vmul.f32 %v1277, %v1725
        %v1742 = vmul.f32 %v1278, %v1726
        %v1743 = vmul.f32 %v1279, %v1727
        %v1744 = vmul.f32 %v1280, %v1728
        %v1745 = vmul.f32 %v1281, %v1729
        %v1746 = vmul.f32 %v1282, %v1730
        %v1747 = vmul.f32 %v1283, %v1731
        %v1748 = vmul.f32 %v1284, %v1732
        %1749 = vmatprep.subr.mxu0 0.0
        %1750 = vmatpush1.msra.mxu0 %v1733
        %1751 = vmatprep.subr.mxu0 0.0
        %1752 = vmatpush1.msra.mxu0 %v1734
        %1753 = vmatprep.subr.mxu0 0.0
        %1754 = vmatpush1.msra.mxu0 %v1735
        %1755 = vmatprep.subr.mxu0 0.0
        %1756 = vmatpush1.msra.mxu0 %v1736
        %1757 = vmatprep.subr.mxu0 0.0
        %1758 = vmatpush1.msra.mxu0 %v1737
        %1759 = vmatprep.subr.mxu0 0.0
        %1760 = vmatpush1.msra.mxu0 %v1738
        %1761 = vmatprep.subr.mxu0 0.0
        %1762 = vmatpush1.msra.mxu0 %v1739
        %1763 = vmatprep.subr.mxu0 0.0
        %1764 = vmatpush1.msra.mxu0 %v1740
        %1765 = vmatprep.subr.mxu0 0.0
        %1766 = vmatpush1.msra.mxu0 %v1741
        %1767 = vmatprep.subr.mxu0 0.0
        %1768 = vmatpush1.msra.mxu0 %v1742
        %1769 = vmatprep.subr.mxu0 0.0
        %1770 = vmatpush1.msra.mxu0 %v1743
        %1771 = vmatprep.subr.mxu0 0.0
        %1772 = vmatpush1.msra.mxu0 %v1744
        %1773 = vmatprep.subr.mxu0 0.0
        %1774 = vmatpush1.msra.mxu0 %v1745
        %1775 = vmatprep.subr.mxu0 0.0
        %1776 = vmatpush1.msra.mxu0 %v1746
        %1777 = vmatprep.subr.mxu0 0.0
        %1778 = vmatpush1.msra.mxu0 %v1747
        %1779 = vmatprep.subr.mxu0 0.0
        %1780 = vmatpush1.msra.mxu0 %v1748
        %1781 = vmatprep.subr.mxu0 0.0
        %1782 = vmatpush1.msra.mxu0 0.0
        %1783 = vmatprep.subr.mxu0 0.0
        %1784 = vmatpush1.msra.mxu0 0.0
        %1785 = vmatprep.subr.mxu0 0.0
        %1786 = vmatpush1.msra.mxu0 0.0
        %1787 = vmatprep.subr.mxu0 0.0
        %1788 = vmatpush1.msra.mxu0 0.0
        %1789 = vmatprep.subr.mxu0 0.0
        %1790 = vmatpush1.msra.mxu0 0.0
        %1791 = vmatprep.subr.mxu0 0.0
        %1792 = vmatpush1.msra.mxu0 0.0
        %1793 = vmatprep.subr.mxu0 0.0
        %1794 = vmatpush1.msra.mxu0 0.0
        %1795 = vmatprep.subr.mxu0 0.0
        %1796 = vmatpush1.msra.mxu0 0.0
        %1797 = vmatprep.subr.mxu0 0.0
        %1798 = vmatpush1.msra.mxu0 0.0
        %1799 = vmatprep.subr.mxu0 0.0
        %1800 = vmatpush1.msra.mxu0 0.0
        %1801 = vmatprep.subr.mxu0 0.0
        %1802 = vmatpush1.msra.mxu0 0.0
        %1803 = vmatprep.subr.mxu0 0.0
        %1804 = vmatpush1.msra.mxu0 0.0
        %1805 = vmatprep.subr.mxu0 0.0
        %1806 = vmatpush1.msra.mxu0 0.0
        %1807 = vmatprep.subr.mxu0 0.0
        %1808 = vmatpush1.msra.mxu0 0.0
        %1809 = vmatprep.subr.mxu0 0.0
        %1810 = vmatpush1.msra.mxu0 0.0
        %1811 = vmatprep.subr.mxu0 0.0
        %1812 = vmatpush1.msra.mxu0 0.0
        %1813 = vmatprep.mubr.f32.mxu0 0.0
        %1814 = vmatmul.mubr.f32.gmra.mrb[0].mxu0 %v289
        %v1815 = vpop.f32.mrb[0].mxu0
        %v1816 = vadd.f32 %v1049, %v1815
        %v1817 = vpop.f32.mrb[0].mxu0
        %1818 = vdwg.mxu0
        %s1819 = scalar_lea.vmem %s256, 8 [#allocation3]
        %1820 = vst [vmem:[%s1819] sm:$0x1f] %v1816
        %s1821 = sand.u32 %s134, 1
        %s1822 = sand.u32 %s134, 1
        %s1823 = smul.addr %s1822, 16
        %s1824 = scalar_lea.vmem [#allocation3], %s1823
        // Predicated region
        $region79: #{state_de_forward.9} parent=73 // pred_check
          %p1825 = pneg %p144
        $region80: #{state_de_forward.9} parent=73 // pred_check_branch
          %1827 = sbr.rel (%p1825) target = $region82
        $region81: #{state_de_forward.9} parent=73 // pred_region
          %s1828 = smul.addr %s16, 8
          %s1829 = scalar_lea.vmem %s5, %s1828
          // Predicated region
          $region83: #{state_de_forward.9} parent=81 // pred_check
            _
          $region84: #{state_de_forward.9} parent=81 // pred_check_branch
            %1831 = sbr.rel (0) target = $region86
          $region85: #{state_de_forward.9} parent=81 // pred_region
            // Predicated region
            $region87: #{state_de_forward.9} parent=85 // pred_check
              _
            $region88: #{state_de_forward.9} parent=85 // pred_check_branch
              %1833 = sbr.rel (0) target = $region90
            $region89: #{state_de_forward.9} parent=85 // pred_region
              // Predicated region
              $region102: #{state_de_forward.9} parent=89 // pred_check
                _
              $region103: #{state_de_forward.9} parent=89 // pred_check_branch
                %1850 = sbr.rel (0) target = $region105
              $region104: #{state_de_forward.9} parent=89 // pred_region
                loop: start=0, step=1, limit=1
                $region106: #{state_de_forward.9} parent=104 // loop_pre_header
                  _
                $region107: #{state_de_forward.9} parent=104 // loop_header
                  %s1852 = sphi 0, %s1856
                  %p1853 = scmp.ge.s32.totalorder %s1852, 1
                  %s1857 = sphi %s1824, %s1824
                  %s1858 = sphi %s1829, %s1829
                $region108: #{state_de_forward.9} parent=104 // loop_header_branch
                  %1855 = sbr.rel (%p1853) target = $region112
                $region109: #{state_de_forward.9} parent=104 // loop_body
                  %v1859 = vld [vmem:[%s1857] sm:$0xff]
                  %1860 = vst [vmem:[%s1858] sm:$0xff] %v1859
                  %v1861 = vld [vmem:[%s1857 + $0x8] sm:$0xff]
                  %1862 = vst [vmem:[%s1858 + $0x10] sm:$0xff] %v1861
                $region110: #{state_de_forward.9} parent=104 // loop_footer
                  %s1856 = sadd.s32 1, %s1852
                $region111: #{state_de_forward.9} parent=104 // loop_footer_branch
                  %1851 = sbr.rel target = $region107
                $region112: #{state_de_forward.9} parent=104 // loop_exit
                  _
              $region105: #{state_de_forward.9} parent=89 // pred_fallthru
                _
              // Predicated region
              $region113: #{state_de_forward.9} parent=89 // pred_check
                _
              $region114: #{state_de_forward.9} parent=89 // pred_check_branch
                %1864 = sbr.rel target = $region116
              $region115: #{state_de_forward.9} parent=89 // pred_region
                _
              $region116: #{state_de_forward.9} parent=89 // pred_fallthru
                _
            $region90: #{state_de_forward.9} parent=85 // pred_fallthru
              _
            // Predicated region
            $region91: #{state_de_forward.9} parent=85 // pred_check
              _
            $region92: #{state_de_forward.9} parent=85 // pred_check_branch
              %1835 = sbr.rel target = $region94
            $region93: #{state_de_forward.9} parent=85 // pred_region
              loop: start=0, step=1, limit=1
              $region95: #{state_de_forward.9} parent=93 // loop_pre_header
                _
              $region96: #{state_de_forward.9} parent=93 // loop_header
                %s1838 = sphi 0, %s1842
                %p1839 = scmp.ge.s32.totalorder %s1838, 1
                %s1843 = sphi %s1824, %s1824
                %s1844 = sphi %s1829, %s1829
              $region97: #{state_de_forward.9} parent=93 // loop_header_branch
                %1841 = sbr.rel (%p1839) target = $region101
              $region98: #{state_de_forward.9} parent=93 // loop_body
                %v1845 = vld [vmem:[%s1843] sm:$0xff]
                %1846 = vst [vmem:[%s1844] sm:$0xff] %v1845
                %v1847 = vld [vmem:[%s1843 + $0x8] sm:$0xff]
                %1848 = vst [vmem:[%s1844 + $0x10] sm:$0xff] %v1847
              $region99: #{state_de_forward.9} parent=93 // loop_footer
                %s1842 = sadd.s32 1, %s1838
              $region100: #{state_de_forward.9} parent=93 // loop_footer_branch
                %1837 = sbr.rel target = $region96
              $region101: #{state_de_forward.9} parent=93 // loop_exit
                _
            $region94: #{state_de_forward.9} parent=85 // pred_fallthru
              _
          $region86: #{state_de_forward.9} parent=81 // pred_fallthru
            _
          %1865 = vnop
        $region82: #{state_de_forward.9} parent=73 // pred_fallthru
          _
      $region74: #{state_de_forward.9} parent=5 // pred_fallthru
        _
      %p1866 = scmp.le.s32.totalorder 2, %s11
      // Predicated region
      $region117: #{state_de_forward.9} parent=5 // pred_check
        %p1867 = pneg %p1866
      $region118: #{state_de_forward.9} parent=5 // pred_check_branch
        %1869 = sbr.rel (%p1867) target = $region120
      $region119: #{state_de_forward.9} parent=5 // pred_region
        %s1870 = ssub.s32 %s11, 2
        // Predicated region
        $region121: #{state_de_forward.9} parent=119 // pred_check
          %p1871 = pneg %p150
        $region122: #{state_de_forward.9} parent=119 // pred_check_branch
          %1873 = sbr.rel (%p1871) target = $region124
        $region123: #{state_de_forward.9} parent=119 // pred_region
          %s1874 = sand.u32 %s135, 1
          %s1875 = sand.u32 %s135, 1
          %s1876 = smul.addr %s1875, 16
          %s1877 = scalar_lea.vmem [#allocation3], %s1876
        $region124: #{state_de_forward.9} parent=119 // pred_fallthru
          _
      $region120: #{state_de_forward.9} parent=5 // pred_fallthru
        _
    $region6: #{state_de_forward.9} parent=1 // loop_footer
      %s15 = sadd.s32 1, %s11
    $region7: #{state_de_forward.9} parent=1 // loop_footer_branch
      %10 = sbr.rel target = $region3
    $region8: #{state_de_forward.9} parent=1 // loop_exit
      _

</llo_original>
